<compile_context>
chip_gen: v5e
topology: v5e:2x2
jax: 0.10.0
libtpu: 0.0.40
codegen_flags: <defaults>
</compile_context>

<pallas_src>
import functools

import jax
import jax.numpy as jnp
from jax.experimental import pallas as pl
from jax.experimental.pallas import tpu as pltpu

NEG_SLOPE = 0.01   # nn.LeakyReLU default
BN_EPS = 1e-5      # nn.BatchNorm1d default
POOL = 4           # nn.MaxPool1d(4)


# ----------------------------------------------------------------------------
# Small static helpers.
# ----------------------------------------------------------------------------
def _leaky(v):
    return jnp.where(v >= 0.0, v, NEG_SLOPE * v)


def _pad_geom(K):
    """'same' padding split + 8-aligned sublane offset of the slab interior."""
    left = (K - 1) // 2
    right = (K - 1) - left
    off = ((left + 7) // 8) * 8
    return left, right, off


def _pick_batch_tile(N, cap=8):
    """Largest divisor of N keeping the batch grid >= 2 steps (megacore)."""
    target = max(1, min(cap, N // 2))
    for nb in range(target, 0, -1):
        if N % nb == 0:
            return nb
    return 1


def _pick_chunk(rows, col_width, nb, budget_elems=(1 << 19)):
    """Largest divisor of `rows` (preferring multiples of 8) whose per-chunk
    im2col column block (nb * chunk * col_width elements) stays under budget."""
    cap = max(1, budget_elems // max(1, nb * col_width))
    divisors = [d for d in range(1, rows + 1) if rows % d == 0]
    fitting = [d for d in divisors if d <= cap] or [divisors[0]]
    aligned = [d for d in fitting if d % 8 == 0]
    return max(aligned) if aligned else max(fitting)


def _pick_row_tile(N, cap=128):
    """Dense-stack row tile: multiple of 8 when N allows it, else whole batch."""
    if N % 8:
        return N
    target = max(8, min(cap, N // 2))
    best = 8
    for d in range(8, target + 1, 8):
        if N % d == 0:
            best = d
    return best


def _pick_k_tile(F, cap=1024):
    for tk in (1024, 512, 256, 128):
        if tk <= min(F, cap) and F % tk == 0:
            return tk
    return F


def _vmem_footprint(shape, dtype):
    """Rough padded VMEM footprint (lane->128, sublane->8) of one buffer."""
    itemsize = jnp.dtype(dtype).itemsize
    dims = [int(d) for d in shape]
    if len(dims) < 2:
        n = 1
        for d in dims:
            n *= d
        return max(n, 128) * itemsize
    lead = 1
    for d in dims[:-2]:
        lead *= d
    sub = -(-dims[-2] // 8) * 8
    lane = -(-dims[-1] // 128) * 128
    return lead * sub * lane * itemsize


# ----------------------------------------------------------------------------
# In-kernel matmul helper: LeakyReLU(col @ W + b), rows padded to a multiple
# of 8 so every chunk is a single tall MXU matmul (review #7).
# ----------------------------------------------------------------------------
def _mm_bias_lrelu(col, w_ref, b_ref, nb):
    lr, f = col.shape[1], col.shape[2]
    lr_pad = ((lr + 7) // 8) * 8
    if lr_pad != lr:
        col = jnp.concatenate(
            [col, jnp.zeros((nb, lr_pad - lr, f), col.dtype)], axis=1)
    y = jnp.dot(col.reshape(nb * lr_pad, f), w_ref[...],
                preferred_element_type=jnp.float32)
    y = y.reshape(nb, lr_pad, -1)
    if lr_pad != lr:
        y = y[:, :lr, :]
    return _leaky(y + b_ref[...].reshape(1, 1, -1))


# ----------------------------------------------------------------------------
# Fused conv tower: 6x (conv 'same' + LeakyReLU), 3x (BN eval + MaxPool(4)).
# One grid step processes Nb batch elements entirely in VMEM; each conv is
# chunked along the length axis and writes straight into the next layer's
# zero-halo'd pad slab.
# ----------------------------------------------------------------------------
def _conv_tower_kernel(x_ref,
                       w1, b1, w2, b2, s1, t1,
                       w3, b3, w4, b4, s2, t2,
                       w5, b5, w6, b6, s3, t3,
                       o_ref,
                       p2, p3, p4, p5, p6,
                       *, nb, L, K1, K2, K3, chunks):
    c1, c2, c3, c4, c5, c6 = chunks
    L1, L2, L3 = L // 4, L // 16, L // 64

    # Zero only the halo rows (re-zeroed every step: safe under megacore).
    def zero_halo(p_ref, K, data_len):
        left, right, off = _pad_geom(K)
        C = p_ref.shape[2]
        if left:
            p_ref[:, pl.ds(off - left, left), :] = jnp.zeros(
                (nb, left, C), p_ref.dtype)
        if right:
            p_ref[:, pl.ds(off + data_len, right), :] = jnp.zeros(
                (nb, right, C), p_ref.dtype)

    zero_halo(p2, K1, L)
    zero_halo(p3, K2, L1)
    zero_halo(p4, K2, L1)
    zero_halo(p5, K3, L2)
    zero_halo(p6, K3, L2)

    # Window gather: K shifted slices (lane-concat) for `rows` output
    # positions starting at output row `s`, with row stride `stride`.
    def slab_reader(p_ref, K):
        left, _, off = _pad_geom(K)
        base = off - left

        def read(s, rows, stride):
            cols = []
            for t in range(K):
                start = base + s + t
                if stride == 1:
                    cols.append(p_ref[:, pl.ds(start, rows), :])
                else:
                    cols.append(p_ref[:, pl.ds(start, rows, stride=stride), :])
            col = cols[0] if K == 1 else jnp.concatenate(cols, axis=2)
            return col.astype(jnp.bfloat16)          # MXU operand in bf16
        return read

    def x_reader(s, rows, stride):
        return x_ref[:, pl.ds(s, rows), :]           # already im2col'ed bf16

    # Un-pooled conv layer, chunked over the length axis.
    def conv_plain(read, Lo, w_ref, b_ref, chunk, dst_ref, dst_K):
        _, _, off_dst = _pad_geom(dst_K)
        for s in range(0, Lo, chunk):
            y = _mm_bias_lrelu(read(s, chunk, 1), w_ref, b_ref, nb)
            dst_ref[:, pl.ds(off_dst + s, chunk), :] = y.astype(dst_ref.dtype)

    # conv + LeakyReLU + BN(eval) + MaxPool1d(4): pooled row g = max_j of conv
    # row 4g+j, computed as 4 strided "phase" convolutions + elementwise max.
    def conv_pool(read, Lp, w_ref, b_ref, sc_ref, sh_ref, chunk, store):
        sc = sc_ref[...].reshape(1, 1, -1)
        sh = sh_ref[...].reshape(1, 1, -1)
        for g in range(0, Lp, chunk):
            m = None
            for j in range(POOL):
                y = _mm_bias_lrelu(read(POOL * g + j, chunk, POOL),
                                   w_ref, b_ref, nb)
                y = y * sc + sh
                m = y if m is None else jnp.maximum(m, y)
            store(g, chunk, m)

    def slab_store(dst_ref, dst_K):
        _, _, off_dst = _pad_geom(dst_K)

        def st(g, rows, val):
            dst_ref[:, pl.ds(off_dst + g, rows), :] = val.astype(dst_ref.dtype)
        return st

    def out_store(g, rows, val):
        o_ref[:, pl.ds(g, rows), :] = val.astype(o_ref.dtype)

    # ---- block 1 ----
    conv_plain(x_reader, L, w1, b1, c1, p2, K1)                     # (nb,L,32)
    conv_pool(slab_reader(p2, K1), L1, w2, b2, s1, t1, c2,
              slab_store(p3, K2))                                   # (nb,L/4,32)
    # ---- block 2 ----
    conv_plain(slab_reader(p3, K2), L1, w3, b3, c3, p4, K2)         # (nb,L/4,64)
    conv_pool(slab_reader(p4, K2), L2, w4, b4, s2, t2, c4,
              slab_store(p5, K3))                                   # (nb,L/16,64)
    # ---- block 3 ----
    conv_plain(slab_reader(p5, K3), L2, w5, b5, c5, p6, K3)         # (nb,L/16,128)
    conv_pool(slab_reader(p6, K3), L3, w6, b6, s3, t3, c6,
              out_store)                                            # (nb,L/64,128)


def conv_tower(x_col, w_cols, b_rows, bn_scale, bn_shift, *, L, Ks, Cin):
    """x_col: (N, L, K1*Cin) bf16 pre-im2col'ed input -> (N, L//64, 128) bf16."""
    N = x_col.shape[0]
    K1, K2, K3 = Ks
    L1, L2, L3 = L // 4, L // 16, L // 64
    Nb = _pick_batch_tile(N)

    chunks = (
        _pick_chunk(L,  K1 * Cin, Nb),
        _pick_chunk(L1, K1 * 32,  Nb),
        _pick_chunk(L1, K2 * 32,  Nb),
        _pick_chunk(L2, K2 * 64,  Nb),
        _pick_chunk(L2, K3 * 64,  Nb),
        _pick_chunk(L3, K3 * 128, Nb),
    )

    operands = [x_col,
                w_cols[0], b_rows[0], w_cols[1], b_rows[1], bn_scale[0], bn_shift[0],
                w_cols[2], b_rows[2], w_cols[3], b_rows[3], bn_scale[1], bn_shift[1],
                w_cols[4], b_rows[4], w_cols[5], b_rows[5], bn_scale[2], bn_shift[2]]

    def act_map(i):
        return (i, 0, 0)

    def const_map(i):
        return (0, 0)

    in_specs = [pl.BlockSpec((Nb, L, x_col.shape[2]), act_map)]
    in_specs += [pl.BlockSpec(op.shape, const_map) for op in operands[1:]]

    def slab_shape(length, K, C):
        left, right, off = _pad_geom(K)
        return (Nb, off + length + right, C)

    slab_shapes = [slab_shape(L,  K1, 32),
                   slab_shape(L1, K2, 32),
                   slab_shape(L1, K2, 64),
                   slab_shape(L2, K3, 64),
                   slab_shape(L2, K3, 128)]
    scratch = [pltpu.VMEM(s, jnp.float32) for s in slab_shapes]

    # Explicit scoped-VMEM limit from block + scratch arithmetic (review #9).
    io_bytes = (_vmem_footprint((Nb, L, x_col.shape[2]), x_col.dtype)
                + _vmem_footprint((Nb, L3, 128), jnp.bfloat16))
    const_bytes = sum(_vmem_footprint(op.shape, op.dtype) for op in operands[1:])
    scratch_bytes = sum(_vmem_footprint(s, jnp.float32) for s in slab_shapes)
    vmem = 2 * io_bytes + 2 * const_bytes + scratch_bytes + (8 << 20)
    vmem = int(min(max(vmem, 32 << 20), 128 << 20))

    kern = functools.partial(_conv_tower_kernel, nb=Nb, L=L,
                             K1=K1, K2=K2, K3=K3, chunks=chunks)
    return pl.pallas_call(
        kern,
        out_shape=jax.ShapeDtypeStruct((N, L3, 128), jnp.bfloat16),
        grid=(N // Nb,),
        in_specs=in_specs,
        out_specs=pl.BlockSpec((Nb, L3, 128), act_map),
        scratch_shapes=scratch,
        compiler_params=pltpu.CompilerParams(
            dimension_semantics=("parallel",),
            vmem_limit_bytes=vmem),
    )(*operands)


# ----------------------------------------------------------------------------
# Fused dense tower: Linear(F,1024)+LReLU -> Linear(1024,128)+LReLU ->
# Linear(128,O).  W1 is streamed over a K-tiled reduction axis into an f32
# accumulator; rows are tiled on a parallel grid axis (review #3).
# ----------------------------------------------------------------------------
def _dense_stack_kernel(x_ref, w1_ref, b1_ref, w2_ref, b2_ref, w3_ref, b3_ref,
                        o_ref, acc_ref):
    k = pl.program_id(1)

    @pl.when(k == 0)
    def _init():
        acc_ref[...] = jnp.zeros_like(acc_ref)

    acc_ref[...] += jnp.dot(x_ref[...], w1_ref[...],
                            preferred_element_type=jnp.float32)

    @pl.when(k == pl.num_programs(1) - 1)
    def _finish():
        h1 = _leaky(acc_ref[...] + b1_ref[...])
        h2 = _leaky(jnp.dot(h1.astype(w2_ref.dtype), w2_ref[...],
                            preferred_element_type=jnp.float32) + b2_ref[...])
        o_ref[...] = jnp.dot(h2, w3_ref[...],
                             preferred_element_type=jnp.float32) + b3_ref[...]


def dense_stack(x, w1, b1, w2, b2, w3, b3):
    N, F = x.shape
    H1, H2, O = w1.shape[1], w2.shape[1], w3.shape[1]
    tk = _pick_k_tile(F)
    tn = _pick_row_tile(N)

    vmem = (2 * (_vmem_footprint((tn, tk), x.dtype)
                 + _vmem_footprint((tk, H1), w1.dtype)
                 + _vmem_footprint((tn, O), jnp.float32))
            + 2 * (_vmem_footprint((1, H1), jnp.float32)
                   + _vmem_footprint((H1, H2), w2.dtype)
                   + _vmem_footprint((1, H2), jnp.float32)
                   + _vmem_footprint((H2, O), jnp.float32)
                   + _vmem_footprint((1, O), jnp.float32))
            + _vmem_footprint((tn, H1), jnp.float32) + (8 << 20))
    vmem = int(min(max(vmem, 32 << 20), 128 << 20))

    return pl.pallas_call(
        _dense_stack_kernel,
        out_shape=jax.ShapeDtypeStruct((N, O), jnp.float32),
        grid=(N // tn, F // tk),
        in_specs=[
            pl.BlockSpec((tn, tk), lambda i, k: (i, k)),
            pl.BlockSpec((tk, H1), lambda i, k: (k, 0)),
            pl.BlockSpec((1, H1), lambda i, k: (0, 0)),
            pl.BlockSpec((H1, H2), lambda i, k: (0, 0)),
            pl.BlockSpec((1, H2), lambda i, k: (0, 0)),
            pl.BlockSpec((H2, O), lambda i, k: (0, 0)),
            pl.BlockSpec((1, O), lambda i, k: (0, 0)),
        ],
        out_specs=pl.BlockSpec((tn, O), lambda i, k: (i, 0)),
        scratch_shapes=[pltpu.VMEM((tn, H1), jnp.float32)],
        compiler_params=pltpu.CompilerParams(
            dimension_semantics=("parallel", "arbitrary"),
            vmem_limit_bytes=vmem),
    )(x, w1, b1, w2, b2, w3, b3)


# ----------------------------------------------------------------------------
# Parameter construction (deterministic, PyTorch-default-style init).
# ----------------------------------------------------------------------------
def init_params(key, input_size, output_size, channels=1, kernel1=16):
    conv_defs = [
        (channels, 32, kernel1),
        (32, 32, kernel1),
        (32, 64, kernel1 // 4),
        (64, 64, kernel1 // 4),
        (64, 128, kernel1 // 16),
        (128, 128, kernel1 // 16),
    ]
    flatten = input_size // 4 // 4 // 4 * 128
    dense_defs = [(flatten, 1024), (1024, 128), (128, output_size)]

    params = {"conv": [], "bn": [], "dense": []}
    keys = jax.random.split(key, 2 * (len(conv_defs) + len(dense_defs)))
    ki = 0
    for cin, cout, k in conv_defs:
        bound = 1.0 / jnp.sqrt(cin * k)
        w = jax.random.uniform(keys[ki], (cout, cin, k), jnp.float32, -bound, bound)
        b = jax.random.uniform(keys[ki + 1], (cout,), jnp.float32, -bound, bound)
        ki += 2
        params["conv"].append((w, b))
    for c in (32, 64, 128):      # BatchNorm1d init: gamma=1, beta=0, mean=0, var=1
        params["bn"].append(
            (jnp.ones((c,), jnp.float32), jnp.zeros((c,), jnp.float32),
             jnp.zeros((c,), jnp.float32), jnp.ones((c,), jnp.float32)))
    for fin, fout in dense_defs:
        bound = 1.0 / jnp.sqrt(fin)
        w = jax.random.uniform(keys[ki], (fout, fin), jnp.float32, -bound, bound)
        b = jax.random.uniform(keys[ki + 1], (fout,), jnp.float32, -bound, bound)
        ki += 2
        params["dense"].append((w, b))
    return params


# ----------------------------------------------------------------------------
# Full forward pass (CNNModel.forward, eval mode).
# ----------------------------------------------------------------------------
def cnn_forward(params, x):
    conv_w = [w for (w, _) in params["conv"]]
    conv_b = [b for (_, b) in params["conv"]]
    K1, K2, K3 = conv_w[0].shape[2], conv_w[2].shape[2], conv_w[4].shape[2]

    if x.ndim == 2:                       # x.unsqueeze(1) in the PyTorch code
        x = x[:, None, :]
    N, Cin, L = x.shape
    assert L % 64 == 0, "input_size must be divisible by 4*4*4 (three pools)"

    # One-time glue: NCL -> NLC, 'same'-pad + im2col of the raw input, bf16
    # (keeps the Cin=1 / lane-width-K case out of the kernel; bf16 halves HBM).
    x_nlc = jnp.transpose(x, (0, 2, 1)).astype(jnp.float32)
    left = (K1 - 1) // 2
    right = (K1 - 1) - left
    x_pad = jnp.pad(x_nlc, ((0, 0), (left, right), (0, 0)))
    x_col = jnp.concatenate([x_pad[:, t:t + L, :] for t in range(K1)],
                            axis=2).astype(jnp.bfloat16)

    # Fold conv weights to im2col layout (bf16 MXU operands), biases f32,
    # BN(eval) folded to per-channel scale/shift (f32 epilogue).
    w_cols = [jnp.transpose(w, (2, 1, 0)).reshape(-1, w.shape[0]).astype(jnp.bfloat16)
              for w in conv_w]
    b_rows = [b.reshape(1, -1).astype(jnp.float32) for b in conv_b]
    bn_scale, bn_shift = [], []
    for gamma, beta, mean, var in params["bn"]:
        sc = gamma / jnp.sqrt(var + BN_EPS)
        bn_scale.append(sc.reshape(1, -1).astype(jnp.float32))
        bn_shift.append((beta - mean * sc).reshape(1, -1).astype(jnp.float32))

    conv_out = conv_tower(x_col, w_cols, b_rows, bn_scale, bn_shift,
                          L=L, Ks=(K1, K2, K3), Cin=Cin)      # (N, L//64, 128)

    # PyTorch flattens in NCL order (feature = c*L3 + l); conv_out is
    # (N, L3, 128) (feature = l*128 + c).  Fold the permutation into W1's rows
    # instead of transposing the activations (no extra HBM round trip).
    L3 = L // 64
    h = conv_out.reshape(N, L3 * 128)

    (w1, d1), (w2, d2), (w3, d3) = params["dense"]
    assert w1.shape[1] == L3 * 128, "flatten_size mismatch"
    w1t = jnp.transpose(w1)                                   # (F, 1024)
    w1t = (w1t.reshape(128, L3, w1.shape[0])
              .transpose(1, 0, 2)
              .reshape(L3 * 128, w1.shape[0])).astype(jnp.bfloat16)
    return dense_stack(h,
                       w1t, d1.reshape(1, -1).astype(jnp.float32),
                       jnp.transpose(w2).astype(jnp.bfloat16),
                       d2.reshape(1, -1).astype(jnp.float32),
                       jnp.transpose(w3).astype(jnp.float32),
                       d3.reshape(1, -1).astype(jnp.float32))


if __name__ == "__main__":
    batch = 2
    input_size = 64          # divisible by 4*4*4 so the flatten is exact
    output_size = 8
    channels = 1
    kernel1 = 16             # constructor arg; kept small for the demo shapes

    key = jax.random.PRNGKey(0)
    pkey, xkey = jax.random.split(key)
    params = init_params(pkey, input_size, output_size, channels, kernel1)
    x = jax.random.normal(xkey, (batch, input_size), jnp.float32)

    fwd = jax.jit(cnn_forward)
    out = fwd(params, x)
    jax.block_until_ready(out)
    assert out.shape == (batch, output_size), out.shape
    assert out.dtype == jnp.float32
    assert bool(jnp.all(jnp.isfinite(out)))
    print("KERNEL_OK")
</pallas_src>

<mosaic_0001>
module attributes {stable_mosaic.version = 11 : i64} {
  func.func @_conv_tower_kernel(%arg0: i32, %arg1: memref<1x64x16xbf16, #tpu.memory_space<vmem>>, %arg2: memref<16x32xbf16, #tpu.memory_space<vmem>>, %arg3: memref<1x32xf32, #tpu.memory_space<vmem>>, %arg4: memref<512x32xbf16, #tpu.memory_space<vmem>>, %arg5: memref<1x32xf32, #tpu.memory_space<vmem>>, %arg6: memref<1x32xf32, #tpu.memory_space<vmem>>, %arg7: memref<1x32xf32, #tpu.memory_space<vmem>>, %arg8: memref<128x64xbf16, #tpu.memory_space<vmem>>, %arg9: memref<1x64xf32, #tpu.memory_space<vmem>>, %arg10: memref<256x64xbf16, #tpu.memory_space<vmem>>, %arg11: memref<1x64xf32, #tpu.memory_space<vmem>>, %arg12: memref<1x64xf32, #tpu.memory_space<vmem>>, %arg13: memref<1x64xf32, #tpu.memory_space<vmem>>, %arg14: memref<64x128xbf16, #tpu.memory_space<vmem>>, %arg15: memref<1x128xf32, #tpu.memory_space<vmem>>, %arg16: memref<128x128xbf16, #tpu.memory_space<vmem>>, %arg17: memref<1x128xf32, #tpu.memory_space<vmem>>, %arg18: memref<1x128xf32, #tpu.memory_space<vmem>>, %arg19: memref<1x128xf32, #tpu.memory_space<vmem>>, %arg20: memref<1x1x128xbf16, #tpu.memory_space<vmem>>, %arg21: memref<1x80x32xf32, #tpu.memory_space<vmem>>, %arg22: memref<1x26x32xf32, #tpu.memory_space<vmem>>, %arg23: memref<1x26x64xf32, #tpu.memory_space<vmem>>, %arg24: memref<1x4x64xf32, #tpu.memory_space<vmem>>, %arg25: memref<1x4x128xf32, #tpu.memory_space<vmem>>) attributes {dimension_semantics = [#tpu.dimension_semantics<parallel>], iteration_bounds = array<i64: 2>, scalar_prefetch = 0 : i64, scratch_operands = 5 : i64, tpu.core_type = #tpu.core_type<tc>, window_params = [{transform_indices = @transform_0, window_bounds = array<i64: 1, 64, 16>}, {pipeline_mode = #tpu.pipeline_mode<synchronous>, transform_indices = @transform_1, window_bounds = array<i64: 16, 32>}, {pipeline_mode = #tpu.pipeline_mode<synchronous>, transform_indices = @transform_2, window_bounds = array<i64: 1, 32>}, {pipeline_mode = #tpu.pipeline_mode<synchronous>, transform_indices = @transform_3, window_bounds = array<i64: 512, 32>}, {pipeline_mode = #tpu.pipeline_mode<synchronous>, transform_indices = @transform_4, window_bounds = array<i64: 1, 32>}, {pipeline_mode = #tpu.pipeline_mode<synchronous>, transform_indices = @transform_5, window_bounds = array<i64: 1, 32>}, {pipeline_mode = #tpu.pipeline_mode<synchronous>, transform_indices = @transform_6, window_bounds = array<i64: 1, 32>}, {pipeline_mode = #tpu.pipeline_mode<synchronous>, transform_indices = @transform_7, window_bounds = array<i64: 128, 64>}, {pipeline_mode = #tpu.pipeline_mode<synchronous>, transform_indices = @transform_8, window_bounds = array<i64: 1, 64>}, {pipeline_mode = #tpu.pipeline_mode<synchronous>, transform_indices = @transform_9, window_bounds = array<i64: 256, 64>}, {pipeline_mode = #tpu.pipeline_mode<synchronous>, transform_indices = @transform_10, window_bounds = array<i64: 1, 64>}, {pipeline_mode = #tpu.pipeline_mode<synchronous>, transform_indices = @transform_11, window_bounds = array<i64: 1, 64>}, {pipeline_mode = #tpu.pipeline_mode<synchronous>, transform_indices = @transform_12, window_bounds = array<i64: 1, 64>}, {pipeline_mode = #tpu.pipeline_mode<synchronous>, transform_indices = @transform_13, window_bounds = array<i64: 64, 128>}, {pipeline_mode = #tpu.pipeline_mode<synchronous>, transform_indices = @transform_14, window_bounds = array<i64: 1, 128>}, {pipeline_mode = #tpu.pipeline_mode<synchronous>, transform_indices = @transform_15, window_bounds = array<i64: 128, 128>}, {pipeline_mode = #tpu.pipeline_mode<synchronous>, transform_indices = @transform_16, window_bounds = array<i64: 1, 128>}, {pipeline_mode = #tpu.pipeline_mode<synchronous>, transform_indices = @transform_17, window_bounds = array<i64: 1, 128>}, {pipeline_mode = #tpu.pipeline_mode<synchronous>, transform_indices = @transform_18, window_bounds = array<i64: 1, 128>}, {transform_indices = @transform_19, window_bounds = array<i64: 1, 1, 128>}]} {
    %cst = arith.constant 0.000000e+00 : f32
    %0 = vector.broadcast %cst : f32 to vector<1x7x32xf32>
    %c0 = arith.constant 0 : index
    %c1 = arith.constant 1 : index
    %c0_0 = arith.constant 0 : index
    %1 = vector.load %arg21[%c0, %c1, %c0_0] : memref<1x80x32xf32, #tpu.memory_space<vmem>>, vector<1x7x32xf32>
    tpu.vector_store %arg21[%c0, %c1, %c0_0], %0 {strides = array<i32>} : memref<1x80x32xf32, #tpu.memory_space<vmem>>, vector<1x7x32xf32>,
    %cst_1 = arith.constant 0.000000e+00 : f32
    %2 = vector.broadcast %cst_1 : f32 to vector<1x8x32xf32>
    %c0_2 = arith.constant 0 : index
    %c72 = arith.constant 72 : index
    %c0_3 = arith.constant 0 : index
    %3 = vector.load %arg21[%c0_2, %c72, %c0_3] : memref<1x80x32xf32, #tpu.memory_space<vmem>>, vector<1x8x32xf32>
    tpu.vector_store %arg21[%c0_2, %c72, %c0_3], %2 {strides = array<i32>} : memref<1x80x32xf32, #tpu.memory_space<vmem>>, vector<1x8x32xf32>,
    %cst_4 = arith.constant 0.000000e+00 : f32
    %4 = vector.broadcast %cst_4 : f32 to vector<1x1x32xf32>
    %c0_5 = arith.constant 0 : index
    %c7 = arith.constant 7 : index
    %c0_6 = arith.constant 0 : index
    %5 = vector.load %arg22[%c0_5, %c7, %c0_6] : memref<1x26x32xf32, #tpu.memory_space<vmem>>, vector<1x1x32xf32>
    tpu.vector_store %arg22[%c0_5, %c7, %c0_6], %4 {strides = array<i32>} : memref<1x26x32xf32, #tpu.memory_space<vmem>>, vector<1x1x32xf32>,
    %cst_7 = arith.constant 0.000000e+00 : f32
    %6 = vector.broadcast %cst_7 : f32 to vector<1x2x32xf32>
    %c0_8 = arith.constant 0 : index
    %c24 = arith.constant 24 : index
    %c0_9 = arith.constant 0 : index
    %7 = vector.load %arg22[%c0_8, %c24, %c0_9] : memref<1x26x32xf32, #tpu.memory_space<vmem>>, vector<1x2x32xf32>
    tpu.vector_store %arg22[%c0_8, %c24, %c0_9], %6 {strides = array<i32>} : memref<1x26x32xf32, #tpu.memory_space<vmem>>, vector<1x2x32xf32>,
    %cst_10 = arith.constant 0.000000e+00 : f32
    %8 = vector.broadcast %cst_10 : f32 to vector<1x1x64xf32>
    %c0_11 = arith.constant 0 : index
    %c7_12 = arith.constant 7 : index
    %c0_13 = arith.constant 0 : index
    %9 = vector.load %arg23[%c0_11, %c7_12, %c0_13] : memref<1x26x64xf32, #tpu.memory_space<vmem>>, vector<1x1x64xf32>
    tpu.vector_store %arg23[%c0_11, %c7_12, %c0_13], %8 {strides = array<i32>} : memref<1x26x64xf32, #tpu.memory_space<vmem>>, vector<1x1x64xf32>,
    %cst_14 = arith.constant 0.000000e+00 : f32
    %10 = vector.broadcast %cst_14 : f32 to vector<1x2x64xf32>
    %c0_15 = arith.constant 0 : index
    %c24_16 = arith.constant 24 : index
    %c0_17 = arith.constant 0 : index
    %11 = vector.load %arg23[%c0_15, %c24_16, %c0_17] : memref<1x26x64xf32, #tpu.memory_space<vmem>>, vector<1x2x64xf32>
    tpu.vector_store %arg23[%c0_15, %c24_16, %c0_17], %10 {strides = array<i32>} : memref<1x26x64xf32, #tpu.memory_space<vmem>>, vector<1x2x64xf32>,
    %c0_18 = arith.constant 0 : index
    %c0_19 = arith.constant 0 : index
    %c0_20 = arith.constant 0 : index
    %12 = vector.load %arg1[%c0_18, %c0_19, %c0_20] : memref<1x64x16xbf16, #tpu.memory_space<vmem>>, vector<1x64x16xbf16>
    %13 = vector.shape_cast %12 : vector<1x64x16xbf16> to vector<64x16xbf16>
    %c0_21 = arith.constant 0 : index
    %c0_22 = arith.constant 0 : index
    %14 = vector.load %arg2[%c0_21, %c0_22] : memref<16x32xbf16, #tpu.memory_space<vmem>>, vector<16x32xbf16>
    %cst_23 = arith.constant dense<0.000000e+00> : vector<64x32xf32>
    %15 = tpu.matmul %13, %14, %cst_23 {dimension_numbers = #tpu.dot_dimension_numbers<[1], [0], [0], [1], [0, 0, 1, 1], [], []>} : vector<64x16xbf16>, vector<16x32xbf16>, vector<64x32xf32> -> vector<64x32xf32>
    %16 = vector.shape_cast %15 : vector<64x32xf32> to vector<1x64x32xf32>
    %c0_24 = arith.constant 0 : index
    %c0_25 = arith.constant 0 : index
    %17 = vector.load %arg3[%c0_24, %c0_25] : memref<1x32xf32, #tpu.memory_space<vmem>>, vector<1x32xf32>
    %18 = vector.shape_cast %17 : vector<1x32xf32> to vector<1x1x32xf32>
    %19 = vector.broadcast %18 : vector<1x1x32xf32> to vector<1x64x32xf32>
    %20 = arith.addf %16, %19 : vector<1x64x32xf32>
    %cst_26 = arith.constant 0.000000e+00 : f32
    %21 = vector.broadcast %cst_26 : f32 to vector<1x64x32xf32>
    %22 = arith.cmpf oge, %20, %21 : vector<1x64x32xf32>
    %cst_27 = arith.constant 0.00999999977 : f32
    %23 = vector.broadcast %cst_27 : f32 to vector<1x64x32xf32>
    %24 = arith.mulf %23, %20 : vector<1x64x32xf32>
    %25 = arith.select %22, %20, %24 : vector<1x64x32xi1>, vector<1x64x32xf32>
    %c0_28 = arith.constant 0 : index
    %c8 = arith.constant 8 : index
    %c0_29 = arith.constant 0 : index
    %26 = vector.load %arg21[%c0_28, %c8, %c0_29] : memref<1x80x32xf32, #tpu.memory_space<vmem>>, vector<1x64x32xf32>
    tpu.vector_store %arg21[%c0_28, %c8, %c0_29], %25 {strides = array<i32>} : memref<1x80x32xf32, #tpu.memory_space<vmem>>, vector<1x64x32xf32>,
    %c0_30 = arith.constant 0 : index
    %c0_31 = arith.constant 0 : index
    %27 = vector.load %arg6[%c0_30, %c0_31] : memref<1x32xf32, #tpu.memory_space<vmem>>, vector<1x32xf32>
    %28 = vector.shape_cast %27 : vector<1x32xf32> to vector<1x1x32xf32>
    %c0_32 = arith.constant 0 : index
    %c0_33 = arith.constant 0 : index
    %29 = vector.load %arg7[%c0_32, %c0_33] : memref<1x32xf32, #tpu.memory_space<vmem>>, vector<1x32xf32>
    %30 = vector.shape_cast %29 : vector<1x32xf32> to vector<1x1x32xf32>
    %c0_34 = arith.constant 0 : index
    %c1_35 = arith.constant 1 : index
    %c0_36 = arith.constant 0 : index
    %31 = tpu.strided_load %arg21[%c0_34, %c1_35, %c0_36] {strides = array<i32: 1, 4, 1>} : memref<1x80x32xf32, #tpu.memory_space<vmem>>, vector<1x16x32xf32>
    %c0_37 = arith.constant 0 : index
    %c2 = arith.constant 2 : index
    %c0_38 = arith.constant 0 : index
    %32 = tpu.strided_load %arg21[%c0_37, %c2, %c0_38] {strides = array<i32: 1, 4, 1>} : memref<1x80x32xf32, #tpu.memory_space<vmem>>, vector<1x16x32xf32>
    %c0_39 = arith.constant 0 : index
    %c3 = arith.constant 3 : index
    %c0_40 = arith.constant 0 : index
    %33 = tpu.strided_load %arg21[%c0_39, %c3, %c0_40] {strides = array<i32: 1, 4, 1>} : memref<1x80x32xf32, #tpu.memory_space<vmem>>, vector<1x16x32xf32>
    %c0_41 = arith.constant 0 : index
    %c4 = arith.constant 4 : index
    %c0_42 = arith.constant 0 : index
    %34 = tpu.strided_load %arg21[%c0_41, %c4, %c0_42] {strides = array<i32: 1, 4, 1>} : memref<1x80x32xf32, #tpu.memory_space<vmem>>, vector<1x16x32xf32>
    %c0_43 = arith.constant 0 : index
    %c5 = arith.constant 5 : index
    %c0_44 = arith.constant 0 : index
    %35 = tpu.strided_load %arg21[%c0_43, %c5, %c0_44] {strides = array<i32: 1, 4, 1>} : memref<1x80x32xf32, #tpu.memory_space<vmem>>, vector<1x16x32xf32>
    %c0_45 = arith.constant 0 : index
    %c6 = arith.constant 6 : index
    %c0_46 = arith.constant 0 : index
    %36 = tpu.strided_load %arg21[%c0_45, %c6, %c0_46] {strides = array<i32: 1, 4, 1>} : memref<1x80x32xf32, #tpu.memory_space<vmem>>, vector<1x16x32xf32>
    %c0_47 = arith.constant 0 : index
    %c7_48 = arith.constant 7 : index
    %c0_49 = arith.constant 0 : index
    %37 = tpu.strided_load %arg21[%c0_47, %c7_48, %c0_49] {strides = array<i32: 1, 4, 1>} : memref<1x80x32xf32, #tpu.memory_space<vmem>>, vector<1x16x32xf32>
    %c0_50 = arith.constant 0 : index
    %c8_51 = arith.constant 8 : index
    %c0_52 = arith.constant 0 : index
    %38 = tpu.strided_load %arg21[%c0_50, %c8_51, %c0_52] {strides = array<i32: 1, 4, 1>} : memref<1x80x32xf32, #tpu.memory_space<vmem>>, vector<1x16x32xf32>
    %c0_53 = arith.constant 0 : index
    %c9 = arith.constant 9 : index
    %c0_54 = arith.constant 0 : index
    %39 = tpu.strided_load %arg21[%c0_53, %c9, %c0_54] {strides = array<i32: 1, 4, 1>} : memref<1x80x32xf32, #tpu.memory_space<vmem>>, vector<1x16x32xf32>
    %c0_55 = arith.constant 0 : index
    %c10 = arith.constant 10 : index
    %c0_56 = arith.constant 0 : index
    %40 = tpu.strided_load %arg21[%c0_55, %c10, %c0_56] {strides = array<i32: 1, 4, 1>} : memref<1x80x32xf32, #tpu.memory_space<vmem>>, vector<1x16x32xf32>
    %c0_57 = arith.constant 0 : index
    %c11 = arith.constant 11 : index
    %c0_58 = arith.constant 0 : index
    %41 = tpu.strided_load %arg21[%c0_57, %c11, %c0_58] {strides = array<i32: 1, 4, 1>} : memref<1x80x32xf32, #tpu.memory_space<vmem>>, vector<1x16x32xf32>
    %c0_59 = arith.constant 0 : index
    %c12 = arith.constant 12 : index
    %c0_60 = arith.constant 0 : index
    %42 = tpu.strided_load %arg21[%c0_59, %c12, %c0_60] {strides = array<i32: 1, 4, 1>} : memref<1x80x32xf32, #tpu.memory_space<vmem>>, vector<1x16x32xf32>
    %c0_61 = arith.constant 0 : index
    %c13 = arith.constant 13 : index
    %c0_62 = arith.constant 0 : index
    %43 = tpu.strided_load %arg21[%c0_61, %c13, %c0_62] {strides = array<i32: 1, 4, 1>} : memref<1x80x32xf32, #tpu.memory_space<vmem>>, vector<1x16x32xf32>
    %c0_63 = arith.constant 0 : index
    %c14 = arith.constant 14 : index
    %c0_64 = arith.constant 0 : index
    %44 = tpu.strided_load %arg21[%c0_63, %c14, %c0_64] {strides = array<i32: 1, 4, 1>} : memref<1x80x32xf32, #tpu.memory_space<vmem>>, vector<1x16x32xf32>
    %c0_65 = arith.constant 0 : index
    %c15 = arith.constant 15 : index
    %c0_66 = arith.constant 0 : index
    %45 = tpu.strided_load %arg21[%c0_65, %c15, %c0_66] {strides = array<i32: 1, 4, 1>} : memref<1x80x32xf32, #tpu.memory_space<vmem>>, vector<1x16x32xf32>
    %c0_67 = arith.constant 0 : index
    %c16 = arith.constant 16 : index
    %c0_68 = arith.constant 0 : index
    %46 = tpu.strided_load %arg21[%c0_67, %c16, %c0_68] {strides = array<i32: 1, 4, 1>} : memref<1x80x32xf32, #tpu.memory_space<vmem>>, vector<1x16x32xf32>
    %47 = tpu.concatenate %31, %32, %33, %34, %35, %36, %37, %38, %39, %40, %41, %42, %43, %44, %45, %46 in 2 : vector<1x16x32xf32>, vector<1x16x32xf32>, vector<1x16x32xf32>, vector<1x16x32xf32>, vector<1x16x32xf32>, vector<1x16x32xf32>, vector<1x16x32xf32>, vector<1x16x32xf32>, vector<1x16x32xf32>, vector<1x16x32xf32>, vector<1x16x32xf32>, vector<1x16x32xf32>, vector<1x16x32xf32>, vector<1x16x32xf32>, vector<1x16x32xf32>, vector<1x16x32xf32> -> vector<1x16x512xf32>
    %48 = arith.truncf %47 : vector<1x16x512xf32> to vector<1x16x512xbf16>
    %49 = vector.shape_cast %48 : vector<1x16x512xbf16> to vector<16x512xbf16>
    %c0_69 = arith.constant 0 : index
    %c0_70 = arith.constant 0 : index
    %50 = vector.load %arg4[%c0_69, %c0_70] : memref<512x32xbf16, #tpu.memory_space<vmem>>, vector<512x32xbf16>
    %cst_71 = arith.constant dense<0.000000e+00> : vector<16x32xf32>
    %51 = tpu.matmul %49, %50, %cst_71 {dimension_numbers = #tpu.dot_dimension_numbers<[1], [0], [0], [1], [0, 0, 1, 1], [], []>} : vector<16x512xbf16>, vector<512x32xbf16>, vector<16x32xf32> -> vector<16x32xf32>
    %52 = vector.shape_cast %51 : vector<16x32xf32> to vector<1x16x32xf32>
    %c0_72 = arith.constant 0 : index
    %c0_73 = arith.constant 0 : index
    %53 = vector.load %arg5[%c0_72, %c0_73] : memref<1x32xf32, #tpu.memory_space<vmem>>, vector<1x32xf32>
    %54 = vector.shape_cast %53 : vector<1x32xf32> to vector<1x1x32xf32>
    %55 = vector.broadcast %54 : vector<1x1x32xf32> to vector<1x16x32xf32>
    %56 = arith.addf %52, %55 : vector<1x16x32xf32>
    %cst_74 = arith.constant 0.000000e+00 : f32
    %57 = vector.broadcast %cst_74 : f32 to vector<1x16x32xf32>
    %58 = arith.cmpf oge, %56, %57 : vector<1x16x32xf32>
    %cst_75 = arith.constant 0.00999999977 : f32
    %59 = vector.broadcast %cst_75 : f32 to vector<1x16x32xf32>
    %60 = arith.mulf %59, %56 : vector<1x16x32xf32>
    %61 = arith.select %58, %56, %60 : vector<1x16x32xi1>, vector<1x16x32xf32>
    %62 = vector.broadcast %28 : vector<1x1x32xf32> to vector<1x16x32xf32>
    %63 = arith.mulf %61, %62 : vector<1x16x32xf32>
    %64 = vector.broadcast %30 : vector<1x1x32xf32> to vector<1x16x32xf32>
    %65 = arith.addf %63, %64 : vector<1x16x32xf32>
    %c0_76 = arith.constant 0 : index
    %c2_77 = arith.constant 2 : index
    %c0_78 = arith.constant 0 : index
    %66 = tpu.strided_load %arg21[%c0_76, %c2_77, %c0_78] {strides = array<i32: 1, 4, 1>} : memref<1x80x32xf32, #tpu.memory_space<vmem>>, vector<1x16x32xf32>
    %c0_79 = arith.constant 0 : index
    %c3_80 = arith.constant 3 : index
    %c0_81 = arith.constant 0 : index
    %67 = tpu.strided_load %arg21[%c0_79, %c3_80, %c0_81] {strides = array<i32: 1, 4, 1>} : memref<1x80x32xf32, #tpu.memory_space<vmem>>, vector<1x16x32xf32>
    %c0_82 = arith.constant 0 : index
    %c4_83 = arith.constant 4 : index
    %c0_84 = arith.constant 0 : index
    %68 = tpu.strided_load %arg21[%c0_82, %c4_83, %c0_84] {strides = array<i32: 1, 4, 1>} : memref<1x80x32xf32, #tpu.memory_space<vmem>>, vector<1x16x32xf32>
    %c0_85 = arith.constant 0 : index
    %c5_86 = arith.constant 5 : index
    %c0_87 = arith.constant 0 : index
    %69 = tpu.strided_load %arg21[%c0_85, %c5_86, %c0_87] {strides = array<i32: 1, 4, 1>} : memref<1x80x32xf32, #tpu.memory_space<vmem>>, vector<1x16x32xf32>
    %c0_88 = arith.constant 0 : index
    %c6_89 = arith.constant 6 : index
    %c0_90 = arith.constant 0 : index
    %70 = tpu.strided_load %arg21[%c0_88, %c6_89, %c0_90] {strides = array<i32: 1, 4, 1>} : memref<1x80x32xf32, #tpu.memory_space<vmem>>, vector<1x16x32xf32>
    %c0_91 = arith.constant 0 : index
    %c7_92 = arith.constant 7 : index
    %c0_93 = arith.constant 0 : index
    %71 = tpu.strided_load %arg21[%c0_91, %c7_92, %c0_93] {strides = array<i32: 1, 4, 1>} : memref<1x80x32xf32, #tpu.memory_space<vmem>>, vector<1x16x32xf32>
    %c0_94 = arith.constant 0 : index
    %c8_95 = arith.constant 8 : index
    %c0_96 = arith.constant 0 : index
    %72 = tpu.strided_load %arg21[%c0_94, %c8_95, %c0_96] {strides = array<i32: 1, 4, 1>} : memref<1x80x32xf32, #tpu.memory_space<vmem>>, vector<1x16x32xf32>
    %c0_97 = arith.constant 0 : index
    %c9_98 = arith.constant 9 : index
    %c0_99 = arith.constant 0 : index
    %73 = tpu.strided_load %arg21[%c0_97, %c9_98, %c0_99] {strides = array<i32: 1, 4, 1>} : memref<1x80x32xf32, #tpu.memory_space<vmem>>, vector<1x16x32xf32>
    %c0_100 = arith.constant 0 : index
    %c10_101 = arith.constant 10 : index
    %c0_102 = arith.constant 0 : index
    %74 = tpu.strided_load %arg21[%c0_100, %c10_101, %c0_102] {strides = array<i32: 1, 4, 1>} : memref<1x80x32xf32, #tpu.memory_space<vmem>>, vector<1x16x32xf32>
    %c0_103 = arith.constant 0 : index
    %c11_104 = arith.constant 11 : index
    %c0_105 = arith.constant 0 : index
    %75 = tpu.strided_load %arg21[%c0_103, %c11_104, %c0_105] {strides = array<i32: 1, 4, 1>} : memref<1x80x32xf32, #tpu.memory_space<vmem>>, vector<1x16x32xf32>
    %c0_106 = arith.constant 0 : index
    %c12_107 = arith.constant 12 : index
    %c0_108 = arith.constant 0 : index
    %76 = tpu.strided_load %arg21[%c0_106, %c12_107, %c0_108] {strides = array<i32: 1, 4, 1>} : memref<1x80x32xf32, #tpu.memory_space<vmem>>, vector<1x16x32xf32>
    %c0_109 = arith.constant 0 : index
    %c13_110 = arith.constant 13 : index
    %c0_111 = arith.constant 0 : index
    %77 = tpu.strided_load %arg21[%c0_109, %c13_110, %c0_111] {strides = array<i32: 1, 4, 1>} : memref<1x80x32xf32, #tpu.memory_space<vmem>>, vector<1x16x32xf32>
    %c0_112 = arith.constant 0 : index
    %c14_113 = arith.constant 14 : index
    %c0_114 = arith.constant 0 : index
    %78 = tpu.strided_load %arg21[%c0_112, %c14_113, %c0_114] {strides = array<i32: 1, 4, 1>} : memref<1x80x32xf32, #tpu.memory_space<vmem>>, vector<1x16x32xf32>
    %c0_115 = arith.constant 0 : index
    %c15_116 = arith.constant 15 : index
    %c0_117 = arith.constant 0 : index
    %79 = tpu.strided_load %arg21[%c0_115, %c15_116, %c0_117] {strides = array<i32: 1, 4, 1>} : memref<1x80x32xf32, #tpu.memory_space<vmem>>, vector<1x16x32xf32>
    %c0_118 = arith.constant 0 : index
    %c16_119 = arith.constant 16 : index
    %c0_120 = arith.constant 0 : index
    %80 = tpu.strided_load %arg21[%c0_118, %c16_119, %c0_120] {strides = array<i32: 1, 4, 1>} : memref<1x80x32xf32, #tpu.memory_space<vmem>>, vector<1x16x32xf32>
    %c0_121 = arith.constant 0 : index
    %c17 = arith.constant 17 : index
    %c0_122 = arith.constant 0 : index
    %81 = tpu.strided_load %arg21[%c0_121, %c17, %c0_122] {strides = array<i32: 1, 4, 1>} : memref<1x80x32xf32, #tpu.memory_space<vmem>>, vector<1x16x32xf32>
    %82 = tpu.concatenate %66, %67, %68, %69, %70, %71, %72, %73, %74, %75, %76, %77, %78, %79, %80, %81 in 2 : vector<1x16x32xf32>, vector<1x16x32xf32>, vector<1x16x32xf32>, vector<1x16x32xf32>, vector<1x16x32xf32>, vector<1x16x32xf32>, vector<1x16x32xf32>, vector<1x16x32xf32>, vector<1x16x32xf32>, vector<1x16x32xf32>, vector<1x16x32xf32>, vector<1x16x32xf32>, vector<1x16x32xf32>, vector<1x16x32xf32>, vector<1x16x32xf32>, vector<1x16x32xf32> -> vector<1x16x512xf32>
    %83 = arith.truncf %82 : vector<1x16x512xf32> to vector<1x16x512xbf16>
    %84 = vector.shape_cast %83 : vector<1x16x512xbf16> to vector<16x512xbf16>
    %c0_123 = arith.constant 0 : index
    %c0_124 = arith.constant 0 : index
    %85 = vector.load %arg4[%c0_123, %c0_124] : memref<512x32xbf16, #tpu.memory_space<vmem>>, vector<512x32xbf16>
    %cst_125 = arith.constant dense<0.000000e+00> : vector<16x32xf32>
    %86 = tpu.matmul %84, %85, %cst_125 {dimension_numbers = #tpu.dot_dimension_numbers<[1], [0], [0], [1], [0, 0, 1, 1], [], []>} : vector<16x512xbf16>, vector<512x32xbf16>, vector<16x32xf32> -> vector<16x32xf32>
    %87 = vector.shape_cast %86 : vector<16x32xf32> to vector<1x16x32xf32>
    %c0_126 = arith.constant 0 : index
    %c0_127 = arith.constant 0 : index
    %88 = vector.load %arg5[%c0_126, %c0_127] : memref<1x32xf32, #tpu.memory_space<vmem>>, vector<1x32xf32>
    %89 = vector.shape_cast %88 : vector<1x32xf32> to vector<1x1x32xf32>
    %90 = vector.broadcast %89 : vector<1x1x32xf32> to vector<1x16x32xf32>
    %91 = arith.addf %87, %90 : vector<1x16x32xf32>
    %cst_128 = arith.constant 0.000000e+00 : f32
    %92 = vector.broadcast %cst_128 : f32 to vector<1x16x32xf32>
    %93 = arith.cmpf oge, %91, %92 : vector<1x16x32xf32>
    %cst_129 = arith.constant 0.00999999977 : f32
    %94 = vector.broadcast %cst_129 : f32 to vector<1x16x32xf32>
    %95 = arith.mulf %94, %91 : vector<1x16x32xf32>
    %96 = arith.select %93, %91, %95 : vector<1x16x32xi1>, vector<1x16x32xf32>
    %97 = vector.broadcast %28 : vector<1x1x32xf32> to vector<1x16x32xf32>
    %98 = arith.mulf %96, %97 : vector<1x16x32xf32>
    %99 = vector.broadcast %30 : vector<1x1x32xf32> to vector<1x16x32xf32>
    %100 = arith.addf %98, %99 : vector<1x16x32xf32>
    %101 = arith.maximumf %65, %100 : vector<1x16x32xf32>
    %c0_130 = arith.constant 0 : index
    %c3_131 = arith.constant 3 : index
    %c0_132 = arith.constant 0 : index
    %102 = tpu.strided_load %arg21[%c0_130, %c3_131, %c0_132] {strides = array<i32: 1, 4, 1>} : memref<1x80x32xf32, #tpu.memory_space<vmem>>, vector<1x16x32xf32>
    %c0_133 = arith.constant 0 : index
    %c4_134 = arith.constant 4 : index
    %c0_135 = arith.constant 0 : index
    %103 = tpu.strided_load %arg21[%c0_133, %c4_134, %c0_135] {strides = array<i32: 1, 4, 1>} : memref<1x80x32xf32, #tpu.memory_space<vmem>>, vector<1x16x32xf32>
    %c0_136 = arith.constant 0 : index
    %c5_137 = arith.constant 5 : index
    %c0_138 = arith.constant 0 : index
    %104 = tpu.strided_load %arg21[%c0_136, %c5_137, %c0_138] {strides = array<i32: 1, 4, 1>} : memref<1x80x32xf32, #tpu.memory_space<vmem>>, vector<1x16x32xf32>
    %c0_139 = arith.constant 0 : index
    %c6_140 = arith.constant 6 : index
    %c0_141 = arith.constant 0 : index
    %105 = tpu.strided_load %arg21[%c0_139, %c6_140, %c0_141] {strides = array<i32: 1, 4, 1>} : memref<1x80x32xf32, #tpu.memory_space<vmem>>, vector<1x16x32xf32>
    %c0_142 = arith.constant 0 : index
    %c7_143 = arith.constant 7 : index
    %c0_144 = arith.constant 0 : index
    %106 = tpu.strided_load %arg21[%c0_142, %c7_143, %c0_144] {strides = array<i32: 1, 4, 1>} : memref<1x80x32xf32, #tpu.memory_space<vmem>>, vector<1x16x32xf32>
    %c0_145 = arith.constant 0 : index
    %c8_146 = arith.constant 8 : index
    %c0_147 = arith.constant 0 : index
    %107 = tpu.strided_load %arg21[%c0_145, %c8_146, %c0_147] {strides = array<i32: 1, 4, 1>} : memref<1x80x32xf32, #tpu.memory_space<vmem>>, vector<1x16x32xf32>
    %c0_148 = arith.constant 0 : index
    %c9_149 = arith.constant 9 : index
    %c0_150 = arith.constant 0 : index
    %108 = tpu.strided_load %arg21[%c0_148, %c9_149, %c0_150] {strides = array<i32: 1, 4, 1>} : memref<1x80x32xf32, #tpu.memory_space<vmem>>, vector<1x16x32xf32>
    %c0_151 = arith.constant 0 : index
    %c10_152 = arith.constant 10 : index
    %c0_153 = arith.constant 0 : index
    %109 = tpu.strided_load %arg21[%c0_151, %c10_152, %c0_153] {strides = array<i32: 1, 4, 1>} : memref<1x80x32xf32, #tpu.memory_space<vmem>>, vector<1x16x32xf32>
    %c0_154 = arith.constant 0 : index
    %c11_155 = arith.constant 11 : index
    %c0_156 = arith.constant 0 : index
    %110 = tpu.strided_load %arg21[%c0_154, %c11_155, %c0_156] {strides = array<i32: 1, 4, 1>} : memref<1x80x32xf32, #tpu.memory_space<vmem>>, vector<1x16x32xf32>
    %c0_157 = arith.constant 0 : index
    %c12_158 = arith.constant 12 : index
    %c0_159 = arith.constant 0 : index
    %111 = tpu.strided_load %arg21[%c0_157, %c12_158, %c0_159] {strides = array<i32: 1, 4, 1>} : memref<1x80x32xf32, #tpu.memory_space<vmem>>, vector<1x16x32xf32>
    %c0_160 = arith.constant 0 : index
    %c13_161 = arith.constant 13 : index
    %c0_162 = arith.constant 0 : index
    %112 = tpu.strided_load %arg21[%c0_160, %c13_161, %c0_162] {strides = array<i32: 1, 4, 1>} : memref<1x80x32xf32, #tpu.memory_space<vmem>>, vector<1x16x32xf32>
    %c0_163 = arith.constant 0 : index
    %c14_164 = arith.constant 14 : index
    %c0_165 = arith.constant 0 : index
    %113 = tpu.strided_load %arg21[%c0_163, %c14_164, %c0_165] {strides = array<i32: 1, 4, 1>} : memref<1x80x32xf32, #tpu.memory_space<vmem>>, vector<1x16x32xf32>
    %c0_166 = arith.constant 0 : index
    %c15_167 = arith.constant 15 : index
    %c0_168 = arith.constant 0 : index
    %114 = tpu.strided_load %arg21[%c0_166, %c15_167, %c0_168] {strides = array<i32: 1, 4, 1>} : memref<1x80x32xf32, #tpu.memory_space<vmem>>, vector<1x16x32xf32>
    %c0_169 = arith.constant 0 : index
    %c16_170 = arith.constant 16 : index
    %c0_171 = arith.constant 0 : index
    %115 = tpu.strided_load %arg21[%c0_169, %c16_170, %c0_171] {strides = array<i32: 1, 4, 1>} : memref<1x80x32xf32, #tpu.memory_space<vmem>>, vector<1x16x32xf32>
    %c0_172 = arith.constant 0 : index
    %c17_173 = arith.constant 17 : index
    %c0_174 = arith.constant 0 : index
    %116 = tpu.strided_load %arg21[%c0_172, %c17_173, %c0_174] {strides = array<i32: 1, 4, 1>} : memref<1x80x32xf32, #tpu.memory_space<vmem>>, vector<1x16x32xf32>
    %c0_175 = arith.constant 0 : index
    %c18 = arith.constant 18 : index
    %c0_176 = arith.constant 0 : index
    %117 = tpu.strided_load %arg21[%c0_175, %c18, %c0_176] {strides = array<i32: 1, 4, 1>} : memref<1x80x32xf32, #tpu.memory_space<vmem>>, vector<1x16x32xf32>
    %118 = tpu.concatenate %102, %103, %104, %105, %106, %107, %108, %109, %110, %111, %112, %113, %114, %115, %116, %117 in 2 : vector<1x16x32xf32>, vector<1x16x32xf32>, vector<1x16x32xf32>, vector<1x16x32xf32>, vector<1x16x32xf32>, vector<1x16x32xf32>, vector<1x16x32xf32>, vector<1x16x32xf32>, vector<1x16x32xf32>, vector<1x16x32xf32>, vector<1x16x32xf32>, vector<1x16x32xf32>, vector<1x16x32xf32>, vector<1x16x32xf32>, vector<1x16x32xf32>, vector<1x16x32xf32> -> vector<1x16x512xf32>
    %119 = arith.truncf %118 : vector<1x16x512xf32> to vector<1x16x512xbf16>
    %120 = vector.shape_cast %119 : vector<1x16x512xbf16> to vector<16x512xbf16>
    %c0_177 = arith.constant 0 : index
    %c0_178 = arith.constant 0 : index
    %121 = vector.load %arg4[%c0_177, %c0_178] : memref<512x32xbf16, #tpu.memory_space<vmem>>, vector<512x32xbf16>
    %cst_179 = arith.constant dense<0.000000e+00> : vector<16x32xf32>
    %122 = tpu.matmul %120, %121, %cst_179 {dimension_numbers = #tpu.dot_dimension_numbers<[1], [0], [0], [1], [0, 0, 1, 1], [], []>} : vector<16x512xbf16>, vector<512x32xbf16>, vector<16x32xf32> -> vector<16x32xf32>
    %123 = vector.shape_cast %122 : vector<16x32xf32> to vector<1x16x32xf32>
    %c0_180 = arith.constant 0 : index
    %c0_181 = arith.constant 0 : index
    %124 = vector.load %arg5[%c0_180, %c0_181] : memref<1x32xf32, #tpu.memory_space<vmem>>, vector<1x32xf32>
    %125 = vector.shape_cast %124 : vector<1x32xf32> to vector<1x1x32xf32>
    %126 = vector.broadcast %125 : vector<1x1x32xf32> to vector<1x16x32xf32>
    %127 = arith.addf %123, %126 : vector<1x16x32xf32>
    %cst_182 = arith.constant 0.000000e+00 : f32
    %128 = vector.broadcast %cst_182 : f32 to vector<1x16x32xf32>
    %129 = arith.cmpf oge, %127, %128 : vector<1x16x32xf32>
    %cst_183 = arith.constant 0.00999999977 : f32
    %130 = vector.broadcast %cst_183 : f32 to vector<1x16x32xf32>
    %131 = arith.mulf %130, %127 : vector<1x16x32xf32>
    %132 = arith.select %129, %127, %131 : vector<1x16x32xi1>, vector<1x16x32xf32>
    %133 = vector.broadcast %28 : vector<1x1x32xf32> to vector<1x16x32xf32>
    %134 = arith.mulf %132, %133 : vector<1x16x32xf32>
    %135 = vector.broadcast %30 : vector<1x1x32xf32> to vector<1x16x32xf32>
    %136 = arith.addf %134, %135 : vector<1x16x32xf32>
    %137 = arith.maximumf %101, %136 : vector<1x16x32xf32>
    %c0_184 = arith.constant 0 : index
    %c4_185 = arith.constant 4 : index
    %c0_186 = arith.constant 0 : index
    %138 = tpu.strided_load %arg21[%c0_184, %c4_185, %c0_186] {strides = array<i32: 1, 4, 1>} : memref<1x80x32xf32, #tpu.memory_space<vmem>>, vector<1x16x32xf32>
    %c0_187 = arith.constant 0 : index
    %c5_188 = arith.constant 5 : index
    %c0_189 = arith.constant 0 : index
    %139 = tpu.strided_load %arg21[%c0_187, %c5_188, %c0_189] {strides = array<i32: 1, 4, 1>} : memref<1x80x32xf32, #tpu.memory_space<vmem>>, vector<1x16x32xf32>
    %c0_190 = arith.constant 0 : index
    %c6_191 = arith.constant 6 : index
    %c0_192 = arith.constant 0 : index
    %140 = tpu.strided_load %arg21[%c0_190, %c6_191, %c0_192] {strides = array<i32: 1, 4, 1>} : memref<1x80x32xf32, #tpu.memory_space<vmem>>, vector<1x16x32xf32>
    %c0_193 = arith.constant 0 : index
    %c7_194 = arith.constant 7 : index
    %c0_195 = arith.constant 0 : index
    %141 = tpu.strided_load %arg21[%c0_193, %c7_194, %c0_195] {strides = array<i32: 1, 4, 1>} : memref<1x80x32xf32, #tpu.memory_space<vmem>>, vector<1x16x32xf32>
    %c0_196 = arith.constant 0 : index
    %c8_197 = arith.constant 8 : index
    %c0_198 = arith.constant 0 : index
    %142 = tpu.strided_load %arg21[%c0_196, %c8_197, %c0_198] {strides = array<i32: 1, 4, 1>} : memref<1x80x32xf32, #tpu.memory_space<vmem>>, vector<1x16x32xf32>
    %c0_199 = arith.constant 0 : index
    %c9_200 = arith.constant 9 : index
    %c0_201 = arith.constant 0 : index
    %143 = tpu.strided_load %arg21[%c0_199, %c9_200, %c0_201] {strides = array<i32: 1, 4, 1>} : memref<1x80x32xf32, #tpu.memory_space<vmem>>, vector<1x16x32xf32>
    %c0_202 = arith.constant 0 : index
    %c10_203 = arith.constant 10 : index
    %c0_204 = arith.constant 0 : index
    %144 = tpu.strided_load %arg21[%c0_202, %c10_203, %c0_204] {strides = array<i32: 1, 4, 1>} : memref<1x80x32xf32, #tpu.memory_space<vmem>>, vector<1x16x32xf32>
    %c0_205 = arith.constant 0 : index
    %c11_206 = arith.constant 11 : index
    %c0_207 = arith.constant 0 : index
    %145 = tpu.strided_load %arg21[%c0_205, %c11_206, %c0_207] {strides = array<i32: 1, 4, 1>} : memref<1x80x32xf32, #tpu.memory_space<vmem>>, vector<1x16x32xf32>
    %c0_208 = arith.constant 0 : index
    %c12_209 = arith.constant 12 : index
    %c0_210 = arith.constant 0 : index
    %146 = tpu.strided_load %arg21[%c0_208, %c12_209, %c0_210] {strides = array<i32: 1, 4, 1>} : memref<1x80x32xf32, #tpu.memory_space<vmem>>, vector<1x16x32xf32>
    %c0_211 = arith.constant 0 : index
    %c13_212 = arith.constant 13 : index
    %c0_213 = arith.constant 0 : index
    %147 = tpu.strided_load %arg21[%c0_211, %c13_212, %c0_213] {strides = array<i32: 1, 4, 1>} : memref<1x80x32xf32, #tpu.memory_space<vmem>>, vector<1x16x32xf32>
    %c0_214 = arith.constant 0 : index
    %c14_215 = arith.constant 14 : index
    %c0_216 = arith.constant 0 : index
    %148 = tpu.strided_load %arg21[%c0_214, %c14_215, %c0_216] {strides = array<i32: 1, 4, 1>} : memref<1x80x32xf32, #tpu.memory_space<vmem>>, vector<1x16x32xf32>
    %c0_217 = arith.constant 0 : index
    %c15_218 = arith.constant 15 : index
    %c0_219 = arith.constant 0 : index
    %149 = tpu.strided_load %arg21[%c0_217, %c15_218, %c0_219] {strides = array<i32: 1, 4, 1>} : memref<1x80x32xf32, #tpu.memory_space<vmem>>, vector<1x16x32xf32>
    %c0_220 = arith.constant 0 : index
    %c16_221 = arith.constant 16 : index
    %c0_222 = arith.constant 0 : index
    %150 = tpu.strided_load %arg21[%c0_220, %c16_221, %c0_222] {strides = array<i32: 1, 4, 1>} : memref<1x80x32xf32, #tpu.memory_space<vmem>>, vector<1x16x32xf32>
    %c0_223 = arith.constant 0 : index
    %c17_224 = arith.constant 17 : index
    %c0_225 = arith.constant 0 : index
    %151 = tpu.strided_load %arg21[%c0_223, %c17_224, %c0_225] {strides = array<i32: 1, 4, 1>} : memref<1x80x32xf32, #tpu.memory_space<vmem>>, vector<1x16x32xf32>
    %c0_226 = arith.constant 0 : index
    %c18_227 = arith.constant 18 : index
    %c0_228 = arith.constant 0 : index
    %152 = tpu.strided_load %arg21[%c0_226, %c18_227, %c0_228] {strides = array<i32: 1, 4, 1>} : memref<1x80x32xf32, #tpu.memory_space<vmem>>, vector<1x16x32xf32>
    %c0_229 = arith.constant 0 : index
    %c19 = arith.constant 19 : index
    %c0_230 = arith.constant 0 : index
    %153 = tpu.strided_load %arg21[%c0_229, %c19, %c0_230] {strides = array<i32: 1, 4, 1>} : memref<1x80x32xf32, #tpu.memory_space<vmem>>, vector<1x16x32xf32>
    %154 = tpu.concatenate %138, %139, %140, %141, %142, %143, %144, %145, %146, %147, %148, %149, %150, %151, %152, %153 in 2 : vector<1x16x32xf32>, vector<1x16x32xf32>, vector<1x16x32xf32>, vector<1x16x32xf32>, vector<1x16x32xf32>, vector<1x16x32xf32>, vector<1x16x32xf32>, vector<1x16x32xf32>, vector<1x16x32xf32>, vector<1x16x32xf32>, vector<1x16x32xf32>, vector<1x16x32xf32>, vector<1x16x32xf32>, vector<1x16x32xf32>, vector<1x16x32xf32>, vector<1x16x32xf32> -> vector<1x16x512xf32>
    %155 = arith.truncf %154 : vector<1x16x512xf32> to vector<1x16x512xbf16>
    %156 = vector.shape_cast %155 : vector<1x16x512xbf16> to vector<16x512xbf16>
    %c0_231 = arith.constant 0 : index
    %c0_232 = arith.constant 0 : index
    %157 = vector.load %arg4[%c0_231, %c0_232] : memref<512x32xbf16, #tpu.memory_space<vmem>>, vector<512x32xbf16>
    %cst_233 = arith.constant dense<0.000000e+00> : vector<16x32xf32>
    %158 = tpu.matmul %156, %157, %cst_233 {dimension_numbers = #tpu.dot_dimension_numbers<[1], [0], [0], [1], [0, 0, 1, 1], [], []>} : vector<16x512xbf16>, vector<512x32xbf16>, vector<16x32xf32> -> vector<16x32xf32>
    %159 = vector.shape_cast %158 : vector<16x32xf32> to vector<1x16x32xf32>
    %c0_234 = arith.constant 0 : index
    %c0_235 = arith.constant 0 : index
    %160 = vector.load %arg5[%c0_234, %c0_235] : memref<1x32xf32, #tpu.memory_space<vmem>>, vector<1x32xf32>
    %161 = vector.shape_cast %160 : vector<1x32xf32> to vector<1x1x32xf32>
    %162 = vector.broadcast %161 : vector<1x1x32xf32> to vector<1x16x32xf32>
    %163 = arith.addf %159, %162 : vector<1x16x32xf32>
    %cst_236 = arith.constant 0.000000e+00 : f32
    %164 = vector.broadcast %cst_236 : f32 to vector<1x16x32xf32>
    %165 = arith.cmpf oge, %163, %164 : vector<1x16x32xf32>
    %cst_237 = arith.constant 0.00999999977 : f32
    %166 = vector.broadcast %cst_237 : f32 to vector<1x16x32xf32>
    %167 = arith.mulf %166, %163 : vector<1x16x32xf32>
    %168 = arith.select %165, %163, %167 : vector<1x16x32xi1>, vector<1x16x32xf32>
    %169 = vector.broadcast %28 : vector<1x1x32xf32> to vector<1x16x32xf32>
    %170 = arith.mulf %168, %169 : vector<1x16x32xf32>
    %171 = vector.broadcast %30 : vector<1x1x32xf32> to vector<1x16x32xf32>
    %172 = arith.addf %170, %171 : vector<1x16x32xf32>
    %173 = arith.maximumf %137, %172 : vector<1x16x32xf32>
    %c0_238 = arith.constant 0 : index
    %c8_239 = arith.constant 8 : index
    %c0_240 = arith.constant 0 : index
    %174 = vector.load %arg22[%c0_238, %c8_239, %c0_240] : memref<1x26x32xf32, #tpu.memory_space<vmem>>, vector<1x16x32xf32>
    tpu.vector_store %arg22[%c0_238, %c8_239, %c0_240], %173 {strides = array<i32>} : memref<1x26x32xf32, #tpu.memory_space<vmem>>, vector<1x16x32xf32>,
    %c0_241 = arith.constant 0 : index
    %c7_242 = arith.constant 7 : index
    %c0_243 = arith.constant 0 : index
    %175 = vector.load %arg22[%c0_241, %c7_242, %c0_243] : memref<1x26x32xf32, #tpu.memory_space<vmem>>, vector<1x16x32xf32>
    %c0_244 = arith.constant 0 : index
    %c8_245 = arith.constant 8 : index
    %c0_246 = arith.constant 0 : index
    %176 = vector.load %arg22[%c0_244, %c8_245, %c0_246] : memref<1x26x32xf32, #tpu.memory_space<vmem>>, vector<1x16x32xf32>
    %c0_247 = arith.constant 0 : index
    %c9_248 = arith.constant 9 : index
    %c0_249 = arith.constant 0 : index
    %177 = vector.load %arg22[%c0_247, %c9_248, %c0_249] : memref<1x26x32xf32, #tpu.memory_space<vmem>>, vector<1x16x32xf32>
    %c0_250 = arith.constant 0 : index
    %c10_251 = arith.constant 10 : index
    %c0_252 = arith.constant 0 : index
    %178 = vector.load %arg22[%c0_250, %c10_251, %c0_252] : memref<1x26x32xf32, #tpu.memory_space<vmem>>, vector<1x16x32xf32>
    %179 = tpu.concatenate %175, %176, %177, %178 in 2 : vector<1x16x32xf32>, vector<1x16x32xf32>, vector<1x16x32xf32>, vector<1x16x32xf32> -> vector<1x16x128xf32>
    %180 = arith.truncf %179 : vector<1x16x128xf32> to vector<1x16x128xbf16>
    %181 = vector.shape_cast %180 : vector<1x16x128xbf16> to vector<16x128xbf16>
    %c0_253 = arith.constant 0 : index
    %c0_254 = arith.constant 0 : index
    %182 = vector.load %arg8[%c0_253, %c0_254] : memref<128x64xbf16, #tpu.memory_space<vmem>>, vector<128x64xbf16>
    %cst_255 = arith.constant dense<0.000000e+00> : vector<16x64xf32>
    %183 = tpu.matmul %181, %182, %cst_255 {dimension_numbers = #tpu.dot_dimension_numbers<[1], [0], [0], [1], [0, 0, 1, 1], [], []>} : vector<16x128xbf16>, vector<128x64xbf16>, vector<16x64xf32> -> vector<16x64xf32>
    %184 = vector.shape_cast %183 : vector<16x64xf32> to vector<1x16x64xf32>
    %c0_256 = arith.constant 0 : index
    %c0_257 = arith.constant 0 : index
    %185 = vector.load %arg9[%c0_256, %c0_257] : memref<1x64xf32, #tpu.memory_space<vmem>>, vector<1x64xf32>
    %186 = vector.shape_cast %185 : vector<1x64xf32> to vector<1x1x64xf32>
    %187 = vector.broadcast %186 : vector<1x1x64xf32> to vector<1x16x64xf32>
    %188 = arith.addf %184, %187 : vector<1x16x64xf32>
    %cst_258 = arith.constant 0.000000e+00 : f32
    %189 = vector.broadcast %cst_258 : f32 to vector<1x16x64xf32>
    %190 = arith.cmpf oge, %188, %189 : vector<1x16x64xf32>
    %cst_259 = arith.constant 0.00999999977 : f32
    %191 = vector.broadcast %cst_259 : f32 to vector<1x16x64xf32>
    %192 = arith.mulf %191, %188 : vector<1x16x64xf32>
    %193 = arith.select %190, %188, %192 : vector<1x16x64xi1>, vector<1x16x64xf32>
    %c0_260 = arith.constant 0 : index
    %c8_261 = arith.constant 8 : index
    %c0_262 = arith.constant 0 : index
    %194 = vector.load %arg23[%c0_260, %c8_261, %c0_262] : memref<1x26x64xf32, #tpu.memory_space<vmem>>, vector<1x16x64xf32>
    tpu.vector_store %arg23[%c0_260, %c8_261, %c0_262], %193 {strides = array<i32>} : memref<1x26x64xf32, #tpu.memory_space<vmem>>, vector<1x16x64xf32>,
    %c0_263 = arith.constant 0 : index
    %c0_264 = arith.constant 0 : index
    %195 = vector.load %arg12[%c0_263, %c0_264] : memref<1x64xf32, #tpu.memory_space<vmem>>, vector<1x64xf32>
    %196 = vector.shape_cast %195 : vector<1x64xf32> to vector<1x1x64xf32>
    %c0_265 = arith.constant 0 : index
    %c0_266 = arith.constant 0 : index
    %197 = vector.load %arg13[%c0_265, %c0_266] : memref<1x64xf32, #tpu.memory_space<vmem>>, vector<1x64xf32>
    %198 = vector.shape_cast %197 : vector<1x64xf32> to vector<1x1x64xf32>
    %c0_267 = arith.constant 0 : index
    %c7_268 = arith.constant 7 : index
    %c0_269 = arith.constant 0 : index
    %199 = tpu.strided_load %arg23[%c0_267, %c7_268, %c0_269] {strides = array<i32: 1, 4, 1>} : memref<1x26x64xf32, #tpu.memory_space<vmem>>, vector<1x4x64xf32>
    %c0_270 = arith.constant 0 : index
    %c8_271 = arith.constant 8 : index
    %c0_272 = arith.constant 0 : index
    %200 = tpu.strided_load %arg23[%c0_270, %c8_271, %c0_272] {strides = array<i32: 1, 4, 1>} : memref<1x26x64xf32, #tpu.memory_space<vmem>>, vector<1x4x64xf32>
    %c0_273 = arith.constant 0 : index
    %c9_274 = arith.constant 9 : index
    %c0_275 = arith.constant 0 : index
    %201 = tpu.strided_load %arg23[%c0_273, %c9_274, %c0_275] {strides = array<i32: 1, 4, 1>} : memref<1x26x64xf32, #tpu.memory_space<vmem>>, vector<1x4x64xf32>
    %c0_276 = arith.constant 0 : index
    %c10_277 = arith.constant 10 : index
    %c0_278 = arith.constant 0 : index
    %202 = tpu.strided_load %arg23[%c0_276, %c10_277, %c0_278] {strides = array<i32: 1, 4, 1>} : memref<1x26x64xf32, #tpu.memory_space<vmem>>, vector<1x4x64xf32>
    %203 = tpu.concatenate %199, %200, %201, %202 in 2 : vector<1x4x64xf32>, vector<1x4x64xf32>, vector<1x4x64xf32>, vector<1x4x64xf32> -> vector<1x4x256xf32>
    %204 = arith.truncf %203 : vector<1x4x256xf32> to vector<1x4x256xbf16>
    %cst_279 = arith.constant 0.000000e+00 : bf16
    %205 = vector.broadcast %cst_279 : bf16 to vector<1x4x256xbf16>
    %206 = tpu.concatenate %204, %205 in 1 : vector<1x4x256xbf16>, vector<1x4x256xbf16> -> vector<1x8x256xbf16>
    %207 = vector.shape_cast %206 : vector<1x8x256xbf16> to vector<8x256xbf16>
    %c0_280 = arith.constant 0 : index
    %c0_281 = arith.constant 0 : index
    %208 = vector.load %arg10[%c0_280, %c0_281] : memref<256x64xbf16, #tpu.memory_space<vmem>>, vector<256x64xbf16>
    %cst_282 = arith.constant dense<0.000000e+00> : vector<8x64xf32>
    %209 = tpu.matmul %207, %208, %cst_282 {dimension_numbers = #tpu.dot_dimension_numbers<[1], [0], [0], [1], [0, 0, 1, 1], [], []>} : vector<8x256xbf16>, vector<256x64xbf16>, vector<8x64xf32> -> vector<8x64xf32>
    %210 = vector.shape_cast %209 : vector<8x64xf32> to vector<1x8x64xf32>
    %211 = vector.extract_strided_slice %210 {offsets = [0, 0, 0], sizes = [1, 4, 64], strides = [1, 1, 1]} : vector<1x8x64xf32> to vector<1x4x64xf32>
    %c0_283 = arith.constant 0 : index
    %c0_284 = arith.constant 0 : index
    %212 = vector.load %arg11[%c0_283, %c0_284] : memref<1x64xf32, #tpu.memory_space<vmem>>, vector<1x64xf32>
    %213 = vector.shape_cast %212 : vector<1x64xf32> to vector<1x1x64xf32>
    %214 = vector.broadcast %213 : vector<1x1x64xf32> to vector<1x4x64xf32>
    %215 = arith.addf %211, %214 : vector<1x4x64xf32>
    %cst_285 = arith.constant 0.000000e+00 : f32
    %216 = vector.broadcast %cst_285 : f32 to vector<1x4x64xf32>
    %217 = arith.cmpf oge, %215, %216 : vector<1x4x64xf32>
    %cst_286 = arith.constant 0.00999999977 : f32
    %218 = vector.broadcast %cst_286 : f32 to vector<1x4x64xf32>
    %219 = arith.mulf %218, %215 : vector<1x4x64xf32>
    %220 = arith.select %217, %215, %219 : vector<1x4x64xi1>, vector<1x4x64xf32>
    %221 = vector.broadcast %196 : vector<1x1x64xf32> to vector<1x4x64xf32>
    %222 = arith.mulf %220, %221 : vector<1x4x64xf32>
    %223 = vector.broadcast %198 : vector<1x1x64xf32> to vector<1x4x64xf32>
    %224 = arith.addf %222, %223 : vector<1x4x64xf32>
    %c0_287 = arith.constant 0 : index
    %c8_288 = arith.constant 8 : index
    %c0_289 = arith.constant 0 : index
    %225 = tpu.strided_load %arg23[%c0_287, %c8_288, %c0_289] {strides = array<i32: 1, 4, 1>} : memref<1x26x64xf32, #tpu.memory_space<vmem>>, vector<1x4x64xf32>
    %c0_290 = arith.constant 0 : index
    %c9_291 = arith.constant 9 : index
    %c0_292 = arith.constant 0 : index
    %226 = tpu.strided_load %arg23[%c0_290, %c9_291, %c0_292] {strides = array<i32: 1, 4, 1>} : memref<1x26x64xf32, #tpu.memory_space<vmem>>, vector<1x4x64xf32>
    %c0_293 = arith.constant 0 : index
    %c10_294 = arith.constant 10 : index
    %c0_295 = arith.constant 0 : index
    %227 = tpu.strided_load %arg23[%c0_293, %c10_294, %c0_295] {strides = array<i32: 1, 4, 1>} : memref<1x26x64xf32, #tpu.memory_space<vmem>>, vector<1x4x64xf32>
    %c0_296 = arith.constant 0 : index
    %c11_297 = arith.constant 11 : index
    %c0_298 = arith.constant 0 : index
    %228 = tpu.strided_load %arg23[%c0_296, %c11_297, %c0_298] {strides = array<i32: 1, 4, 1>} : memref<1x26x64xf32, #tpu.memory_space<vmem>>, vector<1x4x64xf32>
    %229 = tpu.concatenate %225, %226, %227, %228 in 2 : vector<1x4x64xf32>, vector<1x4x64xf32>, vector<1x4x64xf32>, vector<1x4x64xf32> -> vector<1x4x256xf32>
    %230 = arith.truncf %229 : vector<1x4x256xf32> to vector<1x4x256xbf16>
    %cst_299 = arith.constant 0.000000e+00 : bf16
    %231 = vector.broadcast %cst_299 : bf16 to vector<1x4x256xbf16>
    %232 = tpu.concatenate %230, %231 in 1 : vector<1x4x256xbf16>, vector<1x4x256xbf16> -> vector<1x8x256xbf16>
    %233 = vector.shape_cast %232 : vector<1x8x256xbf16> to vector<8x256xbf16>
    %c0_300 = arith.constant 0 : index
    %c0_301 = arith.constant 0 : index
    %234 = vector.load %arg10[%c0_300, %c0_301] : memref<256x64xbf16, #tpu.memory_space<vmem>>, vector<256x64xbf16>
    %cst_302 = arith.constant dense<0.000000e+00> : vector<8x64xf32>
    %235 = tpu.matmul %233, %234, %cst_302 {dimension_numbers = #tpu.dot_dimension_numbers<[1], [0], [0], [1], [0, 0, 1, 1], [], []>} : vector<8x256xbf16>, vector<256x64xbf16>, vector<8x64xf32> -> vector<8x64xf32>
    %236 = vector.shape_cast %235 : vector<8x64xf32> to vector<1x8x64xf32>
    %237 = vector.extract_strided_slice %236 {offsets = [0, 0, 0], sizes = [1, 4, 64], strides = [1, 1, 1]} : vector<1x8x64xf32> to vector<1x4x64xf32>
    %c0_303 = arith.constant 0 : index
    %c0_304 = arith.constant 0 : index
    %238 = vector.load %arg11[%c0_303, %c0_304] : memref<1x64xf32, #tpu.memory_space<vmem>>, vector<1x64xf32>
    %239 = vector.shape_cast %238 : vector<1x64xf32> to vector<1x1x64xf32>
    %240 = vector.broadcast %239 : vector<1x1x64xf32> to vector<1x4x64xf32>
    %241 = arith.addf %237, %240 : vector<1x4x64xf32>
    %cst_305 = arith.constant 0.000000e+00 : f32
    %242 = vector.broadcast %cst_305 : f32 to vector<1x4x64xf32>
    %243 = arith.cmpf oge, %241, %242 : vector<1x4x64xf32>
    %cst_306 = arith.constant 0.00999999977 : f32
    %244 = vector.broadcast %cst_306 : f32 to vector<1x4x64xf32>
    %245 = arith.mulf %244, %241 : vector<1x4x64xf32>
    %246 = arith.select %243, %241, %245 : vector<1x4x64xi1>, vector<1x4x64xf32>
    %247 = vector.broadcast %196 : vector<1x1x64xf32> to vector<1x4x64xf32>
    %248 = arith.mulf %246, %247 : vector<1x4x64xf32>
    %249 = vector.broadcast %198 : vector<1x1x64xf32> to vector<1x4x64xf32>
    %250 = arith.addf %248, %249 : vector<1x4x64xf32>
    %251 = arith.maximumf %224, %250 : vector<1x4x64xf32>
    %c0_307 = arith.constant 0 : index
    %c9_308 = arith.constant 9 : index
    %c0_309 = arith.constant 0 : index
    %252 = tpu.strided_load %arg23[%c0_307, %c9_308, %c0_309] {strides = array<i32: 1, 4, 1>} : memref<1x26x64xf32, #tpu.memory_space<vmem>>, vector<1x4x64xf32>
    %c0_310 = arith.constant 0 : index
    %c10_311 = arith.constant 10 : index
    %c0_312 = arith.constant 0 : index
    %253 = tpu.strided_load %arg23[%c0_310, %c10_311, %c0_312] {strides = array<i32: 1, 4, 1>} : memref<1x26x64xf32, #tpu.memory_space<vmem>>, vector<1x4x64xf32>
    %c0_313 = arith.constant 0 : index
    %c11_314 = arith.constant 11 : index
    %c0_315 = arith.constant 0 : index
    %254 = tpu.strided_load %arg23[%c0_313, %c11_314, %c0_315] {strides = array<i32: 1, 4, 1>} : memref<1x26x64xf32, #tpu.memory_space<vmem>>, vector<1x4x64xf32>
    %c0_316 = arith.constant 0 : index
    %c12_317 = arith.constant 12 : index
    %c0_318 = arith.constant 0 : index
    %255 = tpu.strided_load %arg23[%c0_316, %c12_317, %c0_318] {strides = array<i32: 1, 4, 1>} : memref<1x26x64xf32, #tpu.memory_space<vmem>>, vector<1x4x64xf32>
    %256 = tpu.concatenate %252, %253, %254, %255 in 2 : vector<1x4x64xf32>, vector<1x4x64xf32>, vector<1x4x64xf32>, vector<1x4x64xf32> -> vector<1x4x256xf32>
    %257 = arith.truncf %256 : vector<1x4x256xf32> to vector<1x4x256xbf16>
    %cst_319 = arith.constant 0.000000e+00 : bf16
    %258 = vector.broadcast %cst_319 : bf16 to vector<1x4x256xbf16>
    %259 = tpu.concatenate %257, %258 in 1 : vector<1x4x256xbf16>, vector<1x4x256xbf16> -> vector<1x8x256xbf16>
    %260 = vector.shape_cast %259 : vector<1x8x256xbf16> to vector<8x256xbf16>
    %c0_320 = arith.constant 0 : index
    %c0_321 = arith.constant 0 : index
    %261 = vector.load %arg10[%c0_320, %c0_321] : memref<256x64xbf16, #tpu.memory_space<vmem>>, vector<256x64xbf16>
    %cst_322 = arith.constant dense<0.000000e+00> : vector<8x64xf32>
    %262 = tpu.matmul %260, %261, %cst_322 {dimension_numbers = #tpu.dot_dimension_numbers<[1], [0], [0], [1], [0, 0, 1, 1], [], []>} : vector<8x256xbf16>, vector<256x64xbf16>, vector<8x64xf32> -> vector<8x64xf32>
    %263 = vector.shape_cast %262 : vector<8x64xf32> to vector<1x8x64xf32>
    %264 = vector.extract_strided_slice %263 {offsets = [0, 0, 0], sizes = [1, 4, 64], strides = [1, 1, 1]} : vector<1x8x64xf32> to vector<1x4x64xf32>
    %c0_323 = arith.constant 0 : index
    %c0_324 = arith.constant 0 : index
    %265 = vector.load %arg11[%c0_323, %c0_324] : memref<1x64xf32, #tpu.memory_space<vmem>>, vector<1x64xf32>
    %266 = vector.shape_cast %265 : vector<1x64xf32> to vector<1x1x64xf32>
    %267 = vector.broadcast %266 : vector<1x1x64xf32> to vector<1x4x64xf32>
    %268 = arith.addf %264, %267 : vector<1x4x64xf32>
    %cst_325 = arith.constant 0.000000e+00 : f32
    %269 = vector.broadcast %cst_325 : f32 to vector<1x4x64xf32>
    %270 = arith.cmpf oge, %268, %269 : vector<1x4x64xf32>
    %cst_326 = arith.constant 0.00999999977 : f32
    %271 = vector.broadcast %cst_326 : f32 to vector<1x4x64xf32>
    %272 = arith.mulf %271, %268 : vector<1x4x64xf32>
    %273 = arith.select %270, %268, %272 : vector<1x4x64xi1>, vector<1x4x64xf32>
    %274 = vector.broadcast %196 : vector<1x1x64xf32> to vector<1x4x64xf32>
    %275 = arith.mulf %273, %274 : vector<1x4x64xf32>
    %276 = vector.broadcast %198 : vector<1x1x64xf32> to vector<1x4x64xf32>
    %277 = arith.addf %275, %276 : vector<1x4x64xf32>
    %278 = arith.maximumf %251, %277 : vector<1x4x64xf32>
    %c0_327 = arith.constant 0 : index
    %c10_328 = arith.constant 10 : index
    %c0_329 = arith.constant 0 : index
    %279 = tpu.strided_load %arg23[%c0_327, %c10_328, %c0_329] {strides = array<i32: 1, 4, 1>} : memref<1x26x64xf32, #tpu.memory_space<vmem>>, vector<1x4x64xf32>
    %c0_330 = arith.constant 0 : index
    %c11_331 = arith.constant 11 : index
    %c0_332 = arith.constant 0 : index
    %280 = tpu.strided_load %arg23[%c0_330, %c11_331, %c0_332] {strides = array<i32: 1, 4, 1>} : memref<1x26x64xf32, #tpu.memory_space<vmem>>, vector<1x4x64xf32>
    %c0_333 = arith.constant 0 : index
    %c12_334 = arith.constant 12 : index
    %c0_335 = arith.constant 0 : index
    %281 = tpu.strided_load %arg23[%c0_333, %c12_334, %c0_335] {strides = array<i32: 1, 4, 1>} : memref<1x26x64xf32, #tpu.memory_space<vmem>>, vector<1x4x64xf32>
    %c0_336 = arith.constant 0 : index
    %c13_337 = arith.constant 13 : index
    %c0_338 = arith.constant 0 : index
    %282 = tpu.strided_load %arg23[%c0_336, %c13_337, %c0_338] {strides = array<i32: 1, 4, 1>} : memref<1x26x64xf32, #tpu.memory_space<vmem>>, vector<1x4x64xf32>
    %283 = tpu.concatenate %279, %280, %281, %282 in 2 : vector<1x4x64xf32>, vector<1x4x64xf32>, vector<1x4x64xf32>, vector<1x4x64xf32> -> vector<1x4x256xf32>
    %284 = arith.truncf %283 : vector<1x4x256xf32> to vector<1x4x256xbf16>
    %cst_339 = arith.constant 0.000000e+00 : bf16
    %285 = vector.broadcast %cst_339 : bf16 to vector<1x4x256xbf16>
    %286 = tpu.concatenate %284, %285 in 1 : vector<1x4x256xbf16>, vector<1x4x256xbf16> -> vector<1x8x256xbf16>
    %287 = vector.shape_cast %286 : vector<1x8x256xbf16> to vector<8x256xbf16>
    %c0_340 = arith.constant 0 : index
    %c0_341 = arith.constant 0 : index
    %288 = vector.load %arg10[%c0_340, %c0_341] : memref<256x64xbf16, #tpu.memory_space<vmem>>, vector<256x64xbf16>
    %cst_342 = arith.constant dense<0.000000e+00> : vector<8x64xf32>
    %289 = tpu.matmul %287, %288, %cst_342 {dimension_numbers = #tpu.dot_dimension_numbers<[1], [0], [0], [1], [0, 0, 1, 1], [], []>} : vector<8x256xbf16>, vector<256x64xbf16>, vector<8x64xf32> -> vector<8x64xf32>
    %290 = vector.shape_cast %289 : vector<8x64xf32> to vector<1x8x64xf32>
    %291 = vector.extract_strided_slice %290 {offsets = [0, 0, 0], sizes = [1, 4, 64], strides = [1, 1, 1]} : vector<1x8x64xf32> to vector<1x4x64xf32>
    %c0_343 = arith.constant 0 : index
    %c0_344 = arith.constant 0 : index
    %292 = vector.load %arg11[%c0_343, %c0_344] : memref<1x64xf32, #tpu.memory_space<vmem>>, vector<1x64xf32>
    %293 = vector.shape_cast %292 : vector<1x64xf32> to vector<1x1x64xf32>
    %294 = vector.broadcast %293 : vector<1x1x64xf32> to vector<1x4x64xf32>
    %295 = arith.addf %291, %294 : vector<1x4x64xf32>
    %cst_345 = arith.constant 0.000000e+00 : f32
    %296 = vector.broadcast %cst_345 : f32 to vector<1x4x64xf32>
    %297 = arith.cmpf oge, %295, %296 : vector<1x4x64xf32>
    %cst_346 = arith.constant 0.00999999977 : f32
    %298 = vector.broadcast %cst_346 : f32 to vector<1x4x64xf32>
    %299 = arith.mulf %298, %295 : vector<1x4x64xf32>
    %300 = arith.select %297, %295, %299 : vector<1x4x64xi1>, vector<1x4x64xf32>
    %301 = vector.broadcast %196 : vector<1x1x64xf32> to vector<1x4x64xf32>
    %302 = arith.mulf %300, %301 : vector<1x4x64xf32>
    %303 = vector.broadcast %198 : vector<1x1x64xf32> to vector<1x4x64xf32>
    %304 = arith.addf %302, %303 : vector<1x4x64xf32>
    %305 = arith.maximumf %278, %304 : vector<1x4x64xf32>
    %c0_347 = arith.constant 0 : index
    %c0_348 = arith.constant 0 : index
    %c0_349 = arith.constant 0 : index
    %306 = vector.load %arg24[%c0_347, %c0_348, %c0_349] : memref<1x4x64xf32, #tpu.memory_space<vmem>>, vector<1x4x64xf32>
    tpu.vector_store %arg24[%c0_347, %c0_348, %c0_349], %305 {strides = array<i32>} : memref<1x4x64xf32, #tpu.memory_space<vmem>>, vector<1x4x64xf32>,
    %c0_350 = arith.constant 0 : index
    %c0_351 = arith.constant 0 : index
    %c0_352 = arith.constant 0 : index
    %307 = vector.load %arg24[%c0_350, %c0_351, %c0_352] : memref<1x4x64xf32, #tpu.memory_space<vmem>>, vector<1x4x64xf32>
    %308 = arith.truncf %307 : vector<1x4x64xf32> to vector<1x4x64xbf16>
    %cst_353 = arith.constant 0.000000e+00 : bf16
    %309 = vector.broadcast %cst_353 : bf16 to vector<1x4x64xbf16>
    %310 = tpu.concatenate %308, %309 in 1 : vector<1x4x64xbf16>, vector<1x4x64xbf16> -> vector<1x8x64xbf16>
    %311 = vector.shape_cast %310 : vector<1x8x64xbf16> to vector<8x64xbf16>
    %c0_354 = arith.constant 0 : index
    %c0_355 = arith.constant 0 : index
    %312 = vector.load %arg14[%c0_354, %c0_355] : memref<64x128xbf16, #tpu.memory_space<vmem>>, vector<64x128xbf16>
    %cst_356 = arith.constant dense<0.000000e+00> : vector<8x128xf32>
    %313 = tpu.matmul %311, %312, %cst_356 {dimension_numbers = #tpu.dot_dimension_numbers<[1], [0], [0], [1], [0, 0, 1, 1], [], []>} : vector<8x64xbf16>, vector<64x128xbf16>, vector<8x128xf32> -> vector<8x128xf32>
    %314 = vector.shape_cast %313 : vector<8x128xf32> to vector<1x8x128xf32>
    %315 = vector.extract_strided_slice %314 {offsets = [0, 0, 0], sizes = [1, 4, 128], strides = [1, 1, 1]} : vector<1x8x128xf32> to vector<1x4x128xf32>
    %c0_357 = arith.constant 0 : index
    %c0_358 = arith.constant 0 : index
    %316 = vector.load %arg15[%c0_357, %c0_358] : memref<1x128xf32, #tpu.memory_space<vmem>>, vector<1x128xf32>
    %317 = vector.shape_cast %316 : vector<1x128xf32> to vector<1x1x128xf32>
    %318 = vector.broadcast %317 : vector<1x1x128xf32> to vector<1x4x128xf32>
    %319 = arith.addf %315, %318 : vector<1x4x128xf32>
    %cst_359 = arith.constant 0.000000e+00 : f32
    %320 = vector.broadcast %cst_359 : f32 to vector<1x4x128xf32>
    %321 = arith.cmpf oge, %319, %320 : vector<1x4x128xf32>
    %cst_360 = arith.constant 0.00999999977 : f32
    %322 = vector.broadcast %cst_360 : f32 to vector<1x4x128xf32>
    %323 = arith.mulf %322, %319 : vector<1x4x128xf32>
    %324 = arith.select %321, %319, %323 : vector<1x4x128xi1>, vector<1x4x128xf32>
    %c0_361 = arith.constant 0 : index
    %c0_362 = arith.constant 0 : index
    %c0_363 = arith.constant 0 : index
    %325 = vector.load %arg25[%c0_361, %c0_362, %c0_363] : memref<1x4x128xf32, #tpu.memory_space<vmem>>, vector<1x4x128xf32>
    tpu.vector_store %arg25[%c0_361, %c0_362, %c0_363], %324 {strides = array<i32>} : memref<1x4x128xf32, #tpu.memory_space<vmem>>, vector<1x4x128xf32>,
    %c0_364 = arith.constant 0 : index
    %c0_365 = arith.constant 0 : index
    %326 = vector.load %arg18[%c0_364, %c0_365] : memref<1x128xf32, #tpu.memory_space<vmem>>, vector<1x128xf32>
    %327 = vector.shape_cast %326 : vector<1x128xf32> to vector<1x1x128xf32>
    %c0_366 = arith.constant 0 : index
    %c0_367 = arith.constant 0 : index
    %328 = vector.load %arg19[%c0_366, %c0_367] : memref<1x128xf32, #tpu.memory_space<vmem>>, vector<1x128xf32>
    %329 = vector.shape_cast %328 : vector<1x128xf32> to vector<1x1x128xf32>
    %c0_368 = arith.constant 0 : index
    %c0_369 = arith.constant 0 : index
    %c0_370 = arith.constant 0 : index
    %330 = tpu.strided_load %arg25[%c0_368, %c0_369, %c0_370] {strides = array<i32: 1, 4, 1>} : memref<1x4x128xf32, #tpu.memory_space<vmem>>, vector<1x1x128xf32>
    %331 = arith.truncf %330 : vector<1x1x128xf32> to vector<1x1x128xbf16>
    %cst_371 = arith.constant 0.000000e+00 : bf16
    %332 = vector.broadcast %cst_371 : bf16 to vector<1x7x128xbf16>
    %333 = tpu.concatenate %331, %332 in 1 : vector<1x1x128xbf16>, vector<1x7x128xbf16> -> vector<1x8x128xbf16>
    %334 = vector.shape_cast %333 : vector<1x8x128xbf16> to vector<8x128xbf16>
    %c0_372 = arith.constant 0 : index
    %c0_373 = arith.constant 0 : index
    %335 = vector.load %arg16[%c0_372, %c0_373] : memref<128x128xbf16, #tpu.memory_space<vmem>>, vector<128x128xbf16>
    %cst_374 = arith.constant dense<0.000000e+00> : vector<8x128xf32>
    %336 = tpu.matmul %334, %335, %cst_374 {dimension_numbers = #tpu.dot_dimension_numbers<[1], [0], [0], [1], [0, 0, 1, 1], [], []>} : vector<8x128xbf16>, vector<128x128xbf16>, vector<8x128xf32> -> vector<8x128xf32>
    %337 = vector.shape_cast %336 : vector<8x128xf32> to vector<1x8x128xf32>
    %338 = vector.extract_strided_slice %337 {offsets = [0, 0, 0], sizes = [1, 1, 128], strides = [1, 1, 1]} : vector<1x8x128xf32> to vector<1x1x128xf32>
    %c0_375 = arith.constant 0 : index
    %c0_376 = arith.constant 0 : index
    %339 = vector.load %arg17[%c0_375, %c0_376] : memref<1x128xf32, #tpu.memory_space<vmem>>, vector<1x128xf32>
    %340 = vector.shape_cast %339 : vector<1x128xf32> to vector<1x1x128xf32>
    %341 = arith.addf %338, %340 : vector<1x1x128xf32>
    %cst_377 = arith.constant 0.000000e+00 : f32
    %342 = vector.broadcast %cst_377 : f32 to vector<1x1x128xf32>
    %343 = arith.cmpf oge, %341, %342 : vector<1x1x128xf32>
    %cst_378 = arith.constant 0.00999999977 : f32
    %344 = vector.broadcast %cst_378 : f32 to vector<1x1x128xf32>
    %345 = arith.mulf %344, %341 : vector<1x1x128xf32>
    %346 = arith.select %343, %341, %345 : vector<1x1x128xi1>, vector<1x1x128xf32>
    %347 = arith.mulf %346, %327 : vector<1x1x128xf32>
    %348 = arith.addf %347, %329 : vector<1x1x128xf32>
    %c0_379 = arith.constant 0 : index
    %c1_380 = arith.constant 1 : index
    %c0_381 = arith.constant 0 : index
    %349 = tpu.strided_load %arg25[%c0_379, %c1_380, %c0_381] {strides = array<i32: 1, 4, 1>} : memref<1x4x128xf32, #tpu.memory_space<vmem>>, vector<1x1x128xf32>
    %350 = arith.truncf %349 : vector<1x1x128xf32> to vector<1x1x128xbf16>
    %cst_382 = arith.constant 0.000000e+00 : bf16
    %351 = vector.broadcast %cst_382 : bf16 to vector<1x7x128xbf16>
    %352 = tpu.concatenate %350, %351 in 1 : vector<1x1x128xbf16>, vector<1x7x128xbf16> -> vector<1x8x128xbf16>
    %353 = vector.shape_cast %352 : vector<1x8x128xbf16> to vector<8x128xbf16>
    %c0_383 = arith.constant 0 : index
    %c0_384 = arith.constant 0 : index
    %354 = vector.load %arg16[%c0_383, %c0_384] : memref<128x128xbf16, #tpu.memory_space<vmem>>, vector<128x128xbf16>
    %cst_385 = arith.constant dense<0.000000e+00> : vector<8x128xf32>
    %355 = tpu.matmul %353, %354, %cst_385 {dimension_numbers = #tpu.dot_dimension_numbers<[1], [0], [0], [1], [0, 0, 1, 1], [], []>} : vector<8x128xbf16>, vector<128x128xbf16>, vector<8x128xf32> -> vector<8x128xf32>
    %356 = vector.shape_cast %355 : vector<8x128xf32> to vector<1x8x128xf32>
    %357 = vector.extract_strided_slice %356 {offsets = [0, 0, 0], sizes = [1, 1, 128], strides = [1, 1, 1]} : vector<1x8x128xf32> to vector<1x1x128xf32>
    %c0_386 = arith.constant 0 : index
    %c0_387 = arith.constant 0 : index
    %358 = vector.load %arg17[%c0_386, %c0_387] : memref<1x128xf32, #tpu.memory_space<vmem>>, vector<1x128xf32>
    %359 = vector.shape_cast %358 : vector<1x128xf32> to vector<1x1x128xf32>
    %360 = arith.addf %357, %359 : vector<1x1x128xf32>
    %cst_388 = arith.constant 0.000000e+00 : f32
    %361 = vector.broadcast %cst_388 : f32 to vector<1x1x128xf32>
    %362 = arith.cmpf oge, %360, %361 : vector<1x1x128xf32>
    %cst_389 = arith.constant 0.00999999977 : f32
    %363 = vector.broadcast %cst_389 : f32 to vector<1x1x128xf32>
    %364 = arith.mulf %363, %360 : vector<1x1x128xf32>
    %365 = arith.select %362, %360, %364 : vector<1x1x128xi1>, vector<1x1x128xf32>
    %366 = arith.mulf %365, %327 : vector<1x1x128xf32>
    %367 = arith.addf %366, %329 : vector<1x1x128xf32>
    %368 = arith.maximumf %348, %367 : vector<1x1x128xf32>
    %c0_390 = arith.constant 0 : index
    %c2_391 = arith.constant 2 : index
    %c0_392 = arith.constant 0 : index
    %369 = tpu.strided_load %arg25[%c0_390, %c2_391, %c0_392] {strides = array<i32: 1, 4, 1>} : memref<1x4x128xf32, #tpu.memory_space<vmem>>, vector<1x1x128xf32>
    %370 = arith.truncf %369 : vector<1x1x128xf32> to vector<1x1x128xbf16>
    %cst_393 = arith.constant 0.000000e+00 : bf16
    %371 = vector.broadcast %cst_393 : bf16 to vector<1x7x128xbf16>
    %372 = tpu.concatenate %370, %371 in 1 : vector<1x1x128xbf16>, vector<1x7x128xbf16> -> vector<1x8x128xbf16>
    %373 = vector.shape_cast %372 : vector<1x8x128xbf16> to vector<8x128xbf16>
    %c0_394 = arith.constant 0 : index
    %c0_395 = arith.constant 0 : index
    %374 = vector.load %arg16[%c0_394, %c0_395] : memref<128x128xbf16, #tpu.memory_space<vmem>>, vector<128x128xbf16>
    %cst_396 = arith.constant dense<0.000000e+00> : vector<8x128xf32>
    %375 = tpu.matmul %373, %374, %cst_396 {dimension_numbers = #tpu.dot_dimension_numbers<[1], [0], [0], [1], [0, 0, 1, 1], [], []>} : vector<8x128xbf16>, vector<128x128xbf16>, vector<8x128xf32> -> vector<8x128xf32>
    %376 = vector.shape_cast %375 : vector<8x128xf32> to vector<1x8x128xf32>
    %377 = vector.extract_strided_slice %376 {offsets = [0, 0, 0], sizes = [1, 1, 128], strides = [1, 1, 1]} : vector<1x8x128xf32> to vector<1x1x128xf32>
    %c0_397 = arith.constant 0 : index
    %c0_398 = arith.constant 0 : index
    %378 = vector.load %arg17[%c0_397, %c0_398] : memref<1x128xf32, #tpu.memory_space<vmem>>, vector<1x128xf32>
    %379 = vector.shape_cast %378 : vector<1x128xf32> to vector<1x1x128xf32>
    %380 = arith.addf %377, %379 : vector<1x1x128xf32>
    %cst_399 = arith.constant 0.000000e+00 : f32
    %381 = vector.broadcast %cst_399 : f32 to vector<1x1x128xf32>
    %382 = arith.cmpf oge, %380, %381 : vector<1x1x128xf32>
    %cst_400 = arith.constant 0.00999999977 : f32
    %383 = vector.broadcast %cst_400 : f32 to vector<1x1x128xf32>
    %384 = arith.mulf %383, %380 : vector<1x1x128xf32>
    %385 = arith.select %382, %380, %384 : vector<1x1x128xi1>, vector<1x1x128xf32>
    %386 = arith.mulf %385, %327 : vector<1x1x128xf32>
    %387 = arith.addf %386, %329 : vector<1x1x128xf32>
    %388 = arith.maximumf %368, %387 : vector<1x1x128xf32>
    %c0_401 = arith.constant 0 : index
    %c3_402 = arith.constant 3 : index
    %c0_403 = arith.constant 0 : index
    %389 = tpu.strided_load %arg25[%c0_401, %c3_402, %c0_403] {strides = array<i32: 1, 4, 1>} : memref<1x4x128xf32, #tpu.memory_space<vmem>>, vector<1x1x128xf32>
    %390 = arith.truncf %389 : vector<1x1x128xf32> to vector<1x1x128xbf16>
    %cst_404 = arith.constant 0.000000e+00 : bf16
    %391 = vector.broadcast %cst_404 : bf16 to vector<1x7x128xbf16>
    %392 = tpu.concatenate %390, %391 in 1 : vector<1x1x128xbf16>, vector<1x7x128xbf16> -> vector<1x8x128xbf16>
    %393 = vector.shape_cast %392 : vector<1x8x128xbf16> to vector<8x128xbf16>
    %c0_405 = arith.constant 0 : index
    %c0_406 = arith.constant 0 : index
    %394 = vector.load %arg16[%c0_405, %c0_406] : memref<128x128xbf16, #tpu.memory_space<vmem>>, vector<128x128xbf16>
    %cst_407 = arith.constant dense<0.000000e+00> : vector<8x128xf32>
    %395 = tpu.matmul %393, %394, %cst_407 {dimension_numbers = #tpu.dot_dimension_numbers<[1], [0], [0], [1], [0, 0, 1, 1], [], []>} : vector<8x128xbf16>, vector<128x128xbf16>, vector<8x128xf32> -> vector<8x128xf32>
    %396 = vector.shape_cast %395 : vector<8x128xf32> to vector<1x8x128xf32>
    %397 = vector.extract_strided_slice %396 {offsets = [0, 0, 0], sizes = [1, 1, 128], strides = [1, 1, 1]} : vector<1x8x128xf32> to vector<1x1x128xf32>
    %c0_408 = arith.constant 0 : index
    %c0_409 = arith.constant 0 : index
    %398 = vector.load %arg17[%c0_408, %c0_409] : memref<1x128xf32, #tpu.memory_space<vmem>>, vector<1x128xf32>
    %399 = vector.shape_cast %398 : vector<1x128xf32> to vector<1x1x128xf32>
    %400 = arith.addf %397, %399 : vector<1x1x128xf32>
    %cst_410 = arith.constant 0.000000e+00 : f32
    %401 = vector.broadcast %cst_410 : f32 to vector<1x1x128xf32>
    %402 = arith.cmpf oge, %400, %401 : vector<1x1x128xf32>
    %cst_411 = arith.constant 0.00999999977 : f32
    %403 = vector.broadcast %cst_411 : f32 to vector<1x1x128xf32>
    %404 = arith.mulf %403, %400 : vector<1x1x128xf32>
    %405 = arith.select %402, %400, %404 : vector<1x1x128xi1>, vector<1x1x128xf32>
    %406 = arith.mulf %405, %327 : vector<1x1x128xf32>
    %407 = arith.addf %406, %329 : vector<1x1x128xf32>
    %408 = arith.maximumf %388, %407 : vector<1x1x128xf32>
    %409 = arith.truncf %408 : vector<1x1x128xf32> to vector<1x1x128xbf16>
    %c0_412 = arith.constant 0 : index
    %c0_413 = arith.constant 0 : index
    %c0_414 = arith.constant 0 : index
    %410 = vector.load %arg20[%c0_412, %c0_413, %c0_414] : memref<1x1x128xbf16, #tpu.memory_space<vmem>>, vector<1x1x128xbf16>
    tpu.vector_store %arg20[%c0_412, %c0_413, %c0_414], %409 {strides = array<i32>} : memref<1x1x128xbf16, #tpu.memory_space<vmem>>, vector<1x1x128xbf16>,
    return
  }
  func.func @transform_0(%arg0: i32) -> (i32, i32, i32) {
    %c0_i32 = arith.constant 0 : i32
    %c0_i32_0 = arith.constant 0 : i32
    %c0_i32_1 = arith.constant 0 : i32
    return %arg0, %c0_i32, %c0_i32_0 : i32, i32, i32
  }
  func.func @transform_1(%arg0: i32) -> (i32, i32) {
    %c0_i32 = arith.constant 0 : i32
    %c0_i32_0 = arith.constant 0 : i32
    %c0_i32_1 = arith.constant 0 : i32
    return %c0_i32, %c0_i32_0 : i32, i32
  }
  func.func @transform_2(%arg0: i32) -> (i32, i32) {
    %c0_i32 = arith.constant 0 : i32
    %c0_i32_0 = arith.constant 0 : i32
    %c0_i32_1 = arith.constant 0 : i32
    return %c0_i32, %c0_i32_0 : i32, i32
  }
  func.func @transform_3(%arg0: i32) -> (i32, i32) {
    %c0_i32 = arith.constant 0 : i32
    %c0_i32_0 = arith.constant 0 : i32
    %c0_i32_1 = arith.constant 0 : i32
    return %c0_i32, %c0_i32_0 : i32, i32
  }
  func.func @transform_4(%arg0: i32) -> (i32, i32) {
    %c0_i32 = arith.constant 0 : i32
    %c0_i32_0 = arith.constant 0 : i32
    %c0_i32_1 = arith.constant 0 : i32
    return %c0_i32, %c0_i32_0 : i32, i32
  }
  func.func @transform_5(%arg0: i32) -> (i32, i32) {
    %c0_i32 = arith.constant 0 : i32
    %c0_i32_0 = arith.constant 0 : i32
    %c0_i32_1 = arith.constant 0 : i32
    return %c0_i32, %c0_i32_0 : i32, i32
  }
  func.func @transform_6(%arg0: i32) -> (i32, i32) {
    %c0_i32 = arith.constant 0 : i32
    %c0_i32_0 = arith.constant 0 : i32
    %c0_i32_1 = arith.constant 0 : i32
    return %c0_i32, %c0_i32_0 : i32, i32
  }
  func.func @transform_7(%arg0: i32) -> (i32, i32) {
    %c0_i32 = arith.constant 0 : i32
    %c0_i32_0 = arith.constant 0 : i32
    %c0_i32_1 = arith.constant 0 : i32
    return %c0_i32, %c0_i32_0 : i32, i32
  }
  func.func @transform_8(%arg0: i32) -> (i32, i32) {
    %c0_i32 = arith.constant 0 : i32
    %c0_i32_0 = arith.constant 0 : i32
    %c0_i32_1 = arith.constant 0 : i32
    return %c0_i32, %c0_i32_0 : i32, i32
  }
  func.func @transform_9(%arg0: i32) -> (i32, i32) {
    %c0_i32 = arith.constant 0 : i32
    %c0_i32_0 = arith.constant 0 : i32
    %c0_i32_1 = arith.constant 0 : i32
    return %c0_i32, %c0_i32_0 : i32, i32
  }
  func.func @transform_10(%arg0: i32) -> (i32, i32) {
    %c0_i32 = arith.constant 0 : i32
    %c0_i32_0 = arith.constant 0 : i32
    %c0_i32_1 = arith.constant 0 : i32
    return %c0_i32, %c0_i32_0 : i32, i32
  }
  func.func @transform_11(%arg0: i32) -> (i32, i32) {
    %c0_i32 = arith.constant 0 : i32
    %c0_i32_0 = arith.constant 0 : i32
    %c0_i32_1 = arith.constant 0 : i32
    return %c0_i32, %c0_i32_0 : i32, i32
  }
  func.func @transform_12(%arg0: i32) -> (i32, i32) {
    %c0_i32 = arith.constant 0 : i32
    %c0_i32_0 = arith.constant 0 : i32
    %c0_i32_1 = arith.constant 0 : i32
    return %c0_i32, %c0_i32_0 : i32, i32
  }
  func.func @transform_13(%arg0: i32) -> (i32, i32) {
    %c0_i32 = arith.constant 0 : i32
    %c0_i32_0 = arith.constant 0 : i32
    %c0_i32_1 = arith.constant 0 : i32
    return %c0_i32, %c0_i32_0 : i32, i32
  }
  func.func @transform_14(%arg0: i32) -> (i32, i32) {
    %c0_i32 = arith.constant 0 : i32
    %c0_i32_0 = arith.constant 0 : i32
    %c0_i32_1 = arith.constant 0 : i32
    return %c0_i32, %c0_i32_0 : i32, i32
  }
  func.func @transform_15(%arg0: i32) -> (i32, i32) {
    %c0_i32 = arith.constant 0 : i32
    %c0_i32_0 = arith.constant 0 : i32
    %c0_i32_1 = arith.constant 0 : i32
    return %c0_i32, %c0_i32_0 : i32, i32
  }
  func.func @transform_16(%arg0: i32) -> (i32, i32) {
    %c0_i32 = arith.constant 0 : i32
    %c0_i32_0 = arith.constant 0 : i32
    %c0_i32_1 = arith.constant 0 : i32
    return %c0_i32, %c0_i32_0 : i32, i32
  }
  func.func @transform_17(%arg0: i32) -> (i32, i32) {
    %c0_i32 = arith.constant 0 : i32
    %c0_i32_0 = arith.constant 0 : i32
    %c0_i32_1 = arith.constant 0 : i32
    return %c0_i32, %c0_i32_0 : i32, i32
  }
  func.func @transform_18(%arg0: i32) -> (i32, i32) {
    %c0_i32 = arith.constant 0 : i32
    %c0_i32_0 = arith.constant 0 : i32
    %c0_i32_1 = arith.constant 0 : i32
    return %c0_i32, %c0_i32_0 : i32, i32
  }
  func.func @transform_19(%arg0: i32) -> (i32, i32, i32) {
    %c0_i32 = arith.constant 0 : i32
    %c0_i32_0 = arith.constant 0 : i32
    %c0_i32_1 = arith.constant 0 : i32
    return %arg0, %c0_i32, %c0_i32_0 : i32, i32, i32
  }
}

module attributes {stable_mosaic.version = 11 : i64} {
  func.func @_dense_stack_kernel(%arg0: i32, %arg1: i32, %arg2: memref<2x128xbf16, #tpu.memory_space<vmem>>, %arg3: memref<128x1024xbf16, #tpu.memory_space<vmem>>, %arg4: memref<1x1024xf32, #tpu.memory_space<vmem>>, %arg5: memref<1024x128xbf16, #tpu.memory_space<vmem>>, %arg6: memref<1x128xf32, #tpu.memory_space<vmem>>, %arg7: memref<128x8xf32, #tpu.memory_space<vmem>>, %arg8: memref<1x8xf32, #tpu.memory_space<vmem>>, %arg9: memref<2x8xf32, #tpu.memory_space<vmem>>, %arg10: memref<2x1024xf32, #tpu.memory_space<vmem>>) attributes {dimension_semantics = [#tpu.dimension_semantics<parallel>, #tpu.dimension_semantics<arbitrary>], iteration_bounds = array<i64: 1, 1>, scalar_prefetch = 0 : i64, scratch_operands = 1 : i64, tpu.core_type = #tpu.core_type<tc>, window_params = [{transform_indices = @transform_0, window_bounds = array<i64: 2, 128>}, {transform_indices = @transform_1, window_bounds = array<i64: 128, 1024>}, {pipeline_mode = #tpu.pipeline_mode<synchronous>, transform_indices = @transform_2, window_bounds = array<i64: 1, 1024>}, {pipeline_mode = #tpu.pipeline_mode<synchronous>, transform_indices = @transform_3, window_bounds = array<i64: 1024, 128>}, {pipeline_mode = #tpu.pipeline_mode<synchronous>, transform_indices = @transform_4, window_bounds = array<i64: 1, 128>}, {pipeline_mode = #tpu.pipeline_mode<synchronous>, transform_indices = @transform_5, window_bounds = array<i64: 128, 8>}, {pipeline_mode = #tpu.pipeline_mode<synchronous>, transform_indices = @transform_6, window_bounds = array<i64: 1, 8>}, {transform_indices = @transform_7, window_bounds = array<i64: 2, 8>}]} {
    %c0_i32 = arith.constant 0 : i32
    %0 = arith.cmpi eq, %arg1, %c0_i32 : i32
    %1 = arith.extui %0 : i1 to i32
    %c0_i32_0 = arith.constant 0 : i32
    %2 = arith.cmpi ne, %1, %c0_i32_0 : i32
    scf.if %2 {
      %cst_10 = arith.constant 0.000000e+00 : f32
      %12 = vector.broadcast %cst_10 : f32 to vector<2x1024xf32>
      %c0_11 = arith.constant 0 : index
      %c0_12 = arith.constant 0 : index
      %13 = vector.load %arg10[%c0_11, %c0_12] : memref<2x1024xf32, #tpu.memory_space<vmem>>, vector<2x1024xf32>
      tpu.vector_store %arg10[%c0_11, %c0_12], %12 {strides = array<i32>} : memref<2x1024xf32, #tpu.memory_space<vmem>>, vector<2x1024xf32>,
    } else {
    }
    %c0 = arith.constant 0 : index
    %c0_1 = arith.constant 0 : index
    %3 = vector.load %arg10[%c0, %c0_1] : memref<2x1024xf32, #tpu.memory_space<vmem>>, vector<2x1024xf32>
    %c0_2 = arith.constant 0 : index
    %c0_3 = arith.constant 0 : index
    %4 = vector.load %arg2[%c0_2, %c0_3] : memref<2x128xbf16, #tpu.memory_space<vmem>>, vector<2x128xbf16>
    %c0_4 = arith.constant 0 : index
    %c0_5 = arith.constant 0 : index
    %5 = vector.load %arg3[%c0_4, %c0_5] : memref<128x1024xbf16, #tpu.memory_space<vmem>>, vector<128x1024xbf16>
    %cst = arith.constant dense<0.000000e+00> : vector<2x1024xf32>
    %6 = tpu.matmul %4, %5, %cst {dimension_numbers = #tpu.dot_dimension_numbers<[1], [0], [0], [1], [0, 0, 1, 1], [], []>} : vector<2x128xbf16>, vector<128x1024xbf16>, vector<2x1024xf32> -> vector<2x1024xf32>
    %7 = arith.addf %3, %6 : vector<2x1024xf32>
    %c0_6 = arith.constant 0 : index
    %c0_7 = arith.constant 0 : index
    %8 = vector.load %arg10[%c0_6, %c0_7] : memref<2x1024xf32, #tpu.memory_space<vmem>>, vector<2x1024xf32>
    tpu.vector_store %arg10[%c0_6, %c0_7], %7 {strides = array<i32>} : memref<2x1024xf32, #tpu.memory_space<vmem>>, vector<2x1024xf32>,
    %c0_i32_8 = arith.constant 0 : i32
    %9 = arith.cmpi eq, %arg1, %c0_i32_8 : i32
    %10 = arith.extui %9 : i1 to i32
    %c0_i32_9 = arith.constant 0 : i32
    %11 = arith.cmpi ne, %10, %c0_i32_9 : i32
    scf.if %11 {
      %c0_10 = arith.constant 0 : index
      %c0_11 = arith.constant 0 : index
      %12 = vector.load %arg10[%c0_10, %c0_11] : memref<2x1024xf32, #tpu.memory_space<vmem>>, vector<2x1024xf32>
      %c0_12 = arith.constant 0 : index
      %c0_13 = arith.constant 0 : index
      %13 = vector.load %arg4[%c0_12, %c0_13] : memref<1x1024xf32, #tpu.memory_space<vmem>>, vector<1x1024xf32>
      %14 = vector.broadcast %13 : vector<1x1024xf32> to vector<2x1024xf32>
      %15 = arith.addf %12, %14 : vector<2x1024xf32>
      %cst_14 = arith.constant 0.000000e+00 : f32
      %16 = vector.broadcast %cst_14 : f32 to vector<2x1024xf32>
      %17 = arith.cmpf oge, %15, %16 : vector<2x1024xf32>
      %cst_15 = arith.constant 0.00999999977 : f32
      %18 = vector.broadcast %cst_15 : f32 to vector<2x1024xf32>
      %19 = arith.mulf %18, %15 : vector<2x1024xf32>
      %20 = arith.select %17, %15, %19 : vector<2x1024xi1>, vector<2x1024xf32>
      %21 = arith.truncf %20 : vector<2x1024xf32> to vector<2x1024xbf16>
      %c0_16 = arith.constant 0 : index
      %c0_17 = arith.constant 0 : index
      %22 = vector.load %arg5[%c0_16, %c0_17] : memref<1024x128xbf16, #tpu.memory_space<vmem>>, vector<1024x128xbf16>
      %cst_18 = arith.constant dense<0.000000e+00> : vector<2x128xf32>
      %23 = tpu.matmul %21, %22, %cst_18 {dimension_numbers = #tpu.dot_dimension_numbers<[1], [0], [0], [1], [0, 0, 1, 1], [], []>} : vector<2x1024xbf16>, vector<1024x128xbf16>, vector<2x128xf32> -> vector<2x128xf32>
      %c0_19 = arith.constant 0 : index
      %c0_20 = arith.constant 0 : index
      %24 = vector.load %arg6[%c0_19, %c0_20] : memref<1x128xf32, #tpu.memory_space<vmem>>, vector<1x128xf32>
      %25 = vector.broadcast %24 : vector<1x128xf32> to vector<2x128xf32>
      %26 = arith.addf %23, %25 : vector<2x128xf32>
      %cst_21 = arith.constant 0.000000e+00 : f32
      %27 = vector.broadcast %cst_21 : f32 to vector<2x128xf32>
      %28 = arith.cmpf oge, %26, %27 : vector<2x128xf32>
      %cst_22 = arith.constant 0.00999999977 : f32
      %29 = vector.broadcast %cst_22 : f32 to vector<2x128xf32>
      %30 = arith.mulf %29, %26 : vector<2x128xf32>
      %31 = arith.select %28, %26, %30 : vector<2x128xi1>, vector<2x128xf32>
      %c0_23 = arith.constant 0 : index
      %c0_24 = arith.constant 0 : index
      %32 = vector.load %arg7[%c0_23, %c0_24] : memref<128x8xf32, #tpu.memory_space<vmem>>, vector<128x8xf32>
      %cst_25 = arith.constant dense<0.000000e+00> : vector<2x8xf32>
      %33 = tpu.matmul %31, %32, %cst_25 {dimension_numbers = #tpu.dot_dimension_numbers<[1], [0], [0], [1], [0, 0, 1, 1], [], []>} : vector<2x128xf32>, vector<128x8xf32>, vector<2x8xf32> -> vector<2x8xf32>
      %c0_26 = arith.constant 0 : index
      %c0_27 = arith.constant 0 : index
      %34 = vector.load %arg8[%c0_26, %c0_27] : memref<1x8xf32, #tpu.memory_space<vmem>>, vector<1x8xf32>
      %35 = vector.broadcast %34 : vector<1x8xf32> to vector<2x8xf32>
      %36 = arith.addf %33, %35 : vector<2x8xf32>
      %c0_28 = arith.constant 0 : index
      %c0_29 = arith.constant 0 : index
      %37 = vector.load %arg9[%c0_28, %c0_29] : memref<2x8xf32, #tpu.memory_space<vmem>>, vector<2x8xf32>
      tpu.vector_store %arg9[%c0_28, %c0_29], %36 {strides = array<i32>} : memref<2x8xf32, #tpu.memory_space<vmem>>, vector<2x8xf32>,
    } else {
    }
    return
  }
  func.func @transform_0(%arg0: i32, %arg1: i32) -> (i32, i32) {
    %c0_i32 = arith.constant 0 : i32
    return %arg0, %arg1 : i32, i32
  }
  func.func @transform_1(%arg0: i32, %arg1: i32) -> (i32, i32) {
    %c0_i32 = arith.constant 0 : i32
    %c0_i32_0 = arith.constant 0 : i32
    return %arg1, %c0_i32 : i32, i32
  }
  func.func @transform_2(%arg0: i32, %arg1: i32) -> (i32, i32) {
    %c0_i32 = arith.constant 0 : i32
    %c0_i32_0 = arith.constant 0 : i32
    %c0_i32_1 = arith.constant 0 : i32
    return %c0_i32, %c0_i32_0 : i32, i32
  }
  func.func @transform_3(%arg0: i32, %arg1: i32) -> (i32, i32) {
    %c0_i32 = arith.constant 0 : i32
    %c0_i32_0 = arith.constant 0 : i32
    %c0_i32_1 = arith.constant 0 : i32
    return %c0_i32, %c0_i32_0 : i32, i32
  }
  func.func @transform_4(%arg0: i32, %arg1: i32) -> (i32, i32) {
    %c0_i32 = arith.constant 0 : i32
    %c0_i32_0 = arith.constant 0 : i32
    %c0_i32_1 = arith.constant 0 : i32
    return %c0_i32, %c0_i32_0 : i32, i32
  }
  func.func @transform_5(%arg0: i32, %arg1: i32) -> (i32, i32) {
    %c0_i32 = arith.constant 0 : i32
    %c0_i32_0 = arith.constant 0 : i32
    %c0_i32_1 = arith.constant 0 : i32
    return %c0_i32, %c0_i32_0 : i32, i32
  }
  func.func @transform_6(%arg0: i32, %arg1: i32) -> (i32, i32) {
    %c0_i32 = arith.constant 0 : i32
    %c0_i32_0 = arith.constant 0 : i32
    %c0_i32_1 = arith.constant 0 : i32
    return %c0_i32, %c0_i32_0 : i32, i32
  }
  func.func @transform_7(%arg0: i32, %arg1: i32) -> (i32, i32) {
    %c0_i32 = arith.constant 0 : i32
    %c0_i32_0 = arith.constant 0 : i32
    return %arg0, %c0_i32 : i32, i32
  }
}

</mosaic_0001>

<llo_original>
// kernel: cnn_forward.3
$region0: #{cnn_forward.3}
  #allocation0 [shape = 'u32[]', space=smem, size = 0x4, offset = 0x4, fixed_abs, tag = 'smem constant byte address 0x4 - core index']
  #allocation1 [shape = 'u32[72,128]{1,0:T(1,128)}', space=vmem, size = 0x9000, scoped, tag = 'internal scratch']
  #allocation2 [shape = 'f32[2,1024]{1,0:T(2,128)}', space=vmem, size = 0x2000, scoped, tag = 'scratch operand']
  %s0 = inlined_call_operand.vmem [shape: bf16[2,128], index: 0, kind: input, shape index: {}]
  %s1 = inlined_call_operand.vmem [shape: bf16[128,1024], index: 1, kind: input, shape index: {}]
  %s2 = inlined_call_operand.vmem [shape: f32[1,1024], index: 2, kind: input, shape index: {}]
  %s3 = inlined_call_operand.vmem [shape: bf16[1024,128], index: 3, kind: input, shape index: {}]
  %s4 = inlined_call_operand.vmem [shape: f32[1,128], index: 4, kind: input, shape index: {}]
  %s5 = inlined_call_operand.vmem [shape: f32[128,8], index: 5, kind: input, shape index: {}]
  %s6 = inlined_call_operand.vmem [shape: f32[1,8], index: 6, kind: input, shape index: {}]
  %s7 = inlined_call_operand.hbm [shape: f32[2,8], index: 7, kind: output, shape index: {}]
  %s8 = sld [smem:[#allocation0]]
  $region46: #{cnn_forward.3} parent=0
    _
  %s10 = ssub.s32 1, %s8
  %s11 = scalar_select 0, %s10, %s8
  $region1: #{cnn_forward.3} parent=0
    #allocation3 [shape = 'u8[1024]{0}', space=vmem, size = 0x400, scoped, tag = 'output window, operand 0, single buffered']
    #allocation4 [shape = 's32[1]{0}', space=sflag, size = 0x4, scoped, tag = 'scoped memory for cnn_forward.3']
    %12 = vsyncpa [#allocation4], 0
    // Predicated region
    $region2: #{cnn_forward.3} parent=1 // pred_check
      _
    $region3: #{cnn_forward.3} parent=1 // pred_check_branch
      %14 = sbr.rel (0) target = $region5
    $region4: #{cnn_forward.3} parent=1 // pred_region
      _
    $region5: #{cnn_forward.3} parent=1 // pred_fallthru
      _
    // Predicated region
    $region6: #{cnn_forward.3} parent=1 // pred_check
      _
    $region7: #{cnn_forward.3} parent=1 // pred_check_branch
      %16 = sbr.rel (0) target = $region9
    $region8: #{cnn_forward.3} parent=1 // pred_region
      _
    $region9: #{cnn_forward.3} parent=1 // pred_fallthru
      _
    // Predicated region
    $region10: #{cnn_forward.3} parent=1 // pred_check
      _
    $region11: #{cnn_forward.3} parent=1 // pred_check_branch
      %18 = sbr.rel (0) target = $region13
    $region12: #{cnn_forward.3} parent=1 // pred_region
      _
    $region13: #{cnn_forward.3} parent=1 // pred_fallthru
      _
    // Predicated region
    $region14: #{cnn_forward.3} parent=1 // pred_check
      _
    $region15: #{cnn_forward.3} parent=1 // pred_check_branch
      %20 = sbr.rel (0) target = $region17
    $region16: #{cnn_forward.3} parent=1 // pred_region
      _
    $region17: #{cnn_forward.3} parent=1 // pred_fallthru
      _
    // Predicated region
    $region18: #{cnn_forward.3} parent=1 // pred_check
      _
    $region19: #{cnn_forward.3} parent=1 // pred_check_branch
      %22 = sbr.rel (0) target = $region21
    $region20: #{cnn_forward.3} parent=1 // pred_region
      _
    $region21: #{cnn_forward.3} parent=1 // pred_fallthru
      _
    // Predicated region
    $region22: #{cnn_forward.3} parent=1 // pred_check
      _
    $region23: #{cnn_forward.3} parent=1 // pred_check_branch
      %24 = sbr.rel (0) target = $region25
    $region24: #{cnn_forward.3} parent=1 // pred_region
      _
    $region25: #{cnn_forward.3} parent=1 // pred_fallthru
      _
    // Predicated region
    $region26: #{cnn_forward.3} parent=1 // pred_check
      _
    $region27: #{cnn_forward.3} parent=1 // pred_check_branch
      %26 = sbr.rel (0) target = $region29
    $region28: #{cnn_forward.3} parent=1 // pred_region
      _
    $region29: #{cnn_forward.3} parent=1 // pred_fallthru
      _
    %p27 = scmp.eq.s32.totalorder 0, 0
    // Predicated region
    $region30: #{cnn_forward.3} parent=1 // pred_check
      %p28 = pneg %p27
    $region31: #{cnn_forward.3} parent=1 // pred_check_branch
      %30 = sbr.rel (%p28) target = $region33
    $region32: #{cnn_forward.3} parent=1 // pred_region
      %31 = vst [vmem:[#allocation2] sm:$0xff] 0.0
      %32 = vst [vmem:[#allocation2 + $0x8] sm:$0xff] 0.0
    $region33: #{cnn_forward.3} parent=1 // pred_fallthru
      _
    %v33 = vld [vmem:[#allocation2] sm:$0xff]
    %v34 = vld [vmem:[#allocation2 + $0x8] sm:$0xff]
    %v35 = vld [vmem:[%s0] sm:$0x1]
    %v36 = vld [vmem:[%s1] sm:$0xff]
    %v37 = vld [vmem:[%s1 + $0x8] sm:$0xff]
    %v38 = vld [vmem:[%s1 + $0x10] sm:$0xff]
    %v39 = vld [vmem:[%s1 + $0x18] sm:$0xff]
    %v40 = vld [vmem:[%s1 + $0x20] sm:$0xff]
    %v41 = vld [vmem:[%s1 + $0x28] sm:$0xff]
    %v42 = vld [vmem:[%s1 + $0x30] sm:$0xff]
    %v43 = vld [vmem:[%s1 + $0x38] sm:$0xff]
    %v44 = vld [vmem:[%s1 + $0x40] sm:$0xff]
    %v45 = vld [vmem:[%s1 + $0x48] sm:$0xff]
    %v46 = vld [vmem:[%s1 + $0x50] sm:$0xff]
    %v47 = vld [vmem:[%s1 + $0x58] sm:$0xff]
    %v48 = vld [vmem:[%s1 + $0x60] sm:$0xff]
    %v49 = vld [vmem:[%s1 + $0x68] sm:$0xff]
    %v50 = vld [vmem:[%s1 + $0x70] sm:$0xff]
    %v51 = vld [vmem:[%s1 + $0x78] sm:$0xff]
    %v52 = vld [vmem:[%s1 + $0x80] sm:$0xff]
    %v53 = vld [vmem:[%s1 + $0x88] sm:$0xff]
    %v54 = vld [vmem:[%s1 + $0x90] sm:$0xff]
    %v55 = vld [vmem:[%s1 + $0x98] sm:$0xff]
    %v56 = vld [vmem:[%s1 + $0xa0] sm:$0xff]
    %v57 = vld [vmem:[%s1 + $0xa8] sm:$0xff]
    %v58 = vld [vmem:[%s1 + $0xb0] sm:$0xff]
    %v59 = vld [vmem:[%s1 + $0xb8] sm:$0xff]
    %v60 = vld [vmem:[%s1 + $0xc0] sm:$0xff]
    %v61 = vld [vmem:[%s1 + $0xc8] sm:$0xff]
    %v62 = vld [vmem:[%s1 + $0xd0] sm:$0xff]
    %v63 = vld [vmem:[%s1 + $0xd8] sm:$0xff]
    %v64 = vld [vmem:[%s1 + $0xe0] sm:$0xff]
    %v65 = vld [vmem:[%s1 + $0xe8] sm:$0xff]
    %v66 = vld [vmem:[%s1 + $0xf0] sm:$0xff]
    %v67 = vld [vmem:[%s1 + $0xf8] sm:$0xff]
    %v68 = vld [vmem:[%s1 + $0x100] sm:$0xff]
    %v69 = vld [vmem:[%s1 + $0x108] sm:$0xff]
    %v70 = vld [vmem:[%s1 + $0x110] sm:$0xff]
    %v71 = vld [vmem:[%s1 + $0x118] sm:$0xff]
    %v72 = vld [vmem:[%s1 + $0x120] sm:$0xff]
    %v73 = vld [vmem:[%s1 + $0x128] sm:$0xff]
    %v74 = vld [vmem:[%s1 + $0x130] sm:$0xff]
    %v75 = vld [vmem:[%s1 + $0x138] sm:$0xff]
    %v76 = vld [vmem:[%s1 + $0x140] sm:$0xff]
    %v77 = vld [vmem:[%s1 + $0x148] sm:$0xff]
    %v78 = vld [vmem:[%s1 + $0x150] sm:$0xff]
    %v79 = vld [vmem:[%s1 + $0x158] sm:$0xff]
    %v80 = vld [vmem:[%s1 + $0x160] sm:$0xff]
    %v81 = vld [vmem:[%s1 + $0x168] sm:$0xff]
    %v82 = vld [vmem:[%s1 + $0x170] sm:$0xff]
    %v83 = vld [vmem:[%s1 + $0x178] sm:$0xff]
    %v84 = vld [vmem:[%s1 + $0x180] sm:$0xff]
    %v85 = vld [vmem:[%s1 + $0x188] sm:$0xff]
    %v86 = vld [vmem:[%s1 + $0x190] sm:$0xff]
    %v87 = vld [vmem:[%s1 + $0x198] sm:$0xff]
    %v88 = vld [vmem:[%s1 + $0x1a0] sm:$0xff]
    %v89 = vld [vmem:[%s1 + $0x1a8] sm:$0xff]
    %v90 = vld [vmem:[%s1 + $0x1b0] sm:$0xff]
    %v91 = vld [vmem:[%s1 + $0x1b8] sm:$0xff]
    %v92 = vld [vmem:[%s1 + $0x1c0] sm:$0xff]
    %v93 = vld [vmem:[%s1 + $0x1c8] sm:$0xff]
    %v94 = vld [vmem:[%s1 + $0x1d0] sm:$0xff]
    %v95 = vld [vmem:[%s1 + $0x1d8] sm:$0xff]
    %v96 = vld [vmem:[%s1 + $0x1e0] sm:$0xff]
    %v97 = vld [vmem:[%s1 + $0x1e8] sm:$0xff]
    %v98 = vld [vmem:[%s1 + $0x1f0] sm:$0xff]
    %v99 = vld [vmem:[%s1 + $0x1f8] sm:$0xff]
    %v164 = vunpack.c.l.b16 %v36
    %v165 = vunpack.c.h.b16 %v36
    %v166 = vunpack.c.l.b16 %v37
    %v167 = vunpack.c.h.b16 %v37
    %v168 = vunpack.c.l.b16 %v38
    %v169 = vunpack.c.h.b16 %v38
    %v170 = vunpack.c.l.b16 %v39
    %v171 = vunpack.c.h.b16 %v39
    %v172 = vunpack.c.l.b16 %v40
    %v173 = vunpack.c.h.b16 %v40
    %v174 = vunpack.c.l.b16 %v41
    %v175 = vunpack.c.h.b16 %v41
    %v176 = vunpack.c.l.b16 %v42
    %v177 = vunpack.c.h.b16 %v42
    %v178 = vunpack.c.l.b16 %v43
    %v179 = vunpack.c.h.b16 %v43
    %v180 = vunpack.c.l.b16 %v44
    %v181 = vunpack.c.h.b16 %v44
    %v182 = vunpack.c.l.b16 %v45
    %v183 = vunpack.c.h.b16 %v45
    %v184 = vunpack.c.l.b16 %v46
    %v185 = vunpack.c.h.b16 %v46
    %v186 = vunpack.c.l.b16 %v47
    %v187 = vunpack.c.h.b16 %v47
    %v188 = vunpack.c.l.b16 %v48
    %v189 = vunpack.c.h.b16 %v48
    %v190 = vunpack.c.l.b16 %v49
    %v191 = vunpack.c.h.b16 %v49
    %v192 = vunpack.c.l.b16 %v50
    %v193 = vunpack.c.h.b16 %v50
    %v194 = vunpack.c.l.b16 %v51
    %v195 = vunpack.c.h.b16 %v51
    %v196 = vunpack.c.l.b16 %v52
    %v197 = vunpack.c.h.b16 %v52
    %v198 = vunpack.c.l.b16 %v53
    %v199 = vunpack.c.h.b16 %v53
    %v200 = vunpack.c.l.b16 %v54
    %v201 = vunpack.c.h.b16 %v54
    %v202 = vunpack.c.l.b16 %v55
    %v203 = vunpack.c.h.b16 %v55
    %v204 = vunpack.c.l.b16 %v56
    %v205 = vunpack.c.h.b16 %v56
    %v206 = vunpack.c.l.b16 %v57
    %v207 = vunpack.c.h.b16 %v57
    %v208 = vunpack.c.l.b16 %v58
    %v209 = vunpack.c.h.b16 %v58
    %v210 = vunpack.c.l.b16 %v59
    %v211 = vunpack.c.h.b16 %v59
    %v212 = vunpack.c.l.b16 %v60
    %v213 = vunpack.c.h.b16 %v60
    %v214 = vunpack.c.l.b16 %v61
    %v215 = vunpack.c.h.b16 %v61
    %v216 = vunpack.c.l.b16 %v62
    %v217 = vunpack.c.h.b16 %v62
    %v218 = vunpack.c.l.b16 %v63
    %v219 = vunpack.c.h.b16 %v63
    %v220 = vunpack.c.l.b16 %v64
    %v221 = vunpack.c.h.b16 %v64
    %v222 = vunpack.c.l.b16 %v65
    %v223 = vunpack.c.h.b16 %v65
    %v224 = vunpack.c.l.b16 %v66
    %v225 = vunpack.c.h.b16 %v66
    %v226 = vunpack.c.l.b16 %v67
    %v227 = vunpack.c.h.b16 %v67
    %v228 = vunpack.c.l.b16 %v68
    %v229 = vunpack.c.h.b16 %v68
    %v230 = vunpack.c.l.b16 %v69
    %v231 = vunpack.c.h.b16 %v69
    %v232 = vunpack.c.l.b16 %v70
    %v233 = vunpack.c.h.b16 %v70
    %v234 = vunpack.c.l.b16 %v71
    %v235 = vunpack.c.h.b16 %v71
    %v236 = vunpack.c.l.b16 %v72
    %v237 = vunpack.c.h.b16 %v72
    %v238 = vunpack.c.l.b16 %v73
    %v239 = vunpack.c.h.b16 %v73
    %v240 = vunpack.c.l.b16 %v74
    %v241 = vunpack.c.h.b16 %v74
    %v242 = vunpack.c.l.b16 %v75
    %v243 = vunpack.c.h.b16 %v75
    %v244 = vunpack.c.l.b16 %v76
    %v245 = vunpack.c.h.b16 %v76
    %v246 = vunpack.c.l.b16 %v77
    %v247 = vunpack.c.h.b16 %v77
    %v248 = vunpack.c.l.b16 %v78
    %v249 = vunpack.c.h.b16 %v78
    %v250 = vunpack.c.l.b16 %v79
    %v251 = vunpack.c.h.b16 %v79
    %v252 = vunpack.c.l.b16 %v80
    %v253 = vunpack.c.h.b16 %v80
    %v254 = vunpack.c.l.b16 %v81
    %v255 = vunpack.c.h.b16 %v81
    %v256 = vunpack.c.l.b16 %v82
    %v257 = vunpack.c.h.b16 %v82
    %v258 = vunpack.c.l.b16 %v83
    %v259 = vunpack.c.h.b16 %v83
    %v260 = vunpack.c.l.b16 %v84
    %v261 = vunpack.c.h.b16 %v84
    %v262 = vunpack.c.l.b16 %v85
    %v263 = vunpack.c.h.b16 %v85
    %v264 = vunpack.c.l.b16 %v86
    %v265 = vunpack.c.h.b16 %v86
    %v266 = vunpack.c.l.b16 %v87
    %v267 = vunpack.c.h.b16 %v87
    %v268 = vunpack.c.l.b16 %v88
    %v269 = vunpack.c.h.b16 %v88
    %v270 = vunpack.c.l.b16 %v89
    %v271 = vunpack.c.h.b16 %v89
    %v272 = vunpack.c.l.b16 %v90
    %v273 = vunpack.c.h.b16 %v90
    %v274 = vunpack.c.l.b16 %v91
    %v275 = vunpack.c.h.b16 %v91
    %v276 = vunpack.c.l.b16 %v92
    %v277 = vunpack.c.h.b16 %v92
    %v278 = vunpack.c.l.b16 %v93
    %v279 = vunpack.c.h.b16 %v93
    %v280 = vunpack.c.l.b16 %v94
    %v281 = vunpack.c.h.b16 %v94
    %v282 = vunpack.c.l.b16 %v95
    %v283 = vunpack.c.h.b16 %v95
    %v284 = vunpack.c.l.b16 %v96
    %v285 = vunpack.c.h.b16 %v96
    %v286 = vunpack.c.l.b16 %v97
    %v287 = vunpack.c.h.b16 %v97
    %v288 = vunpack.c.l.b16 %v98
    %v289 = vunpack.c.h.b16 %v98
    %v290 = vunpack.c.l.b16 %v99
    %v291 = vunpack.c.h.b16 %v99
    %v292 = vpack.c.b16 %v172, %v164
    %v293 = vpack.c.b16 %v173, %v165
    %v294 = vpack.c.b16 %v174, %v166
    %v295 = vpack.c.b16 %v175, %v167
    %v296 = vpack.c.b16 %v176, %v168
    %v297 = vpack.c.b16 %v177, %v169
    %v298 = vpack.c.b16 %v178, %v170
    %v299 = vpack.c.b16 %v179, %v171
    %v300 = vpack.c.b16 %v188, %v180
    %v301 = vpack.c.b16 %v189, %v181
    %v302 = vpack.c.b16 %v190, %v182
    %v303 = vpack.c.b16 %v191, %v183
    %v304 = vpack.c.b16 %v192, %v184
    %v305 = vpack.c.b16 %v193, %v185
    %v306 = vpack.c.b16 %v194, %v186
    %v307 = vpack.c.b16 %v195, %v187
    %v308 = vpack.c.b16 %v204, %v196
    %v309 = vpack.c.b16 %v205, %v197
    %v310 = vpack.c.b16 %v206, %v198
    %v311 = vpack.c.b16 %v207, %v199
    %v312 = vpack.c.b16 %v208, %v200
    %v313 = vpack.c.b16 %v209, %v201
    %v314 = vpack.c.b16 %v210, %v202
    %v315 = vpack.c.b16 %v211, %v203
    %v316 = vpack.c.b16 %v220, %v212
    %v317 = vpack.c.b16 %v221, %v213
    %v318 = vpack.c.b16 %v222, %v214
    %v319 = vpack.c.b16 %v223, %v215
    %v320 = vpack.c.b16 %v224, %v216
    %v321 = vpack.c.b16 %v225, %v217
    %v322 = vpack.c.b16 %v226, %v218
    %v323 = vpack.c.b16 %v227, %v219
    %v324 = vpack.c.b16 %v236, %v228
    %v325 = vpack.c.b16 %v237, %v229
    %v326 = vpack.c.b16 %v238, %v230
    %v327 = vpack.c.b16 %v239, %v231
    %v328 = vpack.c.b16 %v240, %v232
    %v329 = vpack.c.b16 %v241, %v233
    %v330 = vpack.c.b16 %v242, %v234
    %v331 = vpack.c.b16 %v243, %v235
    %v332 = vpack.c.b16 %v252, %v244
    %v333 = vpack.c.b16 %v253, %v245
    %v334 = vpack.c.b16 %v254, %v246
    %v335 = vpack.c.b16 %v255, %v247
    %v336 = vpack.c.b16 %v256, %v248
    %v337 = vpack.c.b16 %v257, %v249
    %v338 = vpack.c.b16 %v258, %v250
    %v339 = vpack.c.b16 %v259, %v251
    %v340 = vpack.c.b16 %v268, %v260
    %v341 = vpack.c.b16 %v269, %v261
    %v342 = vpack.c.b16 %v270, %v262
    %v343 = vpack.c.b16 %v271, %v263
    %v344 = vpack.c.b16 %v272, %v264
    %v345 = vpack.c.b16 %v273, %v265
    %v346 = vpack.c.b16 %v274, %v266
    %v347 = vpack.c.b16 %v275, %v267
    %v348 = vpack.c.b16 %v284, %v276
    %v349 = vpack.c.b16 %v285, %v277
    %v350 = vpack.c.b16 %v286, %v278
    %v351 = vpack.c.b16 %v287, %v279
    %v352 = vpack.c.b16 %v288, %v280
    %v353 = vpack.c.b16 %v289, %v281
    %v354 = vpack.c.b16 %v290, %v282
    %v355 = vpack.c.b16 %v291, %v283
    %420 = vmatpush.bf16.msra.mxu0 %v348
    %421 = vmatpush.bf16.msra.mxu0 %v340
    %422 = vmatpush.bf16.msra.mxu0 %v332
    %423 = vmatpush.bf16.msra.mxu0 %v324
    %424 = vmatpush.bf16.msra.mxu0 %v316
    %425 = vmatpush.bf16.msra.mxu0 %v308
    %426 = vmatpush.bf16.msra.mxu0 %v300
    %427 = vmatpush.bf16.msra.mxu0 %v292
    %428 = vmatmul.bf16.gmra.mxu0 %v35
    %v429 = vpop.f32.mrf.mxu0
    %v430 = vadd.f32 0.0, %v429
    %v431 = vpop.f32.mrf.mxu0
    %432 = vdwg.mxu0
    %433 = vmatpush.bf16.msra.mxu0 %v349
    %434 = vmatpush.bf16.msra.mxu0 %v341
    %435 = vmatpush.bf16.msra.mxu0 %v333
    %436 = vmatpush.bf16.msra.mxu0 %v325
    %437 = vmatpush.bf16.msra.mxu0 %v317
    %438 = vmatpush.bf16.msra.mxu0 %v309
    %439 = vmatpush.bf16.msra.mxu0 %v301
    %440 = vmatpush.bf16.msra.mxu0 %v293
    %441 = vmatmul.bf16.gmra.mxu0 %v35
    %v442 = vpop.f32.mrf.mxu0
    %v443 = vadd.f32 0.0, %v442
    %v444 = vpop.f32.mrf.mxu0
    %445 = vdwg.mxu0
    %446 = vmatpush.bf16.msra.mxu0 %v350
    %447 = vmatpush.bf16.msra.mxu0 %v342
    %448 = vmatpush.bf16.msra.mxu0 %v334
    %449 = vmatpush.bf16.msra.mxu0 %v326
    %450 = vmatpush.bf16.msra.mxu0 %v318
    %451 = vmatpush.bf16.msra.mxu0 %v310
    %452 = vmatpush.bf16.msra.mxu0 %v302
    %453 = vmatpush.bf16.msra.mxu0 %v294
    %454 = vmatmul.bf16.gmra.mxu0 %v35
    %v455 = vpop.f32.mrf.mxu0
    %v456 = vadd.f32 0.0, %v455
    %v457 = vpop.f32.mrf.mxu0
    %458 = vdwg.mxu0
    %459 = vmatpush.bf16.msra.mxu0 %v351
    %460 = vmatpush.bf16.msra.mxu0 %v343
    %461 = vmatpush.bf16.msra.mxu0 %v335
    %462 = vmatpush.bf16.msra.mxu0 %v327
    %463 = vmatpush.bf16.msra.mxu0 %v319
    %464 = vmatpush.bf16.msra.mxu0 %v311
    %465 = vmatpush.bf16.msra.mxu0 %v303
    %466 = vmatpush.bf16.msra.mxu0 %v295
    %467 = vmatmul.bf16.gmra.mxu0 %v35
    %v468 = vpop.f32.mrf.mxu0
    %v469 = vadd.f32 0.0, %v468
    %v470 = vpop.f32.mrf.mxu0
    %471 = vdwg.mxu0
    %472 = vmatpush.bf16.msra.mxu0 %v352
    %473 = vmatpush.bf16.msra.mxu0 %v344
    %474 = vmatpush.bf16.msra.mxu0 %v336
    %475 = vmatpush.bf16.msra.mxu0 %v328
    %476 = vmatpush.bf16.msra.mxu0 %v320
    %477 = vmatpush.bf16.msra.mxu0 %v312
    %478 = vmatpush.bf16.msra.mxu0 %v304
    %479 = vmatpush.bf16.msra.mxu0 %v296
    %480 = vmatmul.bf16.gmra.mxu0 %v35
    %v481 = vpop.f32.mrf.mxu0
    %v482 = vadd.f32 0.0, %v481
    %v483 = vpop.f32.mrf.mxu0
    %484 = vdwg.mxu0
    %485 = vmatpush.bf16.msra.mxu0 %v353
    %486 = vmatpush.bf16.msra.mxu0 %v345
    %487 = vmatpush.bf16.msra.mxu0 %v337
    %488 = vmatpush.bf16.msra.mxu0 %v329
    %489 = vmatpush.bf16.msra.mxu0 %v321
    %490 = vmatpush.bf16.msra.mxu0 %v313
    %491 = vmatpush.bf16.msra.mxu0 %v305
    %492 = vmatpush.bf16.msra.mxu0 %v297
    %493 = vmatmul.bf16.gmra.mxu0 %v35
    %v494 = vpop.f32.mrf.mxu0
    %v495 = vadd.f32 0.0, %v494
    %v496 = vpop.f32.mrf.mxu0
    %497 = vdwg.mxu0
    %498 = vmatpush.bf16.msra.mxu0 %v354
    %499 = vmatpush.bf16.msra.mxu0 %v346
    %500 = vmatpush.bf16.msra.mxu0 %v338
    %501 = vmatpush.bf16.msra.mxu0 %v330
    %502 = vmatpush.bf16.msra.mxu0 %v322
    %503 = vmatpush.bf16.msra.mxu0 %v314
    %504 = vmatpush.bf16.msra.mxu0 %v306
    %505 = vmatpush.bf16.msra.mxu0 %v298
    %506 = vmatmul.bf16.gmra.mxu0 %v35
    %v507 = vpop.f32.mrf.mxu0
    %v508 = vadd.f32 0.0, %v507
    %v509 = vpop.f32.mrf.mxu0
    %510 = vdwg.mxu0
    %511 = vmatpush.bf16.msra.mxu0 %v355
    %512 = vmatpush.bf16.msra.mxu0 %v347
    %513 = vmatpush.bf16.msra.mxu0 %v339
    %514 = vmatpush.bf16.msra.mxu0 %v331
    %515 = vmatpush.bf16.msra.mxu0 %v323
    %516 = vmatpush.bf16.msra.mxu0 %v315
    %517 = vmatpush.bf16.msra.mxu0 %v307
    %518 = vmatpush.bf16.msra.mxu0 %v299
    %519 = vmatmul.bf16.gmra.mxu0 %v35
    %v520 = vpop.f32.mrf.mxu0
    %v521 = vadd.f32 0.0, %v520
    %v522 = vpop.f32.mrf.mxu0
    %523 = vdwg.mxu0
    %v532 = vrot.slane %v443, 6
    %v533 = vrot.slane %v456, 4
    %v534 = vrot.slane %v469, 2
    %v535 = vrot.slane %v495, 6
    %v536 = vrot.slane %v508, 4
    %v537 = vrot.slane %v521, 2
    %vm538 = vcmask 1041408
    %v539 = vsel %vm538, %v430, %v532
    %vm540 = vcmask 1045508
    %v541 = vsel %vm540, %v533, %v534
    %vm542 = vcmask 1043456
    %v543 = vsel %vm542, %v539, %v541
    %v544 = vsel %vm538, %v482, %v535
    %v545 = vsel %vm540, %v536, %v537
    %v546 = vsel %vm542, %v544, %v545
    %v549 = vadd.f32 %v33, %v543
    %v550 = vadd.f32 %v34, %v546
    %551 = vst [vmem:[#allocation2] sm:$0xff] %v549
    %552 = vst [vmem:[#allocation2 + $0x8] sm:$0xff] %v550
    // Predicated region
    $region34: #{cnn_forward.3} parent=1 // pred_check
      %p553 = pneg %p27
    $region35: #{cnn_forward.3} parent=1 // pred_check_branch
      %555 = sbr.rel (%p553) target = $region37
    $region36: #{cnn_forward.3} parent=1 // pred_region
      %v556 = vld [vmem:[#allocation2] sm:$0xff]
      %v557 = vld [vmem:[#allocation2 + $0x8] sm:$0xff]
      %v558 = vld [vmem:[%s2] sm:$0xff]
      %v560 = vperm.slane %v558, 0
      %v561 = vperm.slane %v558, 1
      %v562 = vperm.slane %v558, 2
      %v563 = vperm.slane %v558, 3
      %v564 = vperm.slane %v558, 4
      %v565 = vperm.slane %v558, 5
      %v566 = vperm.slane %v558, 6
      %v567 = vperm.slane %v558, 7
      %v568 = vrot.slane %v561, 6
      %v569 = vrot.slane %v562, 4
      %v570 = vrot.slane %v563, 2
      %v571 = vrot.slane %v565, 6
      %v572 = vrot.slane %v566, 4
      %v573 = vrot.slane %v567, 2
      %v574 = vsel %vm538, %v560, %v568
      %v575 = vsel %vm540, %v569, %v570
      %v576 = vsel %vm542, %v574, %v575
      %v577 = vsel %vm538, %v564, %v571
      %v578 = vsel %vm540, %v572, %v573
      %v579 = vsel %vm542, %v577, %v578
      %v582 = vadd.f32 %v556, %v576
      %v583 = vadd.f32 %v557, %v579
      %vm584 = vcmp.ge.f32.partialorder %v582, 0.0
      %vm585 = vcmp.ge.f32.partialorder %v583, 0.0
      %v586 = vmul.f32 %v582, 0.01
      %v587 = vmul.f32 %v583, 0.01
      %v588 = vsel %vm584, %v582, %v586
      %v589 = vsel %vm585, %v583, %v587
      %592 = vst [vmem:[#allocation1] ss:$4 sm:$0xff] %v588
      %s593 = scalar_lea.vmem [#allocation1], 32
      %594 = vst [vmem:[%s593] ss:$4 sm:$0xff] %v589
      %v595 = vld.sshfl [vmem:[#allocation1] sm:$0xff pattern:$0x73625140]
      %v596 = vld.sshfl [vmem:[#allocation1 + $0x8] sm:$0xff pattern:$0x73625140]
      %v597 = vld.sshfl [vmem:[#allocation1 + $0x10] sm:$0xff pattern:$0x73625140]
      %v598 = vld.sshfl [vmem:[#allocation1 + $0x18] sm:$0xff pattern:$0x73625140]
      %v599 = vld.sshfl [vmem:[#allocation1 + $0x20] sm:$0xff pattern:$0x73625140]
      %v600 = vld.sshfl [vmem:[#allocation1 + $0x28] sm:$0xff pattern:$0x73625140]
      %v601 = vld.sshfl [vmem:[#allocation1 + $0x30] sm:$0xff pattern:$0x73625140]
      %v602 = vld.sshfl [vmem:[#allocation1 + $0x38] sm:$0xff pattern:$0x73625140]
      %v611 = vpack.c.bf16 %v595, %v595
      %v612 = vpack.c.bf16 %v596, %v596
      %v613 = vpack.c.bf16 %v597, %v597
      %v614 = vpack.c.bf16 %v598, %v598
      %v615 = vpack.c.bf16 %v599, %v599
      %v616 = vpack.c.bf16 %v600, %v600
      %v617 = vpack.c.bf16 %v601, %v601
      %v618 = vpack.c.bf16 %v602, %v602
      %v619 = vld [vmem:[%s3] sm:$0xf]
      %v620 = vld [vmem:[%s3 + $0x4] sm:$0xf]
      %v621 = vld [vmem:[%s3 + $0x8] sm:$0xf]
      %v622 = vld [vmem:[%s3 + $0xc] sm:$0xf]
      %v623 = vld [vmem:[%s3 + $0x10] sm:$0xf]
      %v624 = vld [vmem:[%s3 + $0x14] sm:$0xf]
      %v625 = vld [vmem:[%s3 + $0x18] sm:$0xf]
      %v626 = vld [vmem:[%s3 + $0x1c] sm:$0xf]
      %v627 = vld [vmem:[%s3 + $0x20] sm:$0xf]
      %v628 = vld [vmem:[%s3 + $0x24] sm:$0xf]
      %v629 = vld [vmem:[%s3 + $0x28] sm:$0xf]
      %v630 = vld [vmem:[%s3 + $0x2c] sm:$0xf]
      %v631 = vld [vmem:[%s3 + $0x30] sm:$0xf]
      %v632 = vld [vmem:[%s3 + $0x34] sm:$0xf]
      %v633 = vld [vmem:[%s3 + $0x38] sm:$0xf]
      %v634 = vld [vmem:[%s3 + $0x3c] sm:$0xf]
      %v635 = vld [vmem:[%s3 + $0x40] sm:$0xf]
      %v636 = vld [vmem:[%s3 + $0x44] sm:$0xf]
      %v637 = vld [vmem:[%s3 + $0x48] sm:$0xf]
      %v638 = vld [vmem:[%s3 + $0x4c] sm:$0xf]
      %v639 = vld [vmem:[%s3 + $0x50] sm:$0xf]
      %v640 = vld [vmem:[%s3 + $0x54] sm:$0xf]
      %v641 = vld [vmem:[%s3 + $0x58] sm:$0xf]
      %v642 = vld [vmem:[%s3 + $0x5c] sm:$0xf]
      %v643 = vld [vmem:[%s3 + $0x60] sm:$0xf]
      %v644 = vld [vmem:[%s3 + $0x64] sm:$0xf]
      %v645 = vld [vmem:[%s3 + $0x68] sm:$0xf]
      %v646 = vld [vmem:[%s3 + $0x6c] sm:$0xf]
      %v647 = vld [vmem:[%s3 + $0x70] sm:$0xf]
      %v648 = vld [vmem:[%s3 + $0x74] sm:$0xf]
      %v649 = vld [vmem:[%s3 + $0x78] sm:$0xf]
      %v650 = vld [vmem:[%s3 + $0x7c] sm:$0xf]
      %v651 = vld [vmem:[%s3 + $0x80] sm:$0xf]
      %v652 = vld [vmem:[%s3 + $0x84] sm:$0xf]
      %v653 = vld [vmem:[%s3 + $0x88] sm:$0xf]
      %v654 = vld [vmem:[%s3 + $0x8c] sm:$0xf]
      %v655 = vld [vmem:[%s3 + $0x90] sm:$0xf]
      %v656 = vld [vmem:[%s3 + $0x94] sm:$0xf]
      %v657 = vld [vmem:[%s3 + $0x98] sm:$0xf]
      %v658 = vld [vmem:[%s3 + $0x9c] sm:$0xf]
      %v659 = vld [vmem:[%s3 + $0xa0] sm:$0xf]
      %v660 = vld [vmem:[%s3 + $0xa4] sm:$0xf]
      %v661 = vld [vmem:[%s3 + $0xa8] sm:$0xf]
      %v662 = vld [vmem:[%s3 + $0xac] sm:$0xf]
      %v663 = vld [vmem:[%s3 + $0xb0] sm:$0xf]
      %v664 = vld [vmem:[%s3 + $0xb4] sm:$0xf]
      %v665 = vld [vmem:[%s3 + $0xb8] sm:$0xf]
      %v666 = vld [vmem:[%s3 + $0xbc] sm:$0xf]
      %v667 = vld [vmem:[%s3 + $0xc0] sm:$0xf]
      %v668 = vld [vmem:[%s3 + $0xc4] sm:$0xf]
      %v669 = vld [vmem:[%s3 + $0xc8] sm:$0xf]
      %v670 = vld [vmem:[%s3 + $0xcc] sm:$0xf]
      %v671 = vld [vmem:[%s3 + $0xd0] sm:$0xf]
      %v672 = vld [vmem:[%s3 + $0xd4] sm:$0xf]
      %v673 = vld [vmem:[%s3 + $0xd8] sm:$0xf]
      %v674 = vld [vmem:[%s3 + $0xdc] sm:$0xf]
      %v675 = vld [vmem:[%s3 + $0xe0] sm:$0xf]
      %v676 = vld [vmem:[%s3 + $0xe4] sm:$0xf]
      %v677 = vld [vmem:[%s3 + $0xe8] sm:$0xf]
      %v678 = vld [vmem:[%s3 + $0xec] sm:$0xf]
      %v679 = vld [vmem:[%s3 + $0xf0] sm:$0xf]
      %v680 = vld [vmem:[%s3 + $0xf4] sm:$0xf]
      %v681 = vld [vmem:[%s3 + $0xf8] sm:$0xf]
      %v682 = vld [vmem:[%s3 + $0xfc] sm:$0xf]
      %v683 = vld [vmem:[%s3 + $0x100] sm:$0xf]
      %v684 = vld [vmem:[%s3 + $0x104] sm:$0xf]
      %v685 = vld [vmem:[%s3 + $0x108] sm:$0xf]
      %v686 = vld [vmem:[%s3 + $0x10c] sm:$0xf]
      %v687 = vld [vmem:[%s3 + $0x110] sm:$0xf]
      %v688 = vld [vmem:[%s3 + $0x114] sm:$0xf]
      %v689 = vld [vmem:[%s3 + $0x118] sm:$0xf]
      %v690 = vld [vmem:[%s3 + $0x11c] sm:$0xf]
      %v691 = vld [vmem:[%s3 + $0x120] sm:$0xf]
      %v692 = vld [vmem:[%s3 + $0x124] sm:$0xf]
      %v693 = vld [vmem:[%s3 + $0x128] sm:$0xf]
      %v694 = vld [vmem:[%s3 + $0x12c] sm:$0xf]
      %v695 = vld [vmem:[%s3 + $0x130] sm:$0xf]
      %v696 = vld [vmem:[%s3 + $0x134] sm:$0xf]
      %v697 = vld [vmem:[%s3 + $0x138] sm:$0xf]
      %v698 = vld [vmem:[%s3 + $0x13c] sm:$0xf]
      %v699 = vld [vmem:[%s3 + $0x140] sm:$0xf]
      %v700 = vld [vmem:[%s3 + $0x144] sm:$0xf]
      %v701 = vld [vmem:[%s3 + $0x148] sm:$0xf]
      %v702 = vld [vmem:[%s3 + $0x14c] sm:$0xf]
      %v703 = vld [vmem:[%s3 + $0x150] sm:$0xf]
      %v704 = vld [vmem:[%s3 + $0x154] sm:$0xf]
      %v705 = vld [vmem:[%s3 + $0x158] sm:$0xf]
      %v706 = vld [vmem:[%s3 + $0x15c] sm:$0xf]
      %v707 = vld [vmem:[%s3 + $0x160] sm:$0xf]
      %v708 = vld [vmem:[%s3 + $0x164] sm:$0xf]
      %v709 = vld [vmem:[%s3 + $0x168] sm:$0xf]
      %v710 = vld [vmem:[%s3 + $0x16c] sm:$0xf]
      %v711 = vld [vmem:[%s3 + $0x170] sm:$0xf]
      %v712 = vld [vmem:[%s3 + $0x174] sm:$0xf]
      %v713 = vld [vmem:[%s3 + $0x178] sm:$0xf]
      %v714 = vld [vmem:[%s3 + $0x17c] sm:$0xf]
      %v715 = vld [vmem:[%s3 + $0x180] sm:$0xf]
      %v716 = vld [vmem:[%s3 + $0x184] sm:$0xf]
      %v717 = vld [vmem:[%s3 + $0x188] sm:$0xf]
      %v718 = vld [vmem:[%s3 + $0x18c] sm:$0xf]
      %v719 = vld [vmem:[%s3 + $0x190] sm:$0xf]
      %v720 = vld [vmem:[%s3 + $0x194] sm:$0xf]
      %v721 = vld [vmem:[%s3 + $0x198] sm:$0xf]
      %v722 = vld [vmem:[%s3 + $0x19c] sm:$0xf]
      %v723 = vld [vmem:[%s3 + $0x1a0] sm:$0xf]
      %v724 = vld [vmem:[%s3 + $0x1a4] sm:$0xf]
      %v725 = vld [vmem:[%s3 + $0x1a8] sm:$0xf]
      %v726 = vld [vmem:[%s3 + $0x1ac] sm:$0xf]
      %v727 = vld [vmem:[%s3 + $0x1b0] sm:$0xf]
      %v728 = vld [vmem:[%s3 + $0x1b4] sm:$0xf]
      %v729 = vld [vmem:[%s3 + $0x1b8] sm:$0xf]
      %v730 = vld [vmem:[%s3 + $0x1bc] sm:$0xf]
      %v731 = vld [vmem:[%s3 + $0x1c0] sm:$0xf]
      %v732 = vld [vmem:[%s3 + $0x1c4] sm:$0xf]
      %v733 = vld [vmem:[%s3 + $0x1c8] sm:$0xf]
      %v734 = vld [vmem:[%s3 + $0x1cc] sm:$0xf]
      %v735 = vld [vmem:[%s3 + $0x1d0] sm:$0xf]
      %v736 = vld [vmem:[%s3 + $0x1d4] sm:$0xf]
      %v737 = vld [vmem:[%s3 + $0x1d8] sm:$0xf]
      %v738 = vld [vmem:[%s3 + $0x1dc] sm:$0xf]
      %v739 = vld [vmem:[%s3 + $0x1e0] sm:$0xf]
      %v740 = vld [vmem:[%s3 + $0x1e4] sm:$0xf]
      %v741 = vld [vmem:[%s3 + $0x1e8] sm:$0xf]
      %v742 = vld [vmem:[%s3 + $0x1ec] sm:$0xf]
      %v743 = vld [vmem:[%s3 + $0x1f0] sm:$0xf]
      %v744 = vld [vmem:[%s3 + $0x1f4] sm:$0xf]
      %v745 = vld [vmem:[%s3 + $0x1f8] sm:$0xf]
      %v746 = vld [vmem:[%s3 + $0x1fc] sm:$0xf]
      %v747 = vld [vmem:[%s4] sm:$0x1]
      %v749 = vperm.slane %v747, 0
      %v879 = vunpack.c.l.b16 %v619
      %v880 = vunpack.c.l.b16 %v620
      %v881 = vunpack.c.l.b16 %v621
      %v882 = vunpack.c.l.b16 %v622
      %v883 = vunpack.c.l.b16 %v623
      %v884 = vunpack.c.l.b16 %v624
      %v885 = vunpack.c.l.b16 %v625
      %v886 = vunpack.c.l.b16 %v626
      %v887 = vunpack.c.l.b16 %v627
      %v888 = vunpack.c.l.b16 %v628
      %v889 = vunpack.c.l.b16 %v629
      %v890 = vunpack.c.l.b16 %v630
      %v891 = vunpack.c.l.b16 %v631
      %v892 = vunpack.c.l.b16 %v632
      %v893 = vunpack.c.l.b16 %v633
      %v894 = vunpack.c.l.b16 %v634
      %v895 = vunpack.c.l.b16 %v635
      %v896 = vunpack.c.l.b16 %v636
      %v897 = vunpack.c.l.b16 %v637
      %v898 = vunpack.c.l.b16 %v638
      %v899 = vunpack.c.l.b16 %v639
      %v900 = vunpack.c.l.b16 %v640
      %v901 = vunpack.c.l.b16 %v641
      %v902 = vunpack.c.l.b16 %v642
      %v903 = vunpack.c.l.b16 %v643
      %v904 = vunpack.c.l.b16 %v644
      %v905 = vunpack.c.l.b16 %v645
      %v906 = vunpack.c.l.b16 %v646
      %v907 = vunpack.c.l.b16 %v647
      %v908 = vunpack.c.l.b16 %v648
      %v909 = vunpack.c.l.b16 %v649
      %v910 = vunpack.c.l.b16 %v650
      %v911 = vunpack.c.l.b16 %v651
      %v912 = vunpack.c.l.b16 %v652
      %v913 = vunpack.c.l.b16 %v653
      %v914 = vunpack.c.l.b16 %v654
      %v915 = vunpack.c.l.b16 %v655
      %v916 = vunpack.c.l.b16 %v656
      %v917 = vunpack.c.l.b16 %v657
      %v918 = vunpack.c.l.b16 %v658
      %v919 = vunpack.c.l.b16 %v659
      %v920 = vunpack.c.l.b16 %v660
      %v921 = vunpack.c.l.b16 %v661
      %v922 = vunpack.c.l.b16 %v662
      %v923 = vunpack.c.l.b16 %v663
      %v924 = vunpack.c.l.b16 %v664
      %v925 = vunpack.c.l.b16 %v665
      %v926 = vunpack.c.l.b16 %v666
      %v927 = vunpack.c.l.b16 %v667
      %v928 = vunpack.c.l.b16 %v668
      %v929 = vunpack.c.l.b16 %v669
      %v930 = vunpack.c.l.b16 %v670
      %v931 = vunpack.c.l.b16 %v671
      %v932 = vunpack.c.l.b16 %v672
      %v933 = vunpack.c.l.b16 %v673
      %v934 = vunpack.c.l.b16 %v674
      %v935 = vunpack.c.l.b16 %v675
      %v936 = vunpack.c.l.b16 %v676
      %v937 = vunpack.c.l.b16 %v677
      %v938 = vunpack.c.l.b16 %v678
      %v939 = vunpack.c.l.b16 %v679
      %v940 = vunpack.c.l.b16 %v680
      %v941 = vunpack.c.l.b16 %v681
      %v942 = vunpack.c.l.b16 %v682
      %v943 = vunpack.c.l.b16 %v683
      %v944 = vunpack.c.l.b16 %v684
      %v945 = vunpack.c.l.b16 %v685
      %v946 = vunpack.c.l.b16 %v686
      %v947 = vunpack.c.l.b16 %v687
      %v948 = vunpack.c.l.b16 %v688
      %v949 = vunpack.c.l.b16 %v689
      %v950 = vunpack.c.l.b16 %v690
      %v951 = vunpack.c.l.b16 %v691
      %v952 = vunpack.c.l.b16 %v692
      %v953 = vunpack.c.l.b16 %v693
      %v954 = vunpack.c.l.b16 %v694
      %v955 = vunpack.c.l.b16 %v695
      %v956 = vunpack.c.l.b16 %v696
      %v957 = vunpack.c.l.b16 %v697
      %v958 = vunpack.c.l.b16 %v698
      %v959 = vunpack.c.l.b16 %v699
      %v960 = vunpack.c.l.b16 %v700
      %v961 = vunpack.c.l.b16 %v701
      %v962 = vunpack.c.l.b16 %v702
      %v963 = vunpack.c.l.b16 %v703
      %v964 = vunpack.c.l.b16 %v704
      %v965 = vunpack.c.l.b16 %v705
      %v966 = vunpack.c.l.b16 %v706
      %v967 = vunpack.c.l.b16 %v707
      %v968 = vunpack.c.l.b16 %v708
      %v969 = vunpack.c.l.b16 %v709
      %v970 = vunpack.c.l.b16 %v710
      %v971 = vunpack.c.l.b16 %v711
      %v972 = vunpack.c.l.b16 %v712
      %v973 = vunpack.c.l.b16 %v713
      %v974 = vunpack.c.l.b16 %v714
      %v975 = vunpack.c.l.b16 %v715
      %v976 = vunpack.c.l.b16 %v716
      %v977 = vunpack.c.l.b16 %v717
      %v978 = vunpack.c.l.b16 %v718
      %v979 = vunpack.c.l.b16 %v719
      %v980 = vunpack.c.l.b16 %v720
      %v981 = vunpack.c.l.b16 %v721
      %v982 = vunpack.c.l.b16 %v722
      %v983 = vunpack.c.l.b16 %v723
      %v984 = vunpack.c.l.b16 %v724
      %v985 = vunpack.c.l.b16 %v725
      %v986 = vunpack.c.l.b16 %v726
      %v987 = vunpack.c.l.b16 %v727
      %v988 = vunpack.c.l.b16 %v728
      %v989 = vunpack.c.l.b16 %v729
      %v990 = vunpack.c.l.b16 %v730
      %v991 = vunpack.c.l.b16 %v731
      %v992 = vunpack.c.l.b16 %v732
      %v993 = vunpack.c.l.b16 %v733
      %v994 = vunpack.c.l.b16 %v734
      %v995 = vunpack.c.l.b16 %v735
      %v996 = vunpack.c.l.b16 %v736
      %v997 = vunpack.c.l.b16 %v737
      %v998 = vunpack.c.l.b16 %v738
      %v999 = vunpack.c.l.b16 %v739
      %v1000 = vunpack.c.l.b16 %v740
      %v1001 = vunpack.c.l.b16 %v741
      %v1002 = vunpack.c.l.b16 %v742
      %v1003 = vunpack.c.l.b16 %v743
      %v1004 = vunpack.c.l.b16 %v744
      %v1005 = vunpack.c.l.b16 %v745
      %v1006 = vunpack.c.l.b16 %v746
      %v1007 = vpack.c.b16 %v880, %v879
      %v1008 = vpack.c.b16 %v882, %v881
      %v1009 = vpack.c.b16 %v884, %v883
      %v1010 = vpack.c.b16 %v886, %v885
      %v1011 = vpack.c.b16 %v888, %v887
      %v1012 = vpack.c.b16 %v890, %v889
      %v1013 = vpack.c.b16 %v892, %v891
      %v1014 = vpack.c.b16 %v894, %v893
      %v1015 = vpack.c.b16 %v896, %v895
      %v1016 = vpack.c.b16 %v898, %v897
      %v1017 = vpack.c.b16 %v900, %v899
      %v1018 = vpack.c.b16 %v902, %v901
      %v1019 = vpack.c.b16 %v904, %v903
      %v1020 = vpack.c.b16 %v906, %v905
      %v1021 = vpack.c.b16 %v908, %v907
      %v1022 = vpack.c.b16 %v910, %v909
      %v1023 = vpack.c.b16 %v912, %v911
      %v1024 = vpack.c.b16 %v914, %v913
      %v1025 = vpack.c.b16 %v916, %v915
      %v1026 = vpack.c.b16 %v918, %v917
      %v1027 = vpack.c.b16 %v920, %v919
      %v1028 = vpack.c.b16 %v922, %v921
      %v1029 = vpack.c.b16 %v924, %v923
      %v1030 = vpack.c.b16 %v926, %v925
      %v1031 = vpack.c.b16 %v928, %v927
      %v1032 = vpack.c.b16 %v930, %v929
      %v1033 = vpack.c.b16 %v932, %v931
      %v1034 = vpack.c.b16 %v934, %v933
      %v1035 = vpack.c.b16 %v936, %v935
      %v1036 = vpack.c.b16 %v938, %v937
      %v1037 = vpack.c.b16 %v940, %v939
      %v1038 = vpack.c.b16 %v942, %v941
      %v1039 = vpack.c.b16 %v944, %v943
      %v1040 = vpack.c.b16 %v946, %v945
      %v1041 = vpack.c.b16 %v948, %v947
      %v1042 = vpack.c.b16 %v950, %v949
      %v1043 = vpack.c.b16 %v952, %v951
      %v1044 = vpack.c.b16 %v954, %v953
      %v1045 = vpack.c.b16 %v956, %v955
      %v1046 = vpack.c.b16 %v958, %v957
      %v1047 = vpack.c.b16 %v960, %v959
      %v1048 = vpack.c.b16 %v962, %v961
      %v1049 = vpack.c.b16 %v964, %v963
      %v1050 = vpack.c.b16 %v966, %v965
      %v1051 = vpack.c.b16 %v968, %v967
      %v1052 = vpack.c.b16 %v970, %v969
      %v1053 = vpack.c.b16 %v972, %v971
      %v1054 = vpack.c.b16 %v974, %v973
      %v1055 = vpack.c.b16 %v976, %v975
      %v1056 = vpack.c.b16 %v978, %v977
      %v1057 = vpack.c.b16 %v980, %v979
      %v1058 = vpack.c.b16 %v982, %v981
      %v1059 = vpack.c.b16 %v984, %v983
      %v1060 = vpack.c.b16 %v986, %v985
      %v1061 = vpack.c.b16 %v988, %v987
      %v1062 = vpack.c.b16 %v990, %v989
      %v1063 = vpack.c.b16 %v992, %v991
      %v1064 = vpack.c.b16 %v994, %v993
      %v1065 = vpack.c.b16 %v996, %v995
      %v1066 = vpack.c.b16 %v998, %v997
      %v1067 = vpack.c.b16 %v1000, %v999
      %v1068 = vpack.c.b16 %v1002, %v1001
      %v1069 = vpack.c.b16 %v1004, %v1003
      %v1070 = vpack.c.b16 %v1006, %v1005
      %1135 = vmatpush.bf16.msra.mxu0 %v1014
      %1136 = vmatpush.bf16.msra.mxu0 %v1013
      %1137 = vmatpush.bf16.msra.mxu0 %v1012
      %1138 = vmatpush.bf16.msra.mxu0 %v1011
      %1139 = vmatpush.bf16.msra.mxu0 %v1010
      %1140 = vmatpush.bf16.msra.mxu0 %v1009
      %1141 = vmatpush.bf16.msra.mxu0 %v1008
      %1142 = vmatpush.bf16.msra.mxu0 %v1007
      %1143 = vmatmul.bf16.gmra.mxu0 %v611
      %v1144 = vpop.f32.mrf.mxu0
      %v1145 = vadd.f32 %v749, %v1144
      %v1146 = vpop.f32.mrf.mxu0
      %1147 = vdwg.mxu0
      %1148 = vmatpush.bf16.msra.mxu0 %v1022
      %1149 = vmatpush.bf16.msra.mxu0 %v1021
      %1150 = vmatpush.bf16.msra.mxu0 %v1020
      %1151 = vmatpush.bf16.msra.mxu0 %v1019
      %1152 = vmatpush.bf16.msra.mxu0 %v1018
      %1153 = vmatpush.bf16.msra.mxu0 %v1017
      %1154 = vmatpush.bf16.msra.mxu0 %v1016
      %1155 = vmatpush.bf16.msra.mxu0 %v1015
      %1156 = vmatmul.bf16.gmra.mxu0 %v612
      %v1157 = vpop.f32.mrf.mxu0
      %v1158 = vadd.f32 %v1145, %v1157
      %v1159 = vpop.f32.mrf.mxu0
      %1160 = vdwg.mxu0
      %1161 = vmatpush.bf16.msra.mxu0 %v1030
      %1162 = vmatpush.bf16.msra.mxu0 %v1029
      %1163 = vmatpush.bf16.msra.mxu0 %v1028
      %1164 = vmatpush.bf16.msra.mxu0 %v1027
      %1165 = vmatpush.bf16.msra.mxu0 %v1026
      %1166 = vmatpush.bf16.msra.mxu0 %v1025
      %1167 = vmatpush.bf16.msra.mxu0 %v1024
      %1168 = vmatpush.bf16.msra.mxu0 %v1023
      %1169 = vmatmul.bf16.gmra.mxu0 %v613
      %v1170 = vpop.f32.mrf.mxu0
      %v1171 = vadd.f32 %v1158, %v1170
      %v1172 = vpop.f32.mrf.mxu0
      %1173 = vdwg.mxu0
      %1174 = vmatpush.bf16.msra.mxu0 %v1038
      %1175 = vmatpush.bf16.msra.mxu0 %v1037
      %1176 = vmatpush.bf16.msra.mxu0 %v1036
      %1177 = vmatpush.bf16.msra.mxu0 %v1035
      %1178 = vmatpush.bf16.msra.mxu0 %v1034
      %1179 = vmatpush.bf16.msra.mxu0 %v1033
      %1180 = vmatpush.bf16.msra.mxu0 %v1032
      %1181 = vmatpush.bf16.msra.mxu0 %v1031
      %1182 = vmatmul.bf16.gmra.mxu0 %v614
      %v1183 = vpop.f32.mrf.mxu0
      %v1184 = vadd.f32 %v1171, %v1183
      %v1185 = vpop.f32.mrf.mxu0
      %1186 = vdwg.mxu0
      %1187 = vmatpush.bf16.msra.mxu0 %v1046
      %1188 = vmatpush.bf16.msra.mxu0 %v1045
      %1189 = vmatpush.bf16.msra.mxu0 %v1044
      %1190 = vmatpush.bf16.msra.mxu0 %v1043
      %1191 = vmatpush.bf16.msra.mxu0 %v1042
      %1192 = vmatpush.bf16.msra.mxu0 %v1041
      %1193 = vmatpush.bf16.msra.mxu0 %v1040
      %1194 = vmatpush.bf16.msra.mxu0 %v1039
      %1195 = vmatmul.bf16.gmra.mxu0 %v615
      %v1196 = vpop.f32.mrf.mxu0
      %v1197 = vadd.f32 %v1184, %v1196
      %v1198 = vpop.f32.mrf.mxu0
      %1199 = vdwg.mxu0
      %1200 = vmatpush.bf16.msra.mxu0 %v1054
      %1201 = vmatpush.bf16.msra.mxu0 %v1053
      %1202 = vmatpush.bf16.msra.mxu0 %v1052
      %1203 = vmatpush.bf16.msra.mxu0 %v1051
      %1204 = vmatpush.bf16.msra.mxu0 %v1050
      %1205 = vmatpush.bf16.msra.mxu0 %v1049
      %1206 = vmatpush.bf16.msra.mxu0 %v1048
      %1207 = vmatpush.bf16.msra.mxu0 %v1047
      %1208 = vmatmul.bf16.gmra.mxu0 %v616
      %v1209 = vpop.f32.mrf.mxu0
      %v1210 = vadd.f32 %v1197, %v1209
      %v1211 = vpop.f32.mrf.mxu0
      %1212 = vdwg.mxu0
      %1213 = vmatpush.bf16.msra.mxu0 %v1062
      %1214 = vmatpush.bf16.msra.mxu0 %v1061
      %1215 = vmatpush.bf16.msra.mxu0 %v1060
      %1216 = vmatpush.bf16.msra.mxu0 %v1059
      %1217 = vmatpush.bf16.msra.mxu0 %v1058
      %1218 = vmatpush.bf16.msra.mxu0 %v1057
      %1219 = vmatpush.bf16.msra.mxu0 %v1056
      %1220 = vmatpush.bf16.msra.mxu0 %v1055
      %1221 = vmatmul.bf16.gmra.mxu0 %v617
      %v1222 = vpop.f32.mrf.mxu0
      %v1223 = vadd.f32 %v1210, %v1222
      %v1224 = vpop.f32.mrf.mxu0
      %1225 = vdwg.mxu0
      %1226 = vmatpush.bf16.msra.mxu0 %v1070
      %1227 = vmatpush.bf16.msra.mxu0 %v1069
      %1228 = vmatpush.bf16.msra.mxu0 %v1068
      %1229 = vmatpush.bf16.msra.mxu0 %v1067
      %1230 = vmatpush.bf16.msra.mxu0 %v1066
      %1231 = vmatpush.bf16.msra.mxu0 %v1065
      %1232 = vmatpush.bf16.msra.mxu0 %v1064
      %1233 = vmatpush.bf16.msra.mxu0 %v1063
      %1234 = vmatmul.bf16.gmra.mxu0 %v618
      %v1235 = vpop.f32.mrf.mxu0
      %v1236 = vadd.f32 %v1223, %v1235
      %v1237 = vpop.f32.mrf.mxu0
      %1238 = vdwg.mxu0
      %vm1239 = vcmp.ge.f32.partialorder %v1236, 0.0
      %v1240 = vmul.f32 %v1236, 0.01
      %v1241 = vsel %vm1239, %v1236, %v1240
      %v1242 = vld [vmem:[%s5] sm:$0xff]
      %v1243 = vld [vmem:[%s5 + $0x8] sm:$0xff]
      %v1244 = vld [vmem:[%s5 + $0x10] sm:$0xff]
      %v1245 = vld [vmem:[%s5 + $0x18] sm:$0xff]
      %v1246 = vld [vmem:[%s5 + $0x20] sm:$0xff]
      %v1247 = vld [vmem:[%s5 + $0x28] sm:$0xff]
      %v1248 = vld [vmem:[%s5 + $0x30] sm:$0xff]
      %v1249 = vld [vmem:[%s5 + $0x38] sm:$0xff]
      %v1250 = vld [vmem:[%s5 + $0x40] sm:$0xff]
      %v1251 = vld [vmem:[%s5 + $0x48] sm:$0xff]
      %v1252 = vld [vmem:[%s5 + $0x50] sm:$0xff]
      %v1253 = vld [vmem:[%s5 + $0x58] sm:$0xff]
      %v1254 = vld [vmem:[%s5 + $0x60] sm:$0xff]
      %v1255 = vld [vmem:[%s5 + $0x68] sm:$0xff]
      %v1256 = vld [vmem:[%s5 + $0x70] sm:$0xff]
      %v1257 = vld [vmem:[%s5 + $0x78] sm:$0xff]
      %v1258 = vld [vmem:[%s6] sm:$0x1]
      %v1260 = vperm.slane %v1258, 0
      %1262 = vmatpush.msra.mxu0 %v1257
      %1263 = vmatpush.msra.mxu0 %v1256
      %1264 = vmatpush.msra.mxu0 %v1255
      %1265 = vmatpush.msra.mxu0 %v1254
      %1266 = vmatpush.msra.mxu0 %v1253
      %1267 = vmatpush.msra.mxu0 %v1252
      %1268 = vmatpush.msra.mxu0 %v1251
      %1269 = vmatpush.msra.mxu0 %v1250
      %1270 = vmatpush.msra.mxu0 %v1249
      %1271 = vmatpush.msra.mxu0 %v1248
      %1272 = vmatpush.msra.mxu0 %v1247
      %1273 = vmatpush.msra.mxu0 %v1246
      %1274 = vmatpush.msra.mxu0 %v1245
      %1275 = vmatpush.msra.mxu0 %v1244
      %1276 = vmatpush.msra.mxu0 %v1243
      %1277 = vmatpush.msra.mxu0 %v1242
      %1278 = vmatmul.f32.gmra.mxu0 %v1241
      %v1279 = vpop.f32.mrf.mxu0
      %v1280 = vadd.f32 %v1260, %v1279
      %1281 = vdwg.mxu0
      %vm1282 = vcmask 58368
      %1283 = vst.msk [vmem:[#allocation3] sm:$0x3] %vm1282, %v1280
    $region37: #{cnn_forward.3} parent=1 // pred_fallthru
      _
    // Predicated region
    $region38: #{cnn_forward.3} parent=1 // pred_check
      _
    $region39: #{cnn_forward.3} parent=1 // pred_check_branch
      %1285 = sbr.rel (0) target = $region41
    $region40: #{cnn_forward.3} parent=1 // pred_region
      %1287 = vsyncadd [#allocation4], 0
      %s1289 = sshll.u32 [#allocation3], 4
      %s1290 = int_to_ptr.vmem [resolvable:$true] %s1289
      %s1291 = sshll.u32 %s7, 4
      %s1292 = int_to_ptr.hbm [resolvable:$true] %s1291
      %1294 = dma.vmem_to_hbm [thread:$0]  %s1290, 32, %s1292, [#allocation4]
    $region41: #{cnn_forward.3} parent=1 // pred_fallthru
      _
    // Predicated region
    $region42: #{cnn_forward.3} parent=1 // pred_check
      _
    $region43: #{cnn_forward.3} parent=1 // pred_check_branch
      %1296 = sbr.rel (0) target = $region45
    $region44: #{cnn_forward.3} parent=1 // pred_region
      %1298 = dma.done [#allocation4], 32
    $region45: #{cnn_forward.3} parent=1 // pred_fallthru
      _
    %1299 = vsyncpa [#allocation4], 1

// kernel: cnn_forward.2
$region0: #{cnn_forward.2}
  #allocation0 [shape = 'u32[]', space=smem, size = 0x4, offset = 0x4, fixed_abs, tag = 'smem constant byte address 0x4 - core index']
  #allocation1 [shape = 'u32[72,128]{1,0:T(1,128)}', space=vmem, size = 0x9000, scoped, tag = 'internal scratch']
  #allocation2 [shape = 'f32[1,80,32]{2,1,0:T(8,128)}', space=vmem, size = 0xa000, scoped, tag = 'scratch operand']
  #allocation3 [shape = 'f32[1,26,32]{2,1,0:T(8,128)}', space=vmem, size = 0x4000, scoped, tag = 'scratch operand']
  #allocation4 [shape = 'f32[1,26,64]{2,1,0:T(8,128)}', space=vmem, size = 0x4000, scoped, tag = 'scratch operand']
  #allocation5 [shape = 'f32[1,4,64]{2,1,0:T(4,128)}', space=vmem, size = 0x800, scoped, tag = 'scratch operand']
  #allocation6 [shape = 'f32[1,4,128]{2,1,0:T(4,128)}', space=vmem, size = 0x800, scoped, tag = 'scratch operand']
  %s0 = inlined_call_operand.vmem [shape: bf16[2,64,16], index: 0, kind: input, shape index: {}]
  %s1 = inlined_call_operand.vmem [shape: bf16[16,32], index: 1, kind: input, shape index: {}]
  %s2 = inlined_call_operand.vmem [shape: f32[1,32], index: 2, kind: input, shape index: {}]
  %s3 = inlined_call_operand.vmem [shape: bf16[512,32], index: 3, kind: input, shape index: {}]
  %s4 = inlined_call_operand.vmem [shape: f32[1,32], index: 4, kind: input, shape index: {}]
  %s5 = inlined_call_operand.vmem [shape: f32[1,32], index: 5, kind: input, shape index: {}]
  %s6 = inlined_call_operand.vmem [shape: f32[1,32], index: 6, kind: input, shape index: {}]
  %s7 = inlined_call_operand.vmem [shape: bf16[128,64], index: 7, kind: input, shape index: {}]
  %s8 = inlined_call_operand.vmem [shape: f32[1,64], index: 8, kind: input, shape index: {}]
  %s9 = inlined_call_operand.vmem [shape: bf16[256,64], index: 9, kind: input, shape index: {}]
  %s10 = inlined_call_operand.vmem [shape: f32[1,64], index: 10, kind: input, shape index: {}]
  %s11 = inlined_call_operand.vmem [shape: f32[1,64], index: 11, kind: input, shape index: {}]
  %s12 = inlined_call_operand.vmem [shape: f32[1,64], index: 12, kind: input, shape index: {}]
  %s13 = inlined_call_operand.vmem [shape: bf16[64,128], index: 13, kind: input, shape index: {}]
  %s14 = inlined_call_operand.vmem [shape: f32[1,128], index: 14, kind: input, shape index: {}]
  %s15 = inlined_call_operand.vmem [shape: bf16[128,128], index: 15, kind: input, shape index: {}]
  %s16 = inlined_call_operand.vmem [shape: f32[1,128], index: 16, kind: input, shape index: {}]
  %s17 = inlined_call_operand.vmem [shape: f32[1,128], index: 17, kind: input, shape index: {}]
  %s18 = inlined_call_operand.vmem [shape: f32[1,128], index: 18, kind: input, shape index: {}]
  %s19 = inlined_call_operand.vmem [shape: bf16[2,1,128], index: 19, kind: output, shape index: {}]
  %s20 = sld [smem:[#allocation0]]
  $region109: #{cnn_forward.2} parent=0
    _
  %s22 = ssub.s32 1, %s20
  %s23 = scalar_select 0, %s22, %s20
  loop: start=0, step=1, limit=4
  $region2: #{cnn_forward.2} parent=0 // loop_pre_header
    _
  $region3: #{cnn_forward.2} parent=0 // loop_header
    %s25 = sphi 0, %s29
    %p26 = scmp.ge.s32.totalorder %s25, 4
    %s35 = sphi 0, %s37
    %s38 = sphi 0, %s35
    %s39 = sphi 0, %s38
    %s55 = sphi 0, %s39
    %s59 = sphi 0, %s59
    %s61 = sphi 0, %s59
    %s62 = sphi 0, %s61
    %s76 = sphi 0, %s62
    %s80 = sphi 0, %s80
    %s82 = sphi 0, %s80
    %s83 = sphi 0, %s82
    %s97 = sphi 0, %s83
    %s101 = sphi 0, %s101
    %s103 = sphi 0, %s101
    %s104 = sphi 0, %s103
    %s118 = sphi 0, %s104
    %s122 = sphi 0, %s122
    %s124 = sphi 0, %s122
    %s125 = sphi 0, %s124
    %s139 = sphi 0, %s125
    %s143 = sphi 0, %s143
    %s145 = sphi 0, %s143
    %s146 = sphi 0, %s145
    %s160 = sphi 0, %s146
    %s164 = sphi 0, %s164
    %s166 = sphi 0, %s164
    %s167 = sphi 0, %s166
    %s181 = sphi 0, %s167
    %s185 = sphi 0, %s185
    %s187 = sphi 0, %s185
    %s188 = sphi 0, %s187
    %s202 = sphi 0, %s188
    %s206 = sphi 0, %s206
    %s208 = sphi 0, %s206
    %s209 = sphi 0, %s208
    %s223 = sphi 0, %s209
    %s227 = sphi 0, %s227
    %s229 = sphi 0, %s227
    %s230 = sphi 0, %s229
    %s244 = sphi 0, %s230
    %s248 = sphi 0, %s248
    %s250 = sphi 0, %s248
    %s251 = sphi 0, %s250
    %s265 = sphi 0, %s251
    %s269 = sphi 0, %s269
    %s271 = sphi 0, %s269
    %s272 = sphi 0, %s271
    %s286 = sphi 0, %s272
    %s290 = sphi 0, %s290
    %s292 = sphi 0, %s290
    %s293 = sphi 0, %s292
    %s307 = sphi 0, %s293
    %s311 = sphi 0, %s311
    %s313 = sphi 0, %s311
    %s314 = sphi 0, %s313
    %s328 = sphi 0, %s314
    %s332 = sphi 0, %s332
    %s334 = sphi 0, %s332
    %s335 = sphi 0, %s334
    %s349 = sphi 0, %s335
    %s353 = sphi 0, %s353
    %s355 = sphi 0, %s353
    %s356 = sphi 0, %s355
    %s370 = sphi 0, %s356
    %s374 = sphi 0, %s374
    %s376 = sphi 0, %s374
    %s377 = sphi 0, %s376
    %s391 = sphi 0, %s377
    %s395 = sphi 0, %s395
    %s397 = sphi 0, %s395
    %s398 = sphi 0, %s397
    %s412 = sphi 0, %s398
    %s416 = sphi 0, %s416
    %s418 = sphi 0, %s416
    %s419 = sphi 0, %s418
    %s433 = sphi 0, %s419
    %s439 = sphi 0, %s441
    %s442 = sphi 0, %s439
    %s443 = sphi 0, %s442
    %s459 = sphi 0, %s443
  $region4: #{cnn_forward.2} parent=0 // loop_header_branch
    %28 = sbr.rel (%p26) target = $region8
  $region5: #{cnn_forward.2} parent=0 // loop_body
    %s30 = ssub.s32 %s25, 1
    %s31 = ssub.s32 %s25, 2
    %s32 = sadd.s32 %s25, 1
    %s33 = ssub.s32 %s25, %s32
    %p34 = scmp.eq.s32.totalorder %s33, 0
    %s36 = sadd.s32 %s35, 1
    %s37 = scalar_select %p34, %s35, %s36
    %p40 = pneg %p34
    %p41 = scmp.eq.s32.totalorder %s25, 1
    %p42 = por %p40, %p41
    %p43 = scmp.ne.s32.totalorder %s35, %s38
    %p44 = scmp.eq.s32.totalorder %s25, 0
    %p45 = por %p43, %p44
    %p46 = scmp.ne.s32.totalorder %s35, %s38
    %p47 = scmp.eq.s32.totalorder %s30, 1
    %p48 = por %p46, %p47
    %p49 = scmp.ne.s32.totalorder %s38, %s39
    %p50 = scmp.eq.s32.totalorder %s30, 0
    %p51 = por %p49, %p50
    %p52 = scmp.ne.s32.totalorder %s38, %s39
    %p53 = scmp.eq.s32.totalorder %s31, 1
    %p54 = por %p52, %p53
    %p56 = scmp.ne.s32.totalorder %s39, %s55
    %p57 = scmp.eq.s32.totalorder %s31, 0
    %p58 = por %p56, %p57
    %s60 = sadd.s32 %s59, 1
    %p63 = scmp.eq.s32.totalorder %s25, 1
    %p64 = scmp.ne.s32.totalorder %s59, %s61
    %p65 = scmp.eq.s32.totalorder %s25, 0
    %p66 = por %p64, %p65
    %p67 = scmp.ne.s32.totalorder %s59, %s61
    %p68 = scmp.eq.s32.totalorder %s30, 1
    %p69 = por %p67, %p68
    %p70 = scmp.ne.s32.totalorder %s61, %s62
    %p71 = scmp.eq.s32.totalorder %s30, 0
    %p72 = por %p70, %p71
    %p73 = scmp.ne.s32.totalorder %s61, %s62
    %p74 = scmp.eq.s32.totalorder %s31, 1
    %p75 = por %p73, %p74
    %p77 = scmp.ne.s32.totalorder %s62, %s76
    %p78 = scmp.eq.s32.totalorder %s31, 0
    %p79 = por %p77, %p78
    %s81 = sadd.s32 %s80, 1
    %p84 = scmp.eq.s32.totalorder %s25, 1
    %p85 = scmp.ne.s32.totalorder %s80, %s82
    %p86 = scmp.eq.s32.totalorder %s25, 0
    %p87 = por %p85, %p86
    %p88 = scmp.ne.s32.totalorder %s80, %s82
    %p89 = scmp.eq.s32.totalorder %s30, 1
    %p90 = por %p88, %p89
    %p91 = scmp.ne.s32.totalorder %s82, %s83
    %p92 = scmp.eq.s32.totalorder %s30, 0
    %p93 = por %p91, %p92
    %p94 = scmp.ne.s32.totalorder %s82, %s83
    %p95 = scmp.eq.s32.totalorder %s31, 1
    %p96 = por %p94, %p95
    %p98 = scmp.ne.s32.totalorder %s83, %s97
    %p99 = scmp.eq.s32.totalorder %s31, 0
    %p100 = por %p98, %p99
    %s102 = sadd.s32 %s101, 1
    %p105 = scmp.eq.s32.totalorder %s25, 1
    %p106 = scmp.ne.s32.totalorder %s101, %s103
    %p107 = scmp.eq.s32.totalorder %s25, 0
    %p108 = por %p106, %p107
    %p109 = scmp.ne.s32.totalorder %s101, %s103
    %p110 = scmp.eq.s32.totalorder %s30, 1
    %p111 = por %p109, %p110
    %p112 = scmp.ne.s32.totalorder %s103, %s104
    %p113 = scmp.eq.s32.totalorder %s30, 0
    %p114 = por %p112, %p113
    %p115 = scmp.ne.s32.totalorder %s103, %s104
    %p116 = scmp.eq.s32.totalorder %s31, 1
    %p117 = por %p115, %p116
    %p119 = scmp.ne.s32.totalorder %s104, %s118
    %p120 = scmp.eq.s32.totalorder %s31, 0
    %p121 = por %p119, %p120
    %s123 = sadd.s32 %s122, 1
    %p126 = scmp.eq.s32.totalorder %s25, 1
    %p127 = scmp.ne.s32.totalorder %s122, %s124
    %p128 = scmp.eq.s32.totalorder %s25, 0
    %p129 = por %p127, %p128
    %p130 = scmp.ne.s32.totalorder %s122, %s124
    %p131 = scmp.eq.s32.totalorder %s30, 1
    %p132 = por %p130, %p131
    %p133 = scmp.ne.s32.totalorder %s124, %s125
    %p134 = scmp.eq.s32.totalorder %s30, 0
    %p135 = por %p133, %p134
    %p136 = scmp.ne.s32.totalorder %s124, %s125
    %p137 = scmp.eq.s32.totalorder %s31, 1
    %p138 = por %p136, %p137
    %p140 = scmp.ne.s32.totalorder %s125, %s139
    %p141 = scmp.eq.s32.totalorder %s31, 0
    %p142 = por %p140, %p141
    %s144 = sadd.s32 %s143, 1
    %p147 = scmp.eq.s32.totalorder %s25, 1
    %p148 = scmp.ne.s32.totalorder %s143, %s145
    %p149 = scmp.eq.s32.totalorder %s25, 0
    %p150 = por %p148, %p149
    %p151 = scmp.ne.s32.totalorder %s143, %s145
    %p152 = scmp.eq.s32.totalorder %s30, 1
    %p153 = por %p151, %p152
    %p154 = scmp.ne.s32.totalorder %s145, %s146
    %p155 = scmp.eq.s32.totalorder %s30, 0
    %p156 = por %p154, %p155
    %p157 = scmp.ne.s32.totalorder %s145, %s146
    %p158 = scmp.eq.s32.totalorder %s31, 1
    %p159 = por %p157, %p158
    %p161 = scmp.ne.s32.totalorder %s146, %s160
    %p162 = scmp.eq.s32.totalorder %s31, 0
    %p163 = por %p161, %p162
    %s165 = sadd.s32 %s164, 1
    %p168 = scmp.eq.s32.totalorder %s25, 1
    %p169 = scmp.ne.s32.totalorder %s164, %s166
    %p170 = scmp.eq.s32.totalorder %s25, 0
    %p171 = por %p169, %p170
    %p172 = scmp.ne.s32.totalorder %s164, %s166
    %p173 = scmp.eq.s32.totalorder %s30, 1
    %p174 = por %p172, %p173
    %p175 = scmp.ne.s32.totalorder %s166, %s167
    %p176 = scmp.eq.s32.totalorder %s30, 0
    %p177 = por %p175, %p176
    %p178 = scmp.ne.s32.totalorder %s166, %s167
    %p179 = scmp.eq.s32.totalorder %s31, 1
    %p180 = por %p178, %p179
    %p182 = scmp.ne.s32.totalorder %s167, %s181
    %p183 = scmp.eq.s32.totalorder %s31, 0
    %p184 = por %p182, %p183
    %s186 = sadd.s32 %s185, 1
    %p189 = scmp.eq.s32.totalorder %s25, 1
    %p190 = scmp.ne.s32.totalorder %s185, %s187
    %p191 = scmp.eq.s32.totalorder %s25, 0
    %p192 = por %p190, %p191
    %p193 = scmp.ne.s32.totalorder %s185, %s187
    %p194 = scmp.eq.s32.totalorder %s30, 1
    %p195 = por %p193, %p194
    %p196 = scmp.ne.s32.totalorder %s187, %s188
    %p197 = scmp.eq.s32.totalorder %s30, 0
    %p198 = por %p196, %p197
    %p199 = scmp.ne.s32.totalorder %s187, %s188
    %p200 = scmp.eq.s32.totalorder %s31, 1
    %p201 = por %p199, %p200
    %p203 = scmp.ne.s32.totalorder %s188, %s202
    %p204 = scmp.eq.s32.totalorder %s31, 0
    %p205 = por %p203, %p204
    %s207 = sadd.s32 %s206, 1
    %p210 = scmp.eq.s32.totalorder %s25, 1
    %p211 = scmp.ne.s32.totalorder %s206, %s208
    %p212 = scmp.eq.s32.totalorder %s25, 0
    %p213 = por %p211, %p212
    %p214 = scmp.ne.s32.totalorder %s206, %s208
    %p215 = scmp.eq.s32.totalorder %s30, 1
    %p216 = por %p214, %p215
    %p217 = scmp.ne.s32.totalorder %s208, %s209
    %p218 = scmp.eq.s32.totalorder %s30, 0
    %p219 = por %p217, %p218
    %p220 = scmp.ne.s32.totalorder %s208, %s209
    %p221 = scmp.eq.s32.totalorder %s31, 1
    %p222 = por %p220, %p221
    %p224 = scmp.ne.s32.totalorder %s209, %s223
    %p225 = scmp.eq.s32.totalorder %s31, 0
    %p226 = por %p224, %p225
    %s228 = sadd.s32 %s227, 1
    %p231 = scmp.eq.s32.totalorder %s25, 1
    %p232 = scmp.ne.s32.totalorder %s227, %s229
    %p233 = scmp.eq.s32.totalorder %s25, 0
    %p234 = por %p232, %p233
    %p235 = scmp.ne.s32.totalorder %s227, %s229
    %p236 = scmp.eq.s32.totalorder %s30, 1
    %p237 = por %p235, %p236
    %p238 = scmp.ne.s32.totalorder %s229, %s230
    %p239 = scmp.eq.s32.totalorder %s30, 0
    %p240 = por %p238, %p239
    %p241 = scmp.ne.s32.totalorder %s229, %s230
    %p242 = scmp.eq.s32.totalorder %s31, 1
    %p243 = por %p241, %p242
    %p245 = scmp.ne.s32.totalorder %s230, %s244
    %p246 = scmp.eq.s32.totalorder %s31, 0
    %p247 = por %p245, %p246
    %s249 = sadd.s32 %s248, 1
    %p252 = scmp.eq.s32.totalorder %s25, 1
    %p253 = scmp.ne.s32.totalorder %s248, %s250
    %p254 = scmp.eq.s32.totalorder %s25, 0
    %p255 = por %p253, %p254
    %p256 = scmp.ne.s32.totalorder %s248, %s250
    %p257 = scmp.eq.s32.totalorder %s30, 1
    %p258 = por %p256, %p257
    %p259 = scmp.ne.s32.totalorder %s250, %s251
    %p260 = scmp.eq.s32.totalorder %s30, 0
    %p261 = por %p259, %p260
    %p262 = scmp.ne.s32.totalorder %s250, %s251
    %p263 = scmp.eq.s32.totalorder %s31, 1
    %p264 = por %p262, %p263
    %p266 = scmp.ne.s32.totalorder %s251, %s265
    %p267 = scmp.eq.s32.totalorder %s31, 0
    %p268 = por %p266, %p267
    %s270 = sadd.s32 %s269, 1
    %p273 = scmp.eq.s32.totalorder %s25, 1
    %p274 = scmp.ne.s32.totalorder %s269, %s271
    %p275 = scmp.eq.s32.totalorder %s25, 0
    %p276 = por %p274, %p275
    %p277 = scmp.ne.s32.totalorder %s269, %s271
    %p278 = scmp.eq.s32.totalorder %s30, 1
    %p279 = por %p277, %p278
    %p280 = scmp.ne.s32.totalorder %s271, %s272
    %p281 = scmp.eq.s32.totalorder %s30, 0
    %p282 = por %p280, %p281
    %p283 = scmp.ne.s32.totalorder %s271, %s272
    %p284 = scmp.eq.s32.totalorder %s31, 1
    %p285 = por %p283, %p284
    %p287 = scmp.ne.s32.totalorder %s272, %s286
    %p288 = scmp.eq.s32.totalorder %s31, 0
    %p289 = por %p287, %p288
    %s291 = sadd.s32 %s290, 1
    %p294 = scmp.eq.s32.totalorder %s25, 1
    %p295 = scmp.ne.s32.totalorder %s290, %s292
    %p296 = scmp.eq.s32.totalorder %s25, 0
    %p297 = por %p295, %p296
    %p298 = scmp.ne.s32.totalorder %s290, %s292
    %p299 = scmp.eq.s32.totalorder %s30, 1
    %p300 = por %p298, %p299
    %p301 = scmp.ne.s32.totalorder %s292, %s293
    %p302 = scmp.eq.s32.totalorder %s30, 0
    %p303 = por %p301, %p302
    %p304 = scmp.ne.s32.totalorder %s292, %s293
    %p305 = scmp.eq.s32.totalorder %s31, 1
    %p306 = por %p304, %p305
    %p308 = scmp.ne.s32.totalorder %s293, %s307
    %p309 = scmp.eq.s32.totalorder %s31, 0
    %p310 = por %p308, %p309
    %s312 = sadd.s32 %s311, 1
    %p315 = scmp.eq.s32.totalorder %s25, 1
    %p316 = scmp.ne.s32.totalorder %s311, %s313
    %p317 = scmp.eq.s32.totalorder %s25, 0
    %p318 = por %p316, %p317
    %p319 = scmp.ne.s32.totalorder %s311, %s313
    %p320 = scmp.eq.s32.totalorder %s30, 1
    %p321 = por %p319, %p320
    %p322 = scmp.ne.s32.totalorder %s313, %s314
    %p323 = scmp.eq.s32.totalorder %s30, 0
    %p324 = por %p322, %p323
    %p325 = scmp.ne.s32.totalorder %s313, %s314
    %p326 = scmp.eq.s32.totalorder %s31, 1
    %p327 = por %p325, %p326
    %p329 = scmp.ne.s32.totalorder %s314, %s328
    %p330 = scmp.eq.s32.totalorder %s31, 0
    %p331 = por %p329, %p330
    %s333 = sadd.s32 %s332, 1
    %p336 = scmp.eq.s32.totalorder %s25, 1
    %p337 = scmp.ne.s32.totalorder %s332, %s334
    %p338 = scmp.eq.s32.totalorder %s25, 0
    %p339 = por %p337, %p338
    %p340 = scmp.ne.s32.totalorder %s332, %s334
    %p341 = scmp.eq.s32.totalorder %s30, 1
    %p342 = por %p340, %p341
    %p343 = scmp.ne.s32.totalorder %s334, %s335
    %p344 = scmp.eq.s32.totalorder %s30, 0
    %p345 = por %p343, %p344
    %p346 = scmp.ne.s32.totalorder %s334, %s335
    %p347 = scmp.eq.s32.totalorder %s31, 1
    %p348 = por %p346, %p347
    %p350 = scmp.ne.s32.totalorder %s335, %s349
    %p351 = scmp.eq.s32.totalorder %s31, 0
    %p352 = por %p350, %p351
    %s354 = sadd.s32 %s353, 1
    %p357 = scmp.eq.s32.totalorder %s25, 1
    %p358 = scmp.ne.s32.totalorder %s353, %s355
    %p359 = scmp.eq.s32.totalorder %s25, 0
    %p360 = por %p358, %p359
    %p361 = scmp.ne.s32.totalorder %s353, %s355
    %p362 = scmp.eq.s32.totalorder %s30, 1
    %p363 = por %p361, %p362
    %p364 = scmp.ne.s32.totalorder %s355, %s356
    %p365 = scmp.eq.s32.totalorder %s30, 0
    %p366 = por %p364, %p365
    %p367 = scmp.ne.s32.totalorder %s355, %s356
    %p368 = scmp.eq.s32.totalorder %s31, 1
    %p369 = por %p367, %p368
    %p371 = scmp.ne.s32.totalorder %s356, %s370
    %p372 = scmp.eq.s32.totalorder %s31, 0
    %p373 = por %p371, %p372
    %s375 = sadd.s32 %s374, 1
    %p378 = scmp.eq.s32.totalorder %s25, 1
    %p379 = scmp.ne.s32.totalorder %s374, %s376
    %p380 = scmp.eq.s32.totalorder %s25, 0
    %p381 = por %p379, %p380
    %p382 = scmp.ne.s32.totalorder %s374, %s376
    %p383 = scmp.eq.s32.totalorder %s30, 1
    %p384 = por %p382, %p383
    %p385 = scmp.ne.s32.totalorder %s376, %s377
    %p386 = scmp.eq.s32.totalorder %s30, 0
    %p387 = por %p385, %p386
    %p388 = scmp.ne.s32.totalorder %s376, %s377
    %p389 = scmp.eq.s32.totalorder %s31, 1
    %p390 = por %p388, %p389
    %p392 = scmp.ne.s32.totalorder %s377, %s391
    %p393 = scmp.eq.s32.totalorder %s31, 0
    %p394 = por %p392, %p393
    %s396 = sadd.s32 %s395, 1
    %p399 = scmp.eq.s32.totalorder %s25, 1
    %p400 = scmp.ne.s32.totalorder %s395, %s397
    %p401 = scmp.eq.s32.totalorder %s25, 0
    %p402 = por %p400, %p401
    %p403 = scmp.ne.s32.totalorder %s395, %s397
    %p404 = scmp.eq.s32.totalorder %s30, 1
    %p405 = por %p403, %p404
    %p406 = scmp.ne.s32.totalorder %s397, %s398
    %p407 = scmp.eq.s32.totalorder %s30, 0
    %p408 = por %p406, %p407
    %p409 = scmp.ne.s32.totalorder %s397, %s398
    %p410 = scmp.eq.s32.totalorder %s31, 1
    %p411 = por %p409, %p410
    %p413 = scmp.ne.s32.totalorder %s398, %s412
    %p414 = scmp.eq.s32.totalorder %s31, 0
    %p415 = por %p413, %p414
    %s417 = sadd.s32 %s416, 1
    %p420 = scmp.eq.s32.totalorder %s25, 1
    %p421 = scmp.ne.s32.totalorder %s416, %s418
    %p422 = scmp.eq.s32.totalorder %s25, 0
    %p423 = por %p421, %p422
    %p424 = scmp.ne.s32.totalorder %s416, %s418
    %p425 = scmp.eq.s32.totalorder %s30, 1
    %p426 = por %p424, %p425
    %p427 = scmp.ne.s32.totalorder %s418, %s419
    %p428 = scmp.eq.s32.totalorder %s30, 0
    %p429 = por %p427, %p428
    %p430 = scmp.ne.s32.totalorder %s418, %s419
    %p431 = scmp.eq.s32.totalorder %s31, 1
    %p432 = por %p430, %p431
    %p434 = scmp.ne.s32.totalorder %s419, %s433
    %p435 = scmp.eq.s32.totalorder %s31, 0
    %p436 = por %p434, %p435
    %s437 = ssub.s32 %s25, %s32
    %p438 = scmp.eq.s32.totalorder %s437, 0
    %s440 = sadd.s32 %s439, 1
    %s441 = scalar_select %p438, %s439, %s440
    %p444 = pneg %p438
    %p445 = scmp.eq.s32.totalorder %s25, 1
    %p446 = por %p444, %p445
    %p447 = scmp.ne.s32.totalorder %s439, %s442
    %p448 = scmp.eq.s32.totalorder %s25, 0
    %p449 = por %p447, %p448
    %p450 = scmp.ne.s32.totalorder %s439, %s442
    %p451 = scmp.eq.s32.totalorder %s30, 1
    %p452 = por %p450, %p451
    %p453 = scmp.ne.s32.totalorder %s442, %s443
    %p454 = scmp.eq.s32.totalorder %s30, 0
    %p455 = por %p453, %p454
    %p456 = scmp.ne.s32.totalorder %s442, %s443
    %p457 = scmp.eq.s32.totalorder %s31, 1
    %p458 = por %p456, %p457
    %p460 = scmp.ne.s32.totalorder %s443, %s459
    %p461 = scmp.eq.s32.totalorder %s31, 0
    %p462 = por %p460, %p461
    %p463 = scmp.le.s32.totalorder 1, %s25
    %p464 = scmp.lt.s32.totalorder %s25, 3
    %p465 = pnand %p463, %p464
    %p466 = pneg %p465
    // Predicated region
    $region9: #{cnn_forward.2} parent=5 // pred_check
      _
    $region10: #{cnn_forward.2} parent=5 // pred_check_branch
      %468 = sbr.rel (%p465) target = $region12
    $region11: #{cnn_forward.2} parent=5 // pred_region
      %s469 = ssub.s32 %s25, 1
      // Predicated region
      $region13: #{cnn_forward.2} parent=11 // pred_check
        %p470 = pneg %p72
      $region14: #{cnn_forward.2} parent=11 // pred_check_branch
        %472 = sbr.rel (%p470) target = $region16
      $region15: #{cnn_forward.2} parent=11 // pred_region
        _
      $region16: #{cnn_forward.2} parent=11 // pred_fallthru
        _
      // Predicated region
      $region17: #{cnn_forward.2} parent=11 // pred_check
        %p473 = pneg %p93
      $region18: #{cnn_forward.2} parent=11 // pred_check_branch
        %475 = sbr.rel (%p473) target = $region20
      $region19: #{cnn_forward.2} parent=11 // pred_region
        _
      $region20: #{cnn_forward.2} parent=11 // pred_fallthru
        _
      // Predicated region
      $region21: #{cnn_forward.2} parent=11 // pred_check
        %p476 = pneg %p114
      $region22: #{cnn_forward.2} parent=11 // pred_check_branch
        %478 = sbr.rel (%p476) target = $region24
      $region23: #{cnn_forward.2} parent=11 // pred_region
        _
      $region24: #{cnn_forward.2} parent=11 // pred_fallthru
        _
      // Predicated region
      $region25: #{cnn_forward.2} parent=11 // pred_check
        %p479 = pneg %p135
      $region26: #{cnn_forward.2} parent=11 // pred_check_branch
        %481 = sbr.rel (%p479) target = $region28
      $region27: #{cnn_forward.2} parent=11 // pred_region
        _
      $region28: #{cnn_forward.2} parent=11 // pred_fallthru
        _
      // Predicated region
      $region29: #{cnn_forward.2} parent=11 // pred_check
        %p482 = pneg %p156
      $region30: #{cnn_forward.2} parent=11 // pred_check_branch
        %484 = sbr.rel (%p482) target = $region32
      $region31: #{cnn_forward.2} parent=11 // pred_region
        _
      $region32: #{cnn_forward.2} parent=11 // pred_fallthru
        _
      // Predicated region
      $region33: #{cnn_forward.2} parent=11 // pred_check
        %p485 = pneg %p177
      $region34: #{cnn_forward.2} parent=11 // pred_check_branch
        %487 = sbr.rel (%p485) target = $region36
      $region35: #{cnn_forward.2} parent=11 // pred_region
        _
      $region36: #{cnn_forward.2} parent=11 // pred_fallthru
        _
      // Predicated region
      $region37: #{cnn_forward.2} parent=11 // pred_check
        %p488 = pneg %p198
      $region38: #{cnn_forward.2} parent=11 // pred_check_branch
        %490 = sbr.rel (%p488) target = $region40
      $region39: #{cnn_forward.2} parent=11 // pred_region
        _
      $region40: #{cnn_forward.2} parent=11 // pred_fallthru
        _
      // Predicated region
      $region41: #{cnn_forward.2} parent=11 // pred_check
        %p491 = pneg %p219
      $region42: #{cnn_forward.2} parent=11 // pred_check_branch
        %493 = sbr.rel (%p491) target = $region44
      $region43: #{cnn_forward.2} parent=11 // pred_region
        _
      $region44: #{cnn_forward.2} parent=11 // pred_fallthru
        _
      // Predicated region
      $region45: #{cnn_forward.2} parent=11 // pred_check
        %p494 = pneg %p240
      $region46: #{cnn_forward.2} parent=11 // pred_check_branch
        %496 = sbr.rel (%p494) target = $region48
      $region47: #{cnn_forward.2} parent=11 // pred_region
        _
      $region48: #{cnn_forward.2} parent=11 // pred_fallthru
        _
      // Predicated region
      $region49: #{cnn_forward.2} parent=11 // pred_check
        %p497 = pneg %p261
      $region50: #{cnn_forward.2} parent=11 // pred_check_branch
        %499 = sbr.rel (%p497) target = $region52
      $region51: #{cnn_forward.2} parent=11 // pred_region
        _
      $region52: #{cnn_forward.2} parent=11 // pred_fallthru
        _
      // Predicated region
      $region53: #{cnn_forward.2} parent=11 // pred_check
        %p500 = pneg %p282
      $region54: #{cnn_forward.2} parent=11 // pred_check_branch
        %502 = sbr.rel (%p500) target = $region56
      $region55: #{cnn_forward.2} parent=11 // pred_region
        _
      $region56: #{cnn_forward.2} parent=11 // pred_fallthru
        _
      // Predicated region
      $region57: #{cnn_forward.2} parent=11 // pred_check
        %p503 = pneg %p303
      $region58: #{cnn_forward.2} parent=11 // pred_check_branch
        %505 = sbr.rel (%p503) target = $region60
      $region59: #{cnn_forward.2} parent=11 // pred_region
        _
      $region60: #{cnn_forward.2} parent=11 // pred_fallthru
        _
      // Predicated region
      $region61: #{cnn_forward.2} parent=11 // pred_check
        %p506 = pneg %p324
      $region62: #{cnn_forward.2} parent=11 // pred_check_branch
        %508 = sbr.rel (%p506) target = $region64
      $region63: #{cnn_forward.2} parent=11 // pred_region
        _
      $region64: #{cnn_forward.2} parent=11 // pred_fallthru
        _
      // Predicated region
      $region65: #{cnn_forward.2} parent=11 // pred_check
        %p509 = pneg %p345
      $region66: #{cnn_forward.2} parent=11 // pred_check_branch
        %511 = sbr.rel (%p509) target = $region68
      $region67: #{cnn_forward.2} parent=11 // pred_region
        _
      $region68: #{cnn_forward.2} parent=11 // pred_fallthru
        _
      // Predicated region
      $region69: #{cnn_forward.2} parent=11 // pred_check
        %p512 = pneg %p366
      $region70: #{cnn_forward.2} parent=11 // pred_check_branch
        %514 = sbr.rel (%p512) target = $region72
      $region71: #{cnn_forward.2} parent=11 // pred_region
        _
      $region72: #{cnn_forward.2} parent=11 // pred_fallthru
        _
      // Predicated region
      $region73: #{cnn_forward.2} parent=11 // pred_check
        %p515 = pneg %p387
      $region74: #{cnn_forward.2} parent=11 // pred_check_branch
        %517 = sbr.rel (%p515) target = $region76
      $region75: #{cnn_forward.2} parent=11 // pred_region
        _
      $region76: #{cnn_forward.2} parent=11 // pred_fallthru
        _
      // Predicated region
      $region77: #{cnn_forward.2} parent=11 // pred_check
        %p518 = pneg %p408
      $region78: #{cnn_forward.2} parent=11 // pred_check_branch
        %520 = sbr.rel (%p518) target = $region80
      $region79: #{cnn_forward.2} parent=11 // pred_region
        _
      $region80: #{cnn_forward.2} parent=11 // pred_fallthru
        _
      // Predicated region
      $region81: #{cnn_forward.2} parent=11 // pred_check
        %p521 = pneg %p429
      $region82: #{cnn_forward.2} parent=11 // pred_check_branch
        %523 = sbr.rel (%p521) target = $region84
      $region83: #{cnn_forward.2} parent=11 // pred_region
        _
      $region84: #{cnn_forward.2} parent=11 // pred_fallthru
        _
    $region12: #{cnn_forward.2} parent=5 // pred_fallthru
      _
    %p524 = scmp.lt.s32.totalorder %s25, 2
    // Predicated region
    $region85: #{cnn_forward.2} parent=5 // pred_check
      %p525 = pneg %p524
    $region86: #{cnn_forward.2} parent=5 // pred_check_branch
      %527 = sbr.rel (%p525) target = $region88
    $region87: #{cnn_forward.2} parent=5 // pred_region
      // Predicated region
      $region89: #{cnn_forward.2} parent=87 // pred_check
        %p528 = pneg %p45
      $region90: #{cnn_forward.2} parent=87 // pred_check_branch
        %530 = sbr.rel (%p528) target = $region92
      $region91: #{cnn_forward.2} parent=87 // pred_region
        %p531 = scmp.lt.s32.totalorder %s25, 1
        %s532 = scalar_select %p531, %s25, 1
        %s533 = smul.addr %s532, 8
        %s534 = smul.addr %s533, 4
        %s535 = scalar_lea.vmem %s0, %s534
      $region92: #{cnn_forward.2} parent=87 // pred_fallthru
        _
    $region88: #{cnn_forward.2} parent=5 // pred_fallthru
      _
    %p536 = scmp.le.s32.totalorder 1, %s25
    %p537 = scmp.lt.s32.totalorder %s25, 3
    %p538 = pnand %p536, %p537
    %p539 = pneg %p538
    // Predicated region
    $region93: #{cnn_forward.2} parent=5 // pred_check
      _
    $region94: #{cnn_forward.2} parent=5 // pred_check_branch
      %541 = sbr.rel (%p538) target = $region96
    $region95: #{cnn_forward.2} parent=5 // pred_region
      %s542 = ssub.s32 %s25, 1
      %p543 = scmp.lt.s32.totalorder %s30, 1
      %s544 = scalar_select %p543, %s30, 1
      %s545 = smul.addr %s544, 8
      %s546 = smul.addr %s545, 4
      %s547 = scalar_lea.vmem %s0, %s546
      %p548 = pneg %p51
      %p549 = pneg %p48
      %p550 = pneg %p72
      %p551 = pneg %p69
      %p552 = pneg %p93
      %p553 = pneg %p90
      %p554 = pneg %p114
      %p555 = pneg %p111
      %p556 = pneg %p135
      %p557 = pneg %p132
      %p558 = pneg %p156
      %p559 = pneg %p153
      %p560 = pneg %p177
      %p561 = pneg %p174
      %p562 = pneg %p198
      %p563 = pneg %p195
      %p564 = pneg %p219
      %p565 = pneg %p216
      %p566 = pneg %p240
      %p567 = pneg %p237
      %p568 = pneg %p261
      %p569 = pneg %p258
      %p570 = pneg %p282
      %p571 = pneg %p279
      %p572 = pneg %p303
      %p573 = pneg %p300
      %p574 = pneg %p324
      %p575 = pneg %p321
      %p576 = pneg %p345
      %p577 = pneg %p342
      %p578 = pneg %p366
      %p579 = pneg %p363
      %p580 = pneg %p387
      %p581 = pneg %p384
      %p582 = pneg %p408
      %p583 = pneg %p405
      %p584 = pneg %p429
      %p585 = pneg %p426
      %p586 = pneg %p455
      %p587 = pneg %p452
      %p588 = scmp.lt.s32.totalorder %s30, 1
      %s589 = scalar_select %p588, %s30, 1
      %s590 = scalar_lea.vmem %s19, %s589
      %p591 = scmp.lt.s32.totalorder %s30, 1
      %s592 = scalar_select %p591, %s30, 1
      %s593 = smul.addr %s592, 8
      %s594 = smul.addr %s593, 4
      %s595 = scalar_lea.vmem %s0, %s594
      %p596 = scmp.lt.s32.totalorder %s30, 1
      %s597 = scalar_select %p596, %s30, 1
      %s598 = scalar_lea.vmem %s19, %s597
      %vm600 = vcmask 260096
      %601 = vst.msk [vmem:[#allocation2 + $0x1] sm:$0x7f] %vm600, 0.0
      %vm602 = vcmask 261120
      %603 = vst.msk [vmem:[#allocation2 + $0x48] sm:$0xff] %vm602, 0.0
      %vm604 = vcmask 253952
      %605 = vst.msk [vmem:[#allocation3 + $0x7] sm:$0x1] %vm604, 0.0
      %vm606 = vcmask 254976
      %607 = vst.msk [vmem:[#allocation3 + $0x18] sm:$0x3] %vm606, 0.0
      %vm608 = vcmask 516096
      %609 = vst.msk [vmem:[#allocation4 + $0x7] sm:$0x1] %vm608, 0.0
      %vm610 = vcmask 517120
      %611 = vst.msk [vmem:[#allocation4 + $0x18] sm:$0x3] %vm610, 0.0
      %v612 = vld [vmem:[%s595] sm:$0xf]
      %v613 = vld [vmem:[%s595 + $0x4] sm:$0xf]
      %v614 = vld [vmem:[%s595 + $0x8] sm:$0xf]
      %v615 = vld [vmem:[%s595 + $0xc] sm:$0xf]
      %v616 = vld [vmem:[%s595 + $0x10] sm:$0xf]
      %v617 = vld [vmem:[%s595 + $0x14] sm:$0xf]
      %v618 = vld [vmem:[%s595 + $0x18] sm:$0xf]
      %v619 = vld [vmem:[%s595 + $0x1c] sm:$0xf]
      %v620 = vld [vmem:[%s1] sm:$0xf]
      %v621 = vld [vmem:[%s1 + $0x4] sm:$0xf]
      %v630 = vunpack.c.l.b16 %v612
      %v631 = vunpack.c.l.b16 %v613
      %v632 = vunpack.c.l.b16 %v614
      %v633 = vunpack.c.l.b16 %v615
      %v634 = vunpack.c.l.b16 %v616
      %v635 = vunpack.c.l.b16 %v617
      %v636 = vunpack.c.l.b16 %v618
      %v637 = vunpack.c.l.b16 %v619
      %v638 = vpack.c.b16 %v631, %v630
      %v639 = vpack.c.b16 %v633, %v632
      %v640 = vpack.c.b16 %v635, %v634
      %v641 = vpack.c.b16 %v637, %v636
      %v644 = vunpack.c.l.b16 %v620
      %v645 = vunpack.c.l.b16 %v621
      %v646 = vpack.c.b16 %v645, %v644
      %vm648 = vcmask 130048
      %v650 = vsel %vm648, %v638, 0
      %v653 = vsel %vm648, %v639, 0
      %v656 = vsel %vm648, %v640, 0
      %v659 = vsel %vm648, %v641, 0
      %661 = vmatpush.bf16.msra.mxu0 0
      %662 = vmatpush.bf16.msra.mxu0 0
      %663 = vmatpush.bf16.msra.mxu0 0
      %664 = vmatpush.bf16.msra.mxu0 0
      %665 = vmatpush.bf16.msra.mxu0 0
      %666 = vmatpush.bf16.msra.mxu0 0
      %667 = vmatpush.bf16.msra.mxu0 0
      %668 = vmatpush.bf16.msra.mxu0 %v646
      %669 = vmatmul.bf16.gmra.mxu0 %v650
      %v670 = vpop.f32.mrf.mxu0
      %v671 = vadd.f32 0.0, %v670
      %v672 = vpop.f32.mrf.mxu0
      %v673 = vadd.f32 0.0, %v672
      %674 = vmatmul.bf16.gmra.mxu0 %v653
      %v675 = vpop.f32.mrf.mxu0
      %v676 = vadd.f32 0.0, %v675
      %v677 = vpop.f32.mrf.mxu0
      %v678 = vadd.f32 0.0, %v677
      %679 = vmatmul.bf16.gmra.mxu0 %v656
      %v680 = vpop.f32.mrf.mxu0
      %v681 = vadd.f32 0.0, %v680
      %v682 = vpop.f32.mrf.mxu0
      %v683 = vadd.f32 0.0, %v682
      %684 = vmatmul.bf16.gmra.mxu0 %v659
      %v685 = vpop.f32.mrf.mxu0
      %v686 = vadd.f32 0.0, %v685
      %v687 = vpop.f32.mrf.mxu0
      %v688 = vadd.f32 0.0, %v687
      %689 = vdwg.mxu0
      %v690 = vld [vmem:[%s2] sm:$0x1]
      %v692 = vperm.slane %v690, 0
      %v694 = vadd.f32 %v671, %v692
      %v695 = vadd.f32 %v673, %v692
      %v696 = vadd.f32 %v676, %v692
      %v697 = vadd.f32 %v678, %v692
      %v698 = vadd.f32 %v681, %v692
      %v699 = vadd.f32 %v683, %v692
      %v700 = vadd.f32 %v686, %v692
      %v701 = vadd.f32 %v688, %v692
      %vm702 = vcmp.ge.f32.partialorder %v694, 0.0
      %vm703 = vcmp.ge.f32.partialorder %v695, 0.0
      %vm704 = vcmp.ge.f32.partialorder %v696, 0.0
      %vm705 = vcmp.ge.f32.partialorder %v697, 0.0
      %vm706 = vcmp.ge.f32.partialorder %v698, 0.0
      %vm707 = vcmp.ge.f32.partialorder %v699, 0.0
      %vm708 = vcmp.ge.f32.partialorder %v700, 0.0
      %vm709 = vcmp.ge.f32.partialorder %v701, 0.0
      %v710 = vmul.f32 %v694, 0.01
      %v711 = vmul.f32 %v695, 0.01
      %v712 = vmul.f32 %v696, 0.01
      %v713 = vmul.f32 %v697, 0.01
      %v714 = vmul.f32 %v698, 0.01
      %v715 = vmul.f32 %v699, 0.01
      %v716 = vmul.f32 %v700, 0.01
      %v717 = vmul.f32 %v701, 0.01
      %v718 = vsel %vm702, %v694, %v710
      %v719 = vsel %vm703, %v695, %v711
      %v720 = vsel %vm704, %v696, %v712
      %v721 = vsel %vm705, %v697, %v713
      %v722 = vsel %vm706, %v698, %v714
      %v723 = vsel %vm707, %v699, %v715
      %v724 = vsel %vm708, %v700, %v716
      %v725 = vsel %vm709, %v701, %v717
      %726 = vst.msk [vmem:[#allocation2 + $0x8] sm:$0xff] %vm602, %v718
      %727 = vst.msk [vmem:[#allocation2 + $0x10] sm:$0xff] %vm602, %v719
      %728 = vst.msk [vmem:[#allocation2 + $0x18] sm:$0xff] %vm602, %v720
      %729 = vst.msk [vmem:[#allocation2 + $0x20] sm:$0xff] %vm602, %v721
      %730 = vst.msk [vmem:[#allocation2 + $0x28] sm:$0xff] %vm602, %v722
      %731 = vst.msk [vmem:[#allocation2 + $0x30] sm:$0xff] %vm602, %v723
      %732 = vst.msk [vmem:[#allocation2 + $0x38] sm:$0xff] %vm602, %v724
      %733 = vst.msk [vmem:[#allocation2 + $0x40] sm:$0xff] %vm602, %v725
      %v734 = vld [vmem:[%s5] sm:$0x1]
      %v735 = vld [vmem:[%s6] sm:$0x1]
      %s736 = scalar_lea.vmem [#allocation2], 1
      %v737 = vld [vmem:[%s736] ss:$4 sm:$0xff]
      %s738 = scalar_lea.vmem [#allocation2], 33
      %v739 = vld [vmem:[%s738] ss:$4 sm:$0xff]
      %s740 = scalar_lea.vmem [#allocation2], 2
      %v741 = vld [vmem:[%s740] ss:$4 sm:$0xff]
      %s742 = scalar_lea.vmem [#allocation2], 34
      %v743 = vld [vmem:[%s742] ss:$4 sm:$0xff]
      %s744 = scalar_lea.vmem [#allocation2], 3
      %v745 = vld [vmem:[%s744] ss:$4 sm:$0xff]
      %s746 = scalar_lea.vmem [#allocation2], 35
      %v747 = vld [vmem:[%s746] ss:$4 sm:$0xff]
      %s748 = scalar_lea.vmem [#allocation2], 4
      %v749 = vld [vmem:[%s748] ss:$4 sm:$0xff]
      %s750 = scalar_lea.vmem [#allocation2], 36
      %v751 = vld [vmem:[%s750] ss:$4 sm:$0xff]
      %s752 = scalar_lea.vmem [#allocation2], 5
      %v753 = vld [vmem:[%s752] ss:$4 sm:$0xff]
      %s754 = scalar_lea.vmem [#allocation2], 37
      %v755 = vld [vmem:[%s754] ss:$4 sm:$0xff]
      %s756 = scalar_lea.vmem [#allocation2], 6
      %v757 = vld [vmem:[%s756] ss:$4 sm:$0xff]
      %s758 = scalar_lea.vmem [#allocation2], 38
      %v759 = vld [vmem:[%s758] ss:$4 sm:$0xff]
      %s760 = scalar_lea.vmem [#allocation2], 7
      %v761 = vld [vmem:[%s760] ss:$4 sm:$0xff]
      %s762 = scalar_lea.vmem [#allocation2], 39
      %v763 = vld [vmem:[%s762] ss:$4 sm:$0xff]
      %s764 = scalar_lea.vmem [#allocation2], 8
      %v765 = vld [vmem:[%s764] ss:$4 sm:$0xff]
      %s766 = scalar_lea.vmem [#allocation2], 40
      %v767 = vld [vmem:[%s766] ss:$4 sm:$0xff]
      %s768 = scalar_lea.vmem [#allocation2], 9
      %v769 = vld [vmem:[%s768] ss:$4 sm:$0xff]
      %s770 = scalar_lea.vmem [#allocation2], 41
      %v771 = vld [vmem:[%s770] ss:$4 sm:$0xff]
      %s772 = scalar_lea.vmem [#allocation2], 10
      %v773 = vld [vmem:[%s772] ss:$4 sm:$0xff]
      %s774 = scalar_lea.vmem [#allocation2], 42
      %v775 = vld [vmem:[%s774] ss:$4 sm:$0xff]
      %s776 = scalar_lea.vmem [#allocation2], 11
      %v777 = vld [vmem:[%s776] ss:$4 sm:$0xff]
      %s778 = scalar_lea.vmem [#allocation2], 43
      %v779 = vld [vmem:[%s778] ss:$4 sm:$0xff]
      %s780 = scalar_lea.vmem [#allocation2], 12
      %v781 = vld [vmem:[%s780] ss:$4 sm:$0xff]
      %s782 = scalar_lea.vmem [#allocation2], 44
      %v783 = vld [vmem:[%s782] ss:$4 sm:$0xff]
      %s784 = scalar_lea.vmem [#allocation2], 13
      %v785 = vld [vmem:[%s784] ss:$4 sm:$0xff]
      %s786 = scalar_lea.vmem [#allocation2], 45
      %v787 = vld [vmem:[%s786] ss:$4 sm:$0xff]
      %s788 = scalar_lea.vmem [#allocation2], 14
      %v789 = vld [vmem:[%s788] ss:$4 sm:$0xff]
      %s790 = scalar_lea.vmem [#allocation2], 46
      %v791 = vld [vmem:[%s790] ss:$4 sm:$0xff]
      %s792 = scalar_lea.vmem [#allocation2], 15
      %v793 = vld [vmem:[%s792] ss:$4 sm:$0xff]
      %s794 = scalar_lea.vmem [#allocation2], 47
      %v795 = vld [vmem:[%s794] ss:$4 sm:$0xff]
      %s796 = scalar_lea.vmem [#allocation2], 16
      %v797 = vld [vmem:[%s796] ss:$4 sm:$0xff]
      %s798 = scalar_lea.vmem [#allocation2], 48
      %v799 = vld [vmem:[%s798] ss:$4 sm:$0xff]
      %802 = vrot.lane.b32.xlu0 %v741, 32
      %v803 = vpop.permute.xlu0 %802
      %804 = vrot.lane.b32.xlu0 %v743, 32
      %v805 = vpop.permute.xlu0 %804
      %810 = vrot.lane.b32.xlu0 %v745, 64
      %v811 = vpop.permute.xlu0 %810
      %812 = vrot.lane.b32.xlu0 %v747, 64
      %v813 = vpop.permute.xlu0 %812
      %818 = vrot.lane.b32.xlu0 %v749, 96
      %v819 = vpop.permute.xlu0 %818
      %820 = vrot.lane.b32.xlu0 %v751, 96
      %v821 = vpop.permute.xlu0 %820
      %826 = vrot.lane.b32.xlu0 %v757, 32
      %v827 = vpop.permute.xlu0 %826
      %828 = vrot.lane.b32.xlu0 %v759, 32
      %v829 = vpop.permute.xlu0 %828
      %834 = vrot.lane.b32.xlu0 %v761, 64
      %v835 = vpop.permute.xlu0 %834
      %836 = vrot.lane.b32.xlu0 %v763, 64
      %v837 = vpop.permute.xlu0 %836
      %842 = vrot.lane.b32.xlu0 %v765, 96
      %v843 = vpop.permute.xlu0 %842
      %844 = vrot.lane.b32.xlu0 %v767, 96
      %v845 = vpop.permute.xlu0 %844
      %850 = vrot.lane.b32.xlu0 %v773, 32
      %v851 = vpop.permute.xlu0 %850
      %852 = vrot.lane.b32.xlu0 %v775, 32
      %v853 = vpop.permute.xlu0 %852
      %858 = vrot.lane.b32.xlu0 %v777, 64
      %v859 = vpop.permute.xlu0 %858
      %860 = vrot.lane.b32.xlu0 %v779, 64
      %v861 = vpop.permute.xlu0 %860
      %866 = vrot.lane.b32.xlu0 %v781, 96
      %v867 = vpop.permute.xlu0 %866
      %868 = vrot.lane.b32.xlu0 %v783, 96
      %v869 = vpop.permute.xlu0 %868
      %874 = vrot.lane.b32.xlu0 %v789, 32
      %v875 = vpop.permute.xlu0 %874
      %876 = vrot.lane.b32.xlu0 %v791, 32
      %v877 = vpop.permute.xlu0 %876
      %882 = vrot.lane.b32.xlu0 %v793, 64
      %v883 = vpop.permute.xlu0 %882
      %884 = vrot.lane.b32.xlu0 %v795, 64
      %v885 = vpop.permute.xlu0 %884
      %890 = vrot.lane.b32.xlu0 %v797, 96
      %v891 = vpop.permute.xlu0 %890
      %892 = vrot.lane.b32.xlu0 %v799, 96
      %v893 = vpop.permute.xlu0 %892
      %v896 = vsel %vm602, %v737, %v803
      %v897 = vsel %vm602, %v739, %v805
      %vm898 = vcmask 523264
      %v899 = vsel %vm898, %v896, %v811
      %v900 = vsel %vm898, %v897, %v813
      %vm901 = vcmask 785408
      %v902 = vsel %vm901, %v899, %v819
      %v903 = vsel %vm901, %v900, %v821
      %v904 = vsel %vm602, %v753, %v827
      %v905 = vsel %vm602, %v755, %v829
      %v906 = vsel %vm898, %v904, %v835
      %v907 = vsel %vm898, %v905, %v837
      %v908 = vsel %vm901, %v906, %v843
      %v909 = vsel %vm901, %v907, %v845
      %v910 = vsel %vm602, %v769, %v851
      %v911 = vsel %vm602, %v771, %v853
      %v912 = vsel %vm898, %v910, %v859
      %v913 = vsel %vm898, %v911, %v861
      %v914 = vsel %vm901, %v912, %v867
      %v915 = vsel %vm901, %v913, %v869
      %v916 = vsel %vm602, %v785, %v875
      %v917 = vsel %vm602, %v787, %v877
      %v918 = vsel %vm898, %v916, %v883
      %v919 = vsel %vm898, %v917, %v885
      %v920 = vsel %vm901, %v918, %v891
      %v921 = vsel %vm901, %v919, %v893
      %v922 = vpack.c.bf16 %v908, %v902
      %v923 = vpack.c.bf16 %v920, %v914
      %v924 = vpack.c.bf16 %v909, %v903
      %v925 = vpack.c.bf16 %v921, %v915
      %v926 = vld [vmem:[%s3] sm:$0xf]
      %v927 = vld [vmem:[%s3 + $0x4] sm:$0xf]
      %v928 = vld [vmem:[%s3 + $0x8] sm:$0xf]
      %v929 = vld [vmem:[%s3 + $0xc] sm:$0xf]
      %v930 = vld [vmem:[%s3 + $0x10] sm:$0xf]
      %v931 = vld [vmem:[%s3 + $0x14] sm:$0xf]
      %v932 = vld [vmem:[%s3 + $0x18] sm:$0xf]
      %v933 = vld [vmem:[%s3 + $0x1c] sm:$0xf]
      %v934 = vld [vmem:[%s3 + $0x20] sm:$0xf]
      %v935 = vld [vmem:[%s3 + $0x24] sm:$0xf]
      %v936 = vld [vmem:[%s3 + $0x28] sm:$0xf]
      %v937 = vld [vmem:[%s3 + $0x2c] sm:$0xf]
      %v938 = vld [vmem:[%s3 + $0x30] sm:$0xf]
      %v939 = vld [vmem:[%s3 + $0x34] sm:$0xf]
      %v940 = vld [vmem:[%s3 + $0x38] sm:$0xf]
      %v941 = vld [vmem:[%s3 + $0x3c] sm:$0xf]
      %v942 = vld [vmem:[%s3 + $0x40] sm:$0xf]
      %v943 = vld [vmem:[%s3 + $0x44] sm:$0xf]
      %v944 = vld [vmem:[%s3 + $0x48] sm:$0xf]
      %v945 = vld [vmem:[%s3 + $0x4c] sm:$0xf]
      %v946 = vld [vmem:[%s3 + $0x50] sm:$0xf]
      %v947 = vld [vmem:[%s3 + $0x54] sm:$0xf]
      %v948 = vld [vmem:[%s3 + $0x58] sm:$0xf]
      %v949 = vld [vmem:[%s3 + $0x5c] sm:$0xf]
      %v950 = vld [vmem:[%s3 + $0x60] sm:$0xf]
      %v951 = vld [vmem:[%s3 + $0x64] sm:$0xf]
      %v952 = vld [vmem:[%s3 + $0x68] sm:$0xf]
      %v953 = vld [vmem:[%s3 + $0x6c] sm:$0xf]
      %v954 = vld [vmem:[%s3 + $0x70] sm:$0xf]
      %v955 = vld [vmem:[%s3 + $0x74] sm:$0xf]
      %v956 = vld [vmem:[%s3 + $0x78] sm:$0xf]
      %v957 = vld [vmem:[%s3 + $0x7c] sm:$0xf]
      %v958 = vld [vmem:[%s3 + $0x80] sm:$0xf]
      %v959 = vld [vmem:[%s3 + $0x84] sm:$0xf]
      %v960 = vld [vmem:[%s3 + $0x88] sm:$0xf]
      %v961 = vld [vmem:[%s3 + $0x8c] sm:$0xf]
      %v962 = vld [vmem:[%s3 + $0x90] sm:$0xf]
      %v963 = vld [vmem:[%s3 + $0x94] sm:$0xf]
      %v964 = vld [vmem:[%s3 + $0x98] sm:$0xf]
      %v965 = vld [vmem:[%s3 + $0x9c] sm:$0xf]
      %v966 = vld [vmem:[%s3 + $0xa0] sm:$0xf]
      %v967 = vld [vmem:[%s3 + $0xa4] sm:$0xf]
      %v968 = vld [vmem:[%s3 + $0xa8] sm:$0xf]
      %v969 = vld [vmem:[%s3 + $0xac] sm:$0xf]
      %v970 = vld [vmem:[%s3 + $0xb0] sm:$0xf]
      %v971 = vld [vmem:[%s3 + $0xb4] sm:$0xf]
      %v972 = vld [vmem:[%s3 + $0xb8] sm:$0xf]
      %v973 = vld [vmem:[%s3 + $0xbc] sm:$0xf]
      %v974 = vld [vmem:[%s3 + $0xc0] sm:$0xf]
      %v975 = vld [vmem:[%s3 + $0xc4] sm:$0xf]
      %v976 = vld [vmem:[%s3 + $0xc8] sm:$0xf]
      %v977 = vld [vmem:[%s3 + $0xcc] sm:$0xf]
      %v978 = vld [vmem:[%s3 + $0xd0] sm:$0xf]
      %v979 = vld [vmem:[%s3 + $0xd4] sm:$0xf]
      %v980 = vld [vmem:[%s3 + $0xd8] sm:$0xf]
      %v981 = vld [vmem:[%s3 + $0xdc] sm:$0xf]
      %v982 = vld [vmem:[%s3 + $0xe0] sm:$0xf]
      %v983 = vld [vmem:[%s3 + $0xe4] sm:$0xf]
      %v984 = vld [vmem:[%s3 + $0xe8] sm:$0xf]
      %v985 = vld [vmem:[%s3 + $0xec] sm:$0xf]
      %v986 = vld [vmem:[%s3 + $0xf0] sm:$0xf]
      %v987 = vld [vmem:[%s3 + $0xf4] sm:$0xf]
      %v988 = vld [vmem:[%s3 + $0xf8] sm:$0xf]
      %v989 = vld [vmem:[%s3 + $0xfc] sm:$0xf]
      %v994 = vunpack.c.l.b16 %v922
      %v995 = vunpack.c.h.b16 %v922
      %v996 = vunpack.c.l.b16 %v923
      %v997 = vunpack.c.h.b16 %v923
      %v998 = vunpack.c.l.b16 %v924
      %v999 = vunpack.c.h.b16 %v924
      %v1000 = vunpack.c.l.b16 %v925
      %v1001 = vunpack.c.h.b16 %v925
      %v1002 = vpack.c.b16 %v998, %v994
      %v1003 = vpack.c.b16 %v999, %v995
      %v1004 = vpack.c.b16 %v1000, %v996
      %v1005 = vpack.c.b16 %v1001, %v997
      %v1074 = vunpack.c.l.b16 %v926
      %v1075 = vunpack.c.l.b16 %v927
      %v1076 = vunpack.c.l.b16 %v928
      %v1077 = vunpack.c.l.b16 %v929
      %v1078 = vunpack.c.l.b16 %v930
      %v1079 = vunpack.c.l.b16 %v931
      %v1080 = vunpack.c.l.b16 %v932
      %v1081 = vunpack.c.l.b16 %v933
      %v1082 = vunpack.c.l.b16 %v934
      %v1083 = vunpack.c.l.b16 %v935
      %v1084 = vunpack.c.l.b16 %v936
      %v1085 = vunpack.c.l.b16 %v937
      %v1086 = vunpack.c.l.b16 %v938
      %v1087 = vunpack.c.l.b16 %v939
      %v1088 = vunpack.c.l.b16 %v940
      %v1089 = vunpack.c.l.b16 %v941
      %v1090 = vunpack.c.l.b16 %v942
      %v1091 = vunpack.c.l.b16 %v943
      %v1092 = vunpack.c.l.b16 %v944
      %v1093 = vunpack.c.l.b16 %v945
      %v1094 = vunpack.c.l.b16 %v946
      %v1095 = vunpack.c.l.b16 %v947
      %v1096 = vunpack.c.l.b16 %v948
      %v1097 = vunpack.c.l.b16 %v949
      %v1098 = vunpack.c.l.b16 %v950
      %v1099 = vunpack.c.l.b16 %v951
      %v1100 = vunpack.c.l.b16 %v952
      %v1101 = vunpack.c.l.b16 %v953
      %v1102 = vunpack.c.l.b16 %v954
      %v1103 = vunpack.c.l.b16 %v955
      %v1104 = vunpack.c.l.b16 %v956
      %v1105 = vunpack.c.l.b16 %v957
      %v1106 = vunpack.c.l.b16 %v958
      %v1107 = vunpack.c.l.b16 %v959
      %v1108 = vunpack.c.l.b16 %v960
      %v1109 = vunpack.c.l.b16 %v961
      %v1110 = vunpack.c.l.b16 %v962
      %v1111 = vunpack.c.l.b16 %v963
      %v1112 = vunpack.c.l.b16 %v964
      %v1113 = vunpack.c.l.b16 %v965
      %v1114 = vunpack.c.l.b16 %v966
      %v1115 = vunpack.c.l.b16 %v967
      %v1116 = vunpack.c.l.b16 %v968
      %v1117 = vunpack.c.l.b16 %v969
      %v1118 = vunpack.c.l.b16 %v970
      %v1119 = vunpack.c.l.b16 %v971
      %v1120 = vunpack.c.l.b16 %v972
      %v1121 = vunpack.c.l.b16 %v973
      %v1122 = vunpack.c.l.b16 %v974
      %v1123 = vunpack.c.l.b16 %v975
      %v1124 = vunpack.c.l.b16 %v976
      %v1125 = vunpack.c.l.b16 %v977
      %v1126 = vunpack.c.l.b16 %v978
      %v1127 = vunpack.c.l.b16 %v979
      %v1128 = vunpack.c.l.b16 %v980
      %v1129 = vunpack.c.l.b16 %v981
      %v1130 = vunpack.c.l.b16 %v982
      %v1131 = vunpack.c.l.b16 %v983
      %v1132 = vunpack.c.l.b16 %v984
      %v1133 = vunpack.c.l.b16 %v985
      %v1134 = vunpack.c.l.b16 %v986
      %v1135 = vunpack.c.l.b16 %v987
      %v1136 = vunpack.c.l.b16 %v988
      %v1137 = vunpack.c.l.b16 %v989
      %v1138 = vpack.c.b16 %v1075, %v1074
      %v1139 = vpack.c.b16 %v1077, %v1076
      %v1140 = vpack.c.b16 %v1079, %v1078
      %v1141 = vpack.c.b16 %v1081, %v1080
      %v1142 = vpack.c.b16 %v1083, %v1082
      %v1143 = vpack.c.b16 %v1085, %v1084
      %v1144 = vpack.c.b16 %v1087, %v1086
      %v1145 = vpack.c.b16 %v1089, %v1088
      %v1146 = vpack.c.b16 %v1091, %v1090
      %v1147 = vpack.c.b16 %v1093, %v1092
      %v1148 = vpack.c.b16 %v1095, %v1094
      %v1149 = vpack.c.b16 %v1097, %v1096
      %v1150 = vpack.c.b16 %v1099, %v1098
      %v1151 = vpack.c.b16 %v1101, %v1100
      %v1152 = vpack.c.b16 %v1103, %v1102
      %v1153 = vpack.c.b16 %v1105, %v1104
      %v1154 = vpack.c.b16 %v1107, %v1106
      %v1155 = vpack.c.b16 %v1109, %v1108
      %v1156 = vpack.c.b16 %v1111, %v1110
      %v1157 = vpack.c.b16 %v1113, %v1112
      %v1158 = vpack.c.b16 %v1115, %v1114
      %v1159 = vpack.c.b16 %v1117, %v1116
      %v1160 = vpack.c.b16 %v1119, %v1118
      %v1161 = vpack.c.b16 %v1121, %v1120
      %v1162 = vpack.c.b16 %v1123, %v1122
      %v1163 = vpack.c.b16 %v1125, %v1124
      %v1164 = vpack.c.b16 %v1127, %v1126
      %v1165 = vpack.c.b16 %v1129, %v1128
      %v1166 = vpack.c.b16 %v1131, %v1130
      %v1167 = vpack.c.b16 %v1133, %v1132
      %v1168 = vpack.c.b16 %v1135, %v1134
      %v1169 = vpack.c.b16 %v1137, %v1136
      %1202 = vmatpush.bf16.msra.mxu0 %v1145
      %1203 = vmatpush.bf16.msra.mxu0 %v1144
      %1204 = vmatpush.bf16.msra.mxu0 %v1143
      %1205 = vmatpush.bf16.msra.mxu0 %v1142
      %1206 = vmatpush.bf16.msra.mxu0 %v1141
      %1207 = vmatpush.bf16.msra.mxu0 %v1140
      %1208 = vmatpush.bf16.msra.mxu0 %v1139
      %1209 = vmatpush.bf16.msra.mxu0 %v1138
      %1210 = vmatmul.bf16.gmra.mxu0 %v1002
      %v1211 = vpop.f32.mrf.mxu0
      %v1212 = vadd.f32 0.0, %v1211
      %v1213 = vpop.f32.mrf.mxu0
      %v1214 = vadd.f32 0.0, %v1213
      %1215 = vdwg.mxu0
      %1216 = vmatpush.bf16.msra.mxu0 %v1153
      %1217 = vmatpush.bf16.msra.mxu0 %v1152
      %1218 = vmatpush.bf16.msra.mxu0 %v1151
      %1219 = vmatpush.bf16.msra.mxu0 %v1150
      %1220 = vmatpush.bf16.msra.mxu0 %v1149
      %1221 = vmatpush.bf16.msra.mxu0 %v1148
      %1222 = vmatpush.bf16.msra.mxu0 %v1147
      %1223 = vmatpush.bf16.msra.mxu0 %v1146
      %1224 = vmatmul.bf16.gmra.mxu0 %v1003
      %v1225 = vpop.f32.mrf.mxu0
      %v1226 = vadd.f32 %v1212, %v1225
      %v1227 = vpop.f32.mrf.mxu0
      %v1228 = vadd.f32 %v1214, %v1227
      %1229 = vdwg.mxu0
      %1230 = vmatpush.bf16.msra.mxu0 %v1161
      %1231 = vmatpush.bf16.msra.mxu0 %v1160
      %1232 = vmatpush.bf16.msra.mxu0 %v1159
      %1233 = vmatpush.bf16.msra.mxu0 %v1158
      %1234 = vmatpush.bf16.msra.mxu0 %v1157
      %1235 = vmatpush.bf16.msra.mxu0 %v1156
      %1236 = vmatpush.bf16.msra.mxu0 %v1155
      %1237 = vmatpush.bf16.msra.mxu0 %v1154
      %1238 = vmatmul.bf16.gmra.mxu0 %v1004
      %v1239 = vpop.f32.mrf.mxu0
      %v1240 = vadd.f32 %v1226, %v1239
      %v1241 = vpop.f32.mrf.mxu0
      %v1242 = vadd.f32 %v1228, %v1241
      %1243 = vdwg.mxu0
      %1244 = vmatpush.bf16.msra.mxu0 %v1169
      %1245 = vmatpush.bf16.msra.mxu0 %v1168
      %1246 = vmatpush.bf16.msra.mxu0 %v1167
      %1247 = vmatpush.bf16.msra.mxu0 %v1166
      %1248 = vmatpush.bf16.msra.mxu0 %v1165
      %1249 = vmatpush.bf16.msra.mxu0 %v1164
      %1250 = vmatpush.bf16.msra.mxu0 %v1163
      %1251 = vmatpush.bf16.msra.mxu0 %v1162
      %1252 = vmatmul.bf16.gmra.mxu0 %v1005
      %v1253 = vpop.f32.mrf.mxu0
      %v1254 = vadd.f32 %v1240, %v1253
      %v1255 = vpop.f32.mrf.mxu0
      %v1256 = vadd.f32 %v1242, %v1255
      %1257 = vdwg.mxu0
      %v1258 = vld [vmem:[%s4] sm:$0x1]
      %v1260 = vperm.slane %v1258, 0
      %v1262 = vadd.f32 %v1254, %v1260
      %v1263 = vadd.f32 %v1256, %v1260
      %vm1264 = vcmp.ge.f32.partialorder %v1262, 0.0
      %vm1265 = vcmp.ge.f32.partialorder %v1263, 0.0
      %v1266 = vmul.f32 %v1262, 0.01
      %v1267 = vmul.f32 %v1263, 0.01
      %v1268 = vsel %vm1264, %v1262, %v1266
      %v1269 = vsel %vm1265, %v1263, %v1267
      %v1271 = vperm.slane %v734, 0
      %v1273 = vmul.f32 %v1268, %v1271
      %v1274 = vmul.f32 %v1269, %v1271
      %v1276 = vperm.slane %v735, 0
      %v1278 = vadd.f32 %v1273, %v1276
      %v1279 = vadd.f32 %v1274, %v1276
      %s1280 = scalar_lea.vmem [#allocation2], 17
      %v1281 = vld [vmem:[%s1280] ss:$4 sm:$0xff]
      %s1282 = scalar_lea.vmem [#allocation2], 49
      %v1283 = vld [vmem:[%s1282] ss:$4 sm:$0xff]
      %1284 = vrot.lane.b32.xlu0 %v745, 32
      %v1285 = vpop.permute.xlu0 %1284
      %1286 = vrot.lane.b32.xlu0 %v747, 32
      %v1287 = vpop.permute.xlu0 %1286
      %1290 = vrot.lane.b32.xlu0 %v749, 64
      %v1291 = vpop.permute.xlu0 %1290
      %1292 = vrot.lane.b32.xlu0 %v751, 64
      %v1293 = vpop.permute.xlu0 %1292
      %1298 = vrot.lane.b32.xlu0 %v753, 96
      %v1299 = vpop.permute.xlu0 %1298
      %1300 = vrot.lane.b32.xlu0 %v755, 96
      %v1301 = vpop.permute.xlu0 %1300
      %1304 = vrot.lane.b32.xlu0 %v761, 32
      %v1305 = vpop.permute.xlu0 %1304
      %1306 = vrot.lane.b32.xlu0 %v763, 32
      %v1307 = vpop.permute.xlu0 %1306
      %1310 = vrot.lane.b32.xlu0 %v765, 64
      %v1311 = vpop.permute.xlu0 %1310
      %1312 = vrot.lane.b32.xlu0 %v767, 64
      %v1313 = vpop.permute.xlu0 %1312
      %1318 = vrot.lane.b32.xlu0 %v769, 96
      %v1319 = vpop.permute.xlu0 %1318
      %1320 = vrot.lane.b32.xlu0 %v771, 96
      %v1321 = vpop.permute.xlu0 %1320
      %1324 = vrot.lane.b32.xlu0 %v777, 32
      %v1325 = vpop.permute.xlu0 %1324
      %1326 = vrot.lane.b32.xlu0 %v779, 32
      %v1327 = vpop.permute.xlu0 %1326
      %1330 = vrot.lane.b32.xlu0 %v781, 64
      %v1331 = vpop.permute.xlu0 %1330
      %1332 = vrot.lane.b32.xlu0 %v783, 64
      %v1333 = vpop.permute.xlu0 %1332
      %1338 = vrot.lane.b32.xlu0 %v785, 96
      %v1339 = vpop.permute.xlu0 %1338
      %1340 = vrot.lane.b32.xlu0 %v787, 96
      %v1341 = vpop.permute.xlu0 %1340
      %1344 = vrot.lane.b32.xlu0 %v793, 32
      %v1345 = vpop.permute.xlu0 %1344
      %1346 = vrot.lane.b32.xlu0 %v795, 32
      %v1347 = vpop.permute.xlu0 %1346
      %1350 = vrot.lane.b32.xlu0 %v797, 64
      %v1351 = vpop.permute.xlu0 %1350
      %1352 = vrot.lane.b32.xlu0 %v799, 64
      %v1353 = vpop.permute.xlu0 %1352
      %1358 = vrot.lane.b32.xlu0 %v1281, 96
      %v1359 = vpop.permute.xlu0 %1358
      %1360 = vrot.lane.b32.xlu0 %v1283, 96
      %v1361 = vpop.permute.xlu0 %1360
      %v1364 = vsel %vm602, %v741, %v1285
      %v1365 = vsel %vm602, %v743, %v1287
      %v1366 = vsel %vm898, %v1364, %v1291
      %v1367 = vsel %vm898, %v1365, %v1293
      %v1368 = vsel %vm901, %v1366, %v1299
      %v1369 = vsel %vm901, %v1367, %v1301
      %v1370 = vsel %vm602, %v757, %v1305
      %v1371 = vsel %vm602, %v759, %v1307
      %v1372 = vsel %vm898, %v1370, %v1311
      %v1373 = vsel %vm898, %v1371, %v1313
      %v1374 = vsel %vm901, %v1372, %v1319
      %v1375 = vsel %vm901, %v1373, %v1321
      %v1376 = vsel %vm602, %v773, %v1325
      %v1377 = vsel %vm602, %v775, %v1327
      %v1378 = vsel %vm898, %v1376, %v1331
      %v1379 = vsel %vm898, %v1377, %v1333
      %v1380 = vsel %vm901, %v1378, %v1339
      %v1381 = vsel %vm901, %v1379, %v1341
      %v1382 = vsel %vm602, %v789, %v1345
      %v1383 = vsel %vm602, %v791, %v1347
      %v1384 = vsel %vm898, %v1382, %v1351
      %v1385 = vsel %vm898, %v1383, %v1353
      %v1386 = vsel %vm901, %v1384, %v1359
      %v1387 = vsel %vm901, %v1385, %v1361
      %v1388 = vpack.c.bf16 %v1374, %v1368
      %v1389 = vpack.c.bf16 %v1386, %v1380
      %v1390 = vpack.c.bf16 %v1375, %v1369
      %v1391 = vpack.c.bf16 %v1387, %v1381
      %v1396 = vunpack.c.l.b16 %v1388
      %v1397 = vunpack.c.h.b16 %v1388
      %v1398 = vunpack.c.l.b16 %v1389
      %v1399 = vunpack.c.h.b16 %v1389
      %v1400 = vunpack.c.l.b16 %v1390
      %v1401 = vunpack.c.h.b16 %v1390
      %v1402 = vunpack.c.l.b16 %v1391
      %v1403 = vunpack.c.h.b16 %v1391
      %v1404 = vpack.c.b16 %v1400, %v1396
      %v1405 = vpack.c.b16 %v1401, %v1397
      %v1406 = vpack.c.b16 %v1402, %v1398
      %v1407 = vpack.c.b16 %v1403, %v1399
      %1412 = vmatpush.bf16.msra.mxu0 %v1145
      %1413 = vmatpush.bf16.msra.mxu0 %v1144
      %1414 = vmatpush.bf16.msra.mxu0 %v1143
      %1415 = vmatpush.bf16.msra.mxu0 %v1142
      %1416 = vmatpush.bf16.msra.mxu0 %v1141
      %1417 = vmatpush.bf16.msra.mxu0 %v1140
      %1418 = vmatpush.bf16.msra.mxu0 %v1139
      %1419 = vmatpush.bf16.msra.mxu0 %v1138
      %1420 = vmatmul.bf16.gmra.mxu0 %v1404
      %v1421 = vpop.f32.mrf.mxu0
      %v1422 = vadd.f32 0.0, %v1421
      %v1423 = vpop.f32.mrf.mxu0
      %v1424 = vadd.f32 0.0, %v1423
      %1425 = vdwg.mxu0
      %1426 = vmatpush.bf16.msra.mxu0 %v1153
      %1427 = vmatpush.bf16.msra.mxu0 %v1152
      %1428 = vmatpush.bf16.msra.mxu0 %v1151
      %1429 = vmatpush.bf16.msra.mxu0 %v1150
      %1430 = vmatpush.bf16.msra.mxu0 %v1149
      %1431 = vmatpush.bf16.msra.mxu0 %v1148
      %1432 = vmatpush.bf16.msra.mxu0 %v1147
      %1433 = vmatpush.bf16.msra.mxu0 %v1146
      %1434 = vmatmul.bf16.gmra.mxu0 %v1405
      %v1435 = vpop.f32.mrf.mxu0
      %v1436 = vadd.f32 %v1422, %v1435
      %v1437 = vpop.f32.mrf.mxu0
      %v1438 = vadd.f32 %v1424, %v1437
      %1439 = vdwg.mxu0
      %1440 = vmatpush.bf16.msra.mxu0 %v1161
      %1441 = vmatpush.bf16.msra.mxu0 %v1160
      %1442 = vmatpush.bf16.msra.mxu0 %v1159
      %1443 = vmatpush.bf16.msra.mxu0 %v1158
      %1444 = vmatpush.bf16.msra.mxu0 %v1157
      %1445 = vmatpush.bf16.msra.mxu0 %v1156
      %1446 = vmatpush.bf16.msra.mxu0 %v1155
      %1447 = vmatpush.bf16.msra.mxu0 %v1154
      %1448 = vmatmul.bf16.gmra.mxu0 %v1406
      %v1449 = vpop.f32.mrf.mxu0
      %v1450 = vadd.f32 %v1436, %v1449
      %v1451 = vpop.f32.mrf.mxu0
      %v1452 = vadd.f32 %v1438, %v1451
      %1453 = vdwg.mxu0
      %1454 = vmatpush.bf16.msra.mxu0 %v1169
      %1455 = vmatpush.bf16.msra.mxu0 %v1168
      %1456 = vmatpush.bf16.msra.mxu0 %v1167
      %1457 = vmatpush.bf16.msra.mxu0 %v1166
      %1458 = vmatpush.bf16.msra.mxu0 %v1165
      %1459 = vmatpush.bf16.msra.mxu0 %v1164
      %1460 = vmatpush.bf16.msra.mxu0 %v1163
      %1461 = vmatpush.bf16.msra.mxu0 %v1162
      %1462 = vmatmul.bf16.gmra.mxu0 %v1407
      %v1463 = vpop.f32.mrf.mxu0
      %v1464 = vadd.f32 %v1450, %v1463
      %v1465 = vpop.f32.mrf.mxu0
      %v1466 = vadd.f32 %v1452, %v1465
      %1467 = vdwg.mxu0
      %v1468 = vadd.f32 %v1464, %v1260
      %v1469 = vadd.f32 %v1466, %v1260
      %vm1470 = vcmp.ge.f32.partialorder %v1468, 0.0
      %vm1471 = vcmp.ge.f32.partialorder %v1469, 0.0
      %v1472 = vmul.f32 %v1468, 0.01
      %v1473 = vmul.f32 %v1469, 0.01
      %v1474 = vsel %vm1470, %v1468, %v1472
      %v1475 = vsel %vm1471, %v1469, %v1473
      %v1476 = vmul.f32 %v1474, %v1271
      %v1477 = vmul.f32 %v1475, %v1271
      %v1478 = vadd.f32 %v1476, %v1276
      %v1479 = vadd.f32 %v1477, %v1276
      %v1480 = vmax.f32 %v1278, %v1478
      %v1481 = vmax.f32 %v1279, %v1479
      %s1482 = scalar_lea.vmem [#allocation2], 18
      %v1483 = vld [vmem:[%s1482] ss:$4 sm:$0xff]
      %s1484 = scalar_lea.vmem [#allocation2], 50
      %v1485 = vld [vmem:[%s1484] ss:$4 sm:$0xff]
      %1486 = vrot.lane.b32.xlu0 %v749, 32
      %v1487 = vpop.permute.xlu0 %1486
      %1488 = vrot.lane.b32.xlu0 %v751, 32
      %v1489 = vpop.permute.xlu0 %1488
      %1492 = vrot.lane.b32.xlu0 %v753, 64
      %v1493 = vpop.permute.xlu0 %1492
      %1494 = vrot.lane.b32.xlu0 %v755, 64
      %v1495 = vpop.permute.xlu0 %1494
      %1498 = vrot.lane.b32.xlu0 %v757, 96
      %v1499 = vpop.permute.xlu0 %1498
      %1500 = vrot.lane.b32.xlu0 %v759, 96
      %v1501 = vpop.permute.xlu0 %1500
      %1504 = vrot.lane.b32.xlu0 %v765, 32
      %v1505 = vpop.permute.xlu0 %1504
      %1506 = vrot.lane.b32.xlu0 %v767, 32
      %v1507 = vpop.permute.xlu0 %1506
      %1510 = vrot.lane.b32.xlu0 %v769, 64
      %v1511 = vpop.permute.xlu0 %1510
      %1512 = vrot.lane.b32.xlu0 %v771, 64
      %v1513 = vpop.permute.xlu0 %1512
      %1516 = vrot.lane.b32.xlu0 %v773, 96
      %v1517 = vpop.permute.xlu0 %1516
      %1518 = vrot.lane.b32.xlu0 %v775, 96
      %v1519 = vpop.permute.xlu0 %1518
      %1522 = vrot.lane.b32.xlu0 %v781, 32
      %v1523 = vpop.permute.xlu0 %1522
      %1524 = vrot.lane.b32.xlu0 %v783, 32
      %v1525 = vpop.permute.xlu0 %1524
      %1528 = vrot.lane.b32.xlu0 %v785, 64
      %v1529 = vpop.permute.xlu0 %1528
      %1530 = vrot.lane.b32.xlu0 %v787, 64
      %v1531 = vpop.permute.xlu0 %1530
      %1534 = vrot.lane.b32.xlu0 %v789, 96
      %v1535 = vpop.permute.xlu0 %1534
      %1536 = vrot.lane.b32.xlu0 %v791, 96
      %v1537 = vpop.permute.xlu0 %1536
      %1540 = vrot.lane.b32.xlu0 %v797, 32
      %v1541 = vpop.permute.xlu0 %1540
      %1542 = vrot.lane.b32.xlu0 %v799, 32
      %v1543 = vpop.permute.xlu0 %1542
      %1546 = vrot.lane.b32.xlu0 %v1281, 64
      %v1547 = vpop.permute.xlu0 %1546
      %1548 = vrot.lane.b32.xlu0 %v1283, 64
      %v1549 = vpop.permute.xlu0 %1548
      %1554 = vrot.lane.b32.xlu0 %v1483, 96
      %v1555 = vpop.permute.xlu0 %1554
      %1556 = vrot.lane.b32.xlu0 %v1485, 96
      %v1557 = vpop.permute.xlu0 %1556
      %v1560 = vsel %vm602, %v745, %v1487
      %v1561 = vsel %vm602, %v747, %v1489
      %v1562 = vsel %vm898, %v1560, %v1493
      %v1563 = vsel %vm898, %v1561, %v1495
      %v1564 = vsel %vm901, %v1562, %v1499
      %v1565 = vsel %vm901, %v1563, %v1501
      %v1566 = vsel %vm602, %v761, %v1505
      %v1567 = vsel %vm602, %v763, %v1507
      %v1568 = vsel %vm898, %v1566, %v1511
      %v1569 = vsel %vm898, %v1567, %v1513
      %v1570 = vsel %vm901, %v1568, %v1517
      %v1571 = vsel %vm901, %v1569, %v1519
      %v1572 = vsel %vm602, %v777, %v1523
      %v1573 = vsel %vm602, %v779, %v1525
      %v1574 = vsel %vm898, %v1572, %v1529
      %v1575 = vsel %vm898, %v1573, %v1531
      %v1576 = vsel %vm901, %v1574, %v1535
      %v1577 = vsel %vm901, %v1575, %v1537
      %v1578 = vsel %vm602, %v793, %v1541
      %v1579 = vsel %vm602, %v795, %v1543
      %v1580 = vsel %vm898, %v1578, %v1547
      %v1581 = vsel %vm898, %v1579, %v1549
      %v1582 = vsel %vm901, %v1580, %v1555
      %v1583 = vsel %vm901, %v1581, %v1557
      %v1584 = vpack.c.bf16 %v1570, %v1564
      %v1585 = vpack.c.bf16 %v1582, %v1576
      %v1586 = vpack.c.bf16 %v1571, %v1565
      %v1587 = vpack.c.bf16 %v1583, %v1577
      %v1592 = vunpack.c.l.b16 %v1584
      %v1593 = vunpack.c.h.b16 %v1584
      %v1594 = vunpack.c.l.b16 %v1585
      %v1595 = vunpack.c.h.b16 %v1585
      %v1596 = vunpack.c.l.b16 %v1586
      %v1597 = vunpack.c.h.b16 %v1586
      %v1598 = vunpack.c.l.b16 %v1587
      %v1599 = vunpack.c.h.b16 %v1587
      %v1600 = vpack.c.b16 %v1596, %v1592
      %v1601 = vpack.c.b16 %v1597, %v1593
      %v1602 = vpack.c.b16 %v1598, %v1594
      %v1603 = vpack.c.b16 %v1599, %v1595
      %1608 = vmatpush.bf16.msra.mxu0 %v1145
      %1609 = vmatpush.bf16.msra.mxu0 %v1144
      %1610 = vmatpush.bf16.msra.mxu0 %v1143
      %1611 = vmatpush.bf16.msra.mxu0 %v1142
      %1612 = vmatpush.bf16.msra.mxu0 %v1141
      %1613 = vmatpush.bf16.msra.mxu0 %v1140
      %1614 = vmatpush.bf16.msra.mxu0 %v1139
      %1615 = vmatpush.bf16.msra.mxu0 %v1138
      %1616 = vmatmul.bf16.gmra.mxu0 %v1600
      %v1617 = vpop.f32.mrf.mxu0
      %v1618 = vadd.f32 0.0, %v1617
      %v1619 = vpop.f32.mrf.mxu0
      %v1620 = vadd.f32 0.0, %v1619
      %1621 = vdwg.mxu0
      %1622 = vmatpush.bf16.msra.mxu0 %v1153
      %1623 = vmatpush.bf16.msra.mxu0 %v1152
      %1624 = vmatpush.bf16.msra.mxu0 %v1151
      %1625 = vmatpush.bf16.msra.mxu0 %v1150
      %1626 = vmatpush.bf16.msra.mxu0 %v1149
      %1627 = vmatpush.bf16.msra.mxu0 %v1148
      %1628 = vmatpush.bf16.msra.mxu0 %v1147
      %1629 = vmatpush.bf16.msra.mxu0 %v1146
      %1630 = vmatmul.bf16.gmra.mxu0 %v1601
      %v1631 = vpop.f32.mrf.mxu0
      %v1632 = vadd.f32 %v1618, %v1631
      %v1633 = vpop.f32.mrf.mxu0
      %v1634 = vadd.f32 %v1620, %v1633
      %1635 = vdwg.mxu0
      %1636 = vmatpush.bf16.msra.mxu0 %v1161
      %1637 = vmatpush.bf16.msra.mxu0 %v1160
      %1638 = vmatpush.bf16.msra.mxu0 %v1159
      %1639 = vmatpush.bf16.msra.mxu0 %v1158
      %1640 = vmatpush.bf16.msra.mxu0 %v1157
      %1641 = vmatpush.bf16.msra.mxu0 %v1156
      %1642 = vmatpush.bf16.msra.mxu0 %v1155
      %1643 = vmatpush.bf16.msra.mxu0 %v1154
      %1644 = vmatmul.bf16.gmra.mxu0 %v1602
      %v1645 = vpop.f32.mrf.mxu0
      %v1646 = vadd.f32 %v1632, %v1645
      %v1647 = vpop.f32.mrf.mxu0
      %v1648 = vadd.f32 %v1634, %v1647
      %1649 = vdwg.mxu0
      %1650 = vmatpush.bf16.msra.mxu0 %v1169
      %1651 = vmatpush.bf16.msra.mxu0 %v1168
      %1652 = vmatpush.bf16.msra.mxu0 %v1167
      %1653 = vmatpush.bf16.msra.mxu0 %v1166
      %1654 = vmatpush.bf16.msra.mxu0 %v1165
      %1655 = vmatpush.bf16.msra.mxu0 %v1164
      %1656 = vmatpush.bf16.msra.mxu0 %v1163
      %1657 = vmatpush.bf16.msra.mxu0 %v1162
      %1658 = vmatmul.bf16.gmra.mxu0 %v1603
      %v1659 = vpop.f32.mrf.mxu0
      %v1660 = vadd.f32 %v1646, %v1659
      %v1661 = vpop.f32.mrf.mxu0
      %v1662 = vadd.f32 %v1648, %v1661
      %1663 = vdwg.mxu0
      %v1664 = vadd.f32 %v1660, %v1260
      %v1665 = vadd.f32 %v1662, %v1260
      %vm1666 = vcmp.ge.f32.partialorder %v1664, 0.0
      %vm1667 = vcmp.ge.f32.partialorder %v1665, 0.0
      %v1668 = vmul.f32 %v1664, 0.01
      %v1669 = vmul.f32 %v1665, 0.01
      %v1670 = vsel %vm1666, %v1664, %v1668
      %v1671 = vsel %vm1667, %v1665, %v1669
      %v1672 = vmul.f32 %v1670, %v1271
      %v1673 = vmul.f32 %v1671, %v1271
      %v1674 = vadd.f32 %v1672, %v1276
      %v1675 = vadd.f32 %v1673, %v1276
      %v1676 = vmax.f32 %v1480, %v1674
      %v1677 = vmax.f32 %v1481, %v1675
      %s1678 = scalar_lea.vmem [#allocation2], 19
      %v1679 = vld [vmem:[%s1678] ss:$4 sm:$0xff]
      %s1680 = scalar_lea.vmem [#allocation2], 51
      %v1681 = vld [vmem:[%s1680] ss:$4 sm:$0xff]
      %1682 = vrot.lane.b32.xlu0 %v753, 32
      %v1683 = vpop.permute.xlu0 %1682
      %1684 = vrot.lane.b32.xlu0 %v755, 32
      %v1685 = vpop.permute.xlu0 %1684
      %1688 = vrot.lane.b32.xlu0 %v757, 64
      %v1689 = vpop.permute.xlu0 %1688
      %1690 = vrot.lane.b32.xlu0 %v759, 64
      %v1691 = vpop.permute.xlu0 %1690
      %1694 = vrot.lane.b32.xlu0 %v761, 96
      %v1695 = vpop.permute.xlu0 %1694
      %1696 = vrot.lane.b32.xlu0 %v763, 96
      %v1697 = vpop.permute.xlu0 %1696
      %1700 = vrot.lane.b32.xlu0 %v769, 32
      %v1701 = vpop.permute.xlu0 %1700
      %1702 = vrot.lane.b32.xlu0 %v771, 32
      %v1703 = vpop.permute.xlu0 %1702
      %1706 = vrot.lane.b32.xlu0 %v773, 64
      %v1707 = vpop.permute.xlu0 %1706
      %1708 = vrot.lane.b32.xlu0 %v775, 64
      %v1709 = vpop.permute.xlu0 %1708
      %1712 = vrot.lane.b32.xlu0 %v777, 96
      %v1713 = vpop.permute.xlu0 %1712
      %1714 = vrot.lane.b32.xlu0 %v779, 96
      %v1715 = vpop.permute.xlu0 %1714
      %1718 = vrot.lane.b32.xlu0 %v785, 32
      %v1719 = vpop.permute.xlu0 %1718
      %1720 = vrot.lane.b32.xlu0 %v787, 32
      %v1721 = vpop.permute.xlu0 %1720
      %1724 = vrot.lane.b32.xlu0 %v789, 64
      %v1725 = vpop.permute.xlu0 %1724
      %1726 = vrot.lane.b32.xlu0 %v791, 64
      %v1727 = vpop.permute.xlu0 %1726
      %1730 = vrot.lane.b32.xlu0 %v793, 96
      %v1731 = vpop.permute.xlu0 %1730
      %1732 = vrot.lane.b32.xlu0 %v795, 96
      %v1733 = vpop.permute.xlu0 %1732
      %1736 = vrot.lane.b32.xlu0 %v1281, 32
      %v1737 = vpop.permute.xlu0 %1736
      %1738 = vrot.lane.b32.xlu0 %v1283, 32
      %v1739 = vpop.permute.xlu0 %1738
      %1742 = vrot.lane.b32.xlu0 %v1483, 64
      %v1743 = vpop.permute.xlu0 %1742
      %1744 = vrot.lane.b32.xlu0 %v1485, 64
      %v1745 = vpop.permute.xlu0 %1744
      %1750 = vrot.lane.b32.xlu0 %v1679, 96
      %v1751 = vpop.permute.xlu0 %1750
      %1752 = vrot.lane.b32.xlu0 %v1681, 96
      %v1753 = vpop.permute.xlu0 %1752
      %v1756 = vsel %vm602, %v749, %v1683
      %v1757 = vsel %vm602, %v751, %v1685
      %v1758 = vsel %vm898, %v1756, %v1689
      %v1759 = vsel %vm898, %v1757, %v1691
      %v1760 = vsel %vm901, %v1758, %v1695
      %v1761 = vsel %vm901, %v1759, %v1697
      %v1762 = vsel %vm602, %v765, %v1701
      %v1763 = vsel %vm602, %v767, %v1703
      %v1764 = vsel %vm898, %v1762, %v1707
      %v1765 = vsel %vm898, %v1763, %v1709
      %v1766 = vsel %vm901, %v1764, %v1713
      %v1767 = vsel %vm901, %v1765, %v1715
      %v1768 = vsel %vm602, %v781, %v1719
      %v1769 = vsel %vm602, %v783, %v1721
      %v1770 = vsel %vm898, %v1768, %v1725
      %v1771 = vsel %vm898, %v1769, %v1727
      %v1772 = vsel %vm901, %v1770, %v1731
      %v1773 = vsel %vm901, %v1771, %v1733
      %v1774 = vsel %vm602, %v797, %v1737
      %v1775 = vsel %vm602, %v799, %v1739
      %v1776 = vsel %vm898, %v1774, %v1743
      %v1777 = vsel %vm898, %v1775, %v1745
      %v1778 = vsel %vm901, %v1776, %v1751
      %v1779 = vsel %vm901, %v1777, %v1753
      %v1780 = vpack.c.bf16 %v1766, %v1760
      %v1781 = vpack.c.bf16 %v1778, %v1772
      %v1782 = vpack.c.bf16 %v1767, %v1761
      %v1783 = vpack.c.bf16 %v1779, %v1773
      %v1788 = vunpack.c.l.b16 %v1780
      %v1789 = vunpack.c.h.b16 %v1780
      %v1790 = vunpack.c.l.b16 %v1781
      %v1791 = vunpack.c.h.b16 %v1781
      %v1792 = vunpack.c.l.b16 %v1782
      %v1793 = vunpack.c.h.b16 %v1782
      %v1794 = vunpack.c.l.b16 %v1783
      %v1795 = vunpack.c.h.b16 %v1783
      %v1796 = vpack.c.b16 %v1792, %v1788
      %v1797 = vpack.c.b16 %v1793, %v1789
      %v1798 = vpack.c.b16 %v1794, %v1790
      %v1799 = vpack.c.b16 %v1795, %v1791
      %1804 = vmatpush.bf16.msra.mxu0 %v1145
      %1805 = vmatpush.bf16.msra.mxu0 %v1144
      %1806 = vmatpush.bf16.msra.mxu0 %v1143
      %1807 = vmatpush.bf16.msra.mxu0 %v1142
      %1808 = vmatpush.bf16.msra.mxu0 %v1141
      %1809 = vmatpush.bf16.msra.mxu0 %v1140
      %1810 = vmatpush.bf16.msra.mxu0 %v1139
      %1811 = vmatpush.bf16.msra.mxu0 %v1138
      %1812 = vmatmul.bf16.gmra.mxu0 %v1796
      %v1813 = vpop.f32.mrf.mxu0
      %v1814 = vadd.f32 0.0, %v1813
      %v1815 = vpop.f32.mrf.mxu0
      %v1816 = vadd.f32 0.0, %v1815
      %1817 = vdwg.mxu0
      %1818 = vmatpush.bf16.msra.mxu0 %v1153
      %1819 = vmatpush.bf16.msra.mxu0 %v1152
      %1820 = vmatpush.bf16.msra.mxu0 %v1151
      %1821 = vmatpush.bf16.msra.mxu0 %v1150
      %1822 = vmatpush.bf16.msra.mxu0 %v1149
      %1823 = vmatpush.bf16.msra.mxu0 %v1148
      %1824 = vmatpush.bf16.msra.mxu0 %v1147
      %1825 = vmatpush.bf16.msra.mxu0 %v1146
      %1826 = vmatmul.bf16.gmra.mxu0 %v1797
      %v1827 = vpop.f32.mrf.mxu0
      %v1828 = vadd.f32 %v1814, %v1827
      %v1829 = vpop.f32.mrf.mxu0
      %v1830 = vadd.f32 %v1816, %v1829
      %1831 = vdwg.mxu0
      %1832 = vmatpush.bf16.msra.mxu0 %v1161
      %1833 = vmatpush.bf16.msra.mxu0 %v1160
      %1834 = vmatpush.bf16.msra.mxu0 %v1159
      %1835 = vmatpush.bf16.msra.mxu0 %v1158
      %1836 = vmatpush.bf16.msra.mxu0 %v1157
      %1837 = vmatpush.bf16.msra.mxu0 %v1156
      %1838 = vmatpush.bf16.msra.mxu0 %v1155
      %1839 = vmatpush.bf16.msra.mxu0 %v1154
      %1840 = vmatmul.bf16.gmra.mxu0 %v1798
      %v1841 = vpop.f32.mrf.mxu0
      %v1842 = vadd.f32 %v1828, %v1841
      %v1843 = vpop.f32.mrf.mxu0
      %v1844 = vadd.f32 %v1830, %v1843
      %1845 = vdwg.mxu0
      %1846 = vmatpush.bf16.msra.mxu0 %v1169
      %1847 = vmatpush.bf16.msra.mxu0 %v1168
      %1848 = vmatpush.bf16.msra.mxu0 %v1167
      %1849 = vmatpush.bf16.msra.mxu0 %v1166
      %1850 = vmatpush.bf16.msra.mxu0 %v1165
      %1851 = vmatpush.bf16.msra.mxu0 %v1164
      %1852 = vmatpush.bf16.msra.mxu0 %v1163
      %1853 = vmatpush.bf16.msra.mxu0 %v1162
      %1854 = vmatmul.bf16.gmra.mxu0 %v1799
      %v1855 = vpop.f32.mrf.mxu0
      %v1856 = vadd.f32 %v1842, %v1855
      %v1857 = vpop.f32.mrf.mxu0
      %v1858 = vadd.f32 %v1844, %v1857
      %1859 = vdwg.mxu0
      %v1860 = vadd.f32 %v1856, %v1260
      %v1861 = vadd.f32 %v1858, %v1260
      %vm1862 = vcmp.ge.f32.partialorder %v1860, 0.0
      %vm1863 = vcmp.ge.f32.partialorder %v1861, 0.0
      %v1864 = vmul.f32 %v1860, 0.01
      %v1865 = vmul.f32 %v1861, 0.01
      %v1866 = vsel %vm1862, %v1860, %v1864
      %v1867 = vsel %vm1863, %v1861, %v1865
      %v1868 = vmul.f32 %v1866, %v1271
      %v1869 = vmul.f32 %v1867, %v1271
      %v1870 = vadd.f32 %v1868, %v1276
      %v1871 = vadd.f32 %v1869, %v1276
      %v1872 = vmax.f32 %v1676, %v1870
      %v1873 = vmax.f32 %v1677, %v1871
      %1874 = vst.msk [vmem:[#allocation3 + $0x8] sm:$0xff] %vm602, %v1872
      %1875 = vst.msk [vmem:[#allocation3 + $0x10] sm:$0xff] %vm602, %v1873
      %v1876 = vld [vmem:[#allocation3 + $0x7] sm:$0xff]
      %v1877 = vld [vmem:[#allocation3 + $0xf] sm:$0xff]
      %v1878 = vld [vmem:[#allocation3 + $0x8] sm:$0xff]
      %v1879 = vld [vmem:[#allocation3 + $0x10] sm:$0xff]
      %v1880 = vld [vmem:[#allocation3 + $0x9] sm:$0xff]
      %v1881 = vld [vmem:[#allocation3 + $0x11] sm:$0xff]
      %v1882 = vld [vmem:[#allocation3 + $0xa] sm:$0xff]
      %v1883 = vld [vmem:[#allocation3 + $0x12] sm:$0xff]
      %1886 = vrot.lane.b32.xlu0 %v1878, 32
      %v1887 = vpop.permute.xlu0 %1886
      %1888 = vrot.lane.b32.xlu0 %v1879, 32
      %v1889 = vpop.permute.xlu0 %1888
      %1894 = vrot.lane.b32.xlu0 %v1880, 64
      %v1895 = vpop.permute.xlu0 %1894
      %1896 = vrot.lane.b32.xlu0 %v1881, 64
      %v1897 = vpop.permute.xlu0 %1896
      %1902 = vrot.lane.b32.xlu0 %v1882, 96
      %v1903 = vpop.permute.xlu0 %1902
      %1904 = vrot.lane.b32.xlu0 %v1883, 96
      %v1905 = vpop.permute.xlu0 %1904
      %v1908 = vsel %vm602, %v1876, %v1887
      %v1909 = vsel %vm602, %v1877, %v1889
      %v1910 = vsel %vm898, %v1908, %v1895
      %v1911 = vsel %vm898, %v1909, %v1897
      %v1912 = vsel %vm901, %v1910, %v1903
      %v1913 = vsel %vm901, %v1911, %v1905
      %v1914 = vpack.c.bf16 %v1912, %v1912
      %v1915 = vpack.c.bf16 %v1913, %v1913
      %v1916 = vld [vmem:[%s7] sm:$0xf]
      %v1917 = vld [vmem:[%s7 + $0x4] sm:$0xf]
      %v1918 = vld [vmem:[%s7 + $0x8] sm:$0xf]
      %v1919 = vld [vmem:[%s7 + $0xc] sm:$0xf]
      %v1920 = vld [vmem:[%s7 + $0x10] sm:$0xf]
      %v1921 = vld [vmem:[%s7 + $0x14] sm:$0xf]
      %v1922 = vld [vmem:[%s7 + $0x18] sm:$0xf]
      %v1923 = vld [vmem:[%s7 + $0x1c] sm:$0xf]
      %v1924 = vld [vmem:[%s7 + $0x20] sm:$0xf]
      %v1925 = vld [vmem:[%s7 + $0x24] sm:$0xf]
      %v1926 = vld [vmem:[%s7 + $0x28] sm:$0xf]
      %v1927 = vld [vmem:[%s7 + $0x2c] sm:$0xf]
      %v1928 = vld [vmem:[%s7 + $0x30] sm:$0xf]
      %v1929 = vld [vmem:[%s7 + $0x34] sm:$0xf]
      %v1930 = vld [vmem:[%s7 + $0x38] sm:$0xf]
      %v1931 = vld [vmem:[%s7 + $0x3c] sm:$0xf]
      %v1934 = vunpack.c.l.b16 %v1914
      %v1935 = vunpack.c.l.b16 %v1915
      %v1936 = vpack.c.b16 %v1935, %v1934
      %v1954 = vunpack.c.l.b16 %v1916
      %v1955 = vunpack.c.l.b16 %v1917
      %v1956 = vunpack.c.l.b16 %v1918
      %v1957 = vunpack.c.l.b16 %v1919
      %v1958 = vunpack.c.l.b16 %v1920
      %v1959 = vunpack.c.l.b16 %v1921
      %v1960 = vunpack.c.l.b16 %v1922
      %v1961 = vunpack.c.l.b16 %v1923
      %v1962 = vunpack.c.l.b16 %v1924
      %v1963 = vunpack.c.l.b16 %v1925
      %v1964 = vunpack.c.l.b16 %v1926
      %v1965 = vunpack.c.l.b16 %v1927
      %v1966 = vunpack.c.l.b16 %v1928
      %v1967 = vunpack.c.l.b16 %v1929
      %v1968 = vunpack.c.l.b16 %v1930
      %v1969 = vunpack.c.l.b16 %v1931
      %v1970 = vpack.c.b16 %v1955, %v1954
      %v1971 = vpack.c.b16 %v1957, %v1956
      %v1972 = vpack.c.b16 %v1959, %v1958
      %v1973 = vpack.c.b16 %v1961, %v1960
      %v1974 = vpack.c.b16 %v1963, %v1962
      %v1975 = vpack.c.b16 %v1965, %v1964
      %v1976 = vpack.c.b16 %v1967, %v1966
      %v1977 = vpack.c.b16 %v1969, %v1968
      %1986 = vmatpush.bf16.msra.mxu0 %v1977
      %1987 = vmatpush.bf16.msra.mxu0 %v1976
      %1988 = vmatpush.bf16.msra.mxu0 %v1975
      %1989 = vmatpush.bf16.msra.mxu0 %v1974
      %1990 = vmatpush.bf16.msra.mxu0 %v1973
      %1991 = vmatpush.bf16.msra.mxu0 %v1972
      %1992 = vmatpush.bf16.msra.mxu0 %v1971
      %1993 = vmatpush.bf16.msra.mxu0 %v1970
      %1994 = vmatmul.bf16.gmra.mxu0 %v1936
      %v1995 = vpop.f32.mrf.mxu0
      %v1996 = vadd.f32 0.0, %v1995
      %v1997 = vpop.f32.mrf.mxu0
      %v1998 = vadd.f32 0.0, %v1997
      %1999 = vdwg.mxu0
      %v2000 = vld [vmem:[%s8] sm:$0x1]
      %v2002 = vperm.slane %v2000, 0
      %v2004 = vadd.f32 %v1996, %v2002
      %v2005 = vadd.f32 %v1998, %v2002
      %vm2006 = vcmp.ge.f32.partialorder %v2004, 0.0
      %vm2007 = vcmp.ge.f32.partialorder %v2005, 0.0
      %v2008 = vmul.f32 %v2004, 0.01
      %v2009 = vmul.f32 %v2005, 0.01
      %v2010 = vsel %vm2006, %v2004, %v2008
      %v2011 = vsel %vm2007, %v2005, %v2009
      %2012 = vst.msk [vmem:[#allocation4 + $0x8] sm:$0xff] %vm898, %v2010
      %2013 = vst.msk [vmem:[#allocation4 + $0x10] sm:$0xff] %vm898, %v2011
      %v2014 = vld [vmem:[%s11] sm:$0x1]
      %v2015 = vld [vmem:[%s12] sm:$0x1]
      %s2016 = scalar_lea.vmem [#allocation4], 7
      %v2017 = vld [vmem:[%s2016] ss:$4 sm:$0xf]
      %s2018 = scalar_lea.vmem [#allocation4], 8
      %v2019 = vld [vmem:[%s2018] ss:$4 sm:$0xf]
      %s2020 = scalar_lea.vmem [#allocation4], 9
      %v2021 = vld [vmem:[%s2020] ss:$4 sm:$0xf]
      %s2022 = scalar_lea.vmem [#allocation4], 10
      %v2023 = vld [vmem:[%s2022] ss:$4 sm:$0xf]
      %2025 = vrot.lane.b32.xlu0 %v2019, 64
      %v2026 = vpop.permute.xlu0 %2025
      %2029 = vrot.lane.b32.xlu0 %v2023, 64
      %v2030 = vpop.permute.xlu0 %2029
      %v2032 = vsel %vm898, %v2017, %v2026
      %v2033 = vsel %vm898, %v2021, %v2030
      %v2034 = vpack.c.bf16 %v2033, %v2032
      %v2036 = vunpack.c.l.b16 %v2034
      %v2037 = vunpack.c.h.b16 %v2034
      %v2038 = vpack.c.b16 %v2036, %v2036
      %v2039 = vpack.c.b16 %v2037, %v2037
      %vm2040 = vcmask 1041408
      %v2043 = vsel %vm2040, %v2038, 0
      %v2046 = vsel %vm2040, %v2039, 0
      %v2048 = vld [vmem:[%s9] sm:$0xf]
      %v2049 = vld [vmem:[%s9 + $0x4] sm:$0xf]
      %v2050 = vld [vmem:[%s9 + $0x8] sm:$0xf]
      %v2051 = vld [vmem:[%s9 + $0xc] sm:$0xf]
      %v2052 = vld [vmem:[%s9 + $0x10] sm:$0xf]
      %v2053 = vld [vmem:[%s9 + $0x14] sm:$0xf]
      %v2054 = vld [vmem:[%s9 + $0x18] sm:$0xf]
      %v2055 = vld [vmem:[%s9 + $0x1c] sm:$0xf]
      %v2056 = vld [vmem:[%s9 + $0x20] sm:$0xf]
      %v2057 = vld [vmem:[%s9 + $0x24] sm:$0xf]
      %v2058 = vld [vmem:[%s9 + $0x28] sm:$0xf]
      %v2059 = vld [vmem:[%s9 + $0x2c] sm:$0xf]
      %v2060 = vld [vmem:[%s9 + $0x30] sm:$0xf]
      %v2061 = vld [vmem:[%s9 + $0x34] sm:$0xf]
      %v2062 = vld [vmem:[%s9 + $0x38] sm:$0xf]
      %v2063 = vld [vmem:[%s9 + $0x3c] sm:$0xf]
      %v2064 = vld [vmem:[%s9 + $0x40] sm:$0xf]
      %v2065 = vld [vmem:[%s9 + $0x44] sm:$0xf]
      %v2066 = vld [vmem:[%s9 + $0x48] sm:$0xf]
      %v2067 = vld [vmem:[%s9 + $0x4c] sm:$0xf]
      %v2068 = vld [vmem:[%s9 + $0x50] sm:$0xf]
      %v2069 = vld [vmem:[%s9 + $0x54] sm:$0xf]
      %v2070 = vld [vmem:[%s9 + $0x58] sm:$0xf]
      %v2071 = vld [vmem:[%s9 + $0x5c] sm:$0xf]
      %v2072 = vld [vmem:[%s9 + $0x60] sm:$0xf]
      %v2073 = vld [vmem:[%s9 + $0x64] sm:$0xf]
      %v2074 = vld [vmem:[%s9 + $0x68] sm:$0xf]
      %v2075 = vld [vmem:[%s9 + $0x6c] sm:$0xf]
      %v2076 = vld [vmem:[%s9 + $0x70] sm:$0xf]
      %v2077 = vld [vmem:[%s9 + $0x74] sm:$0xf]
      %v2078 = vld [vmem:[%s9 + $0x78] sm:$0xf]
      %v2079 = vld [vmem:[%s9 + $0x7c] sm:$0xf]
      %v2112 = vunpack.c.l.b16 %v2048
      %v2113 = vunpack.c.l.b16 %v2049
      %v2114 = vunpack.c.l.b16 %v2050
      %v2115 = vunpack.c.l.b16 %v2051
      %v2116 = vunpack.c.l.b16 %v2052
      %v2117 = vunpack.c.l.b16 %v2053
      %v2118 = vunpack.c.l.b16 %v2054
      %v2119 = vunpack.c.l.b16 %v2055
      %v2120 = vunpack.c.l.b16 %v2056
      %v2121 = vunpack.c.l.b16 %v2057
      %v2122 = vunpack.c.l.b16 %v2058
      %v2123 = vunpack.c.l.b16 %v2059
      %v2124 = vunpack.c.l.b16 %v2060
      %v2125 = vunpack.c.l.b16 %v2061
      %v2126 = vunpack.c.l.b16 %v2062
      %v2127 = vunpack.c.l.b16 %v2063
      %v2128 = vunpack.c.l.b16 %v2064
      %v2129 = vunpack.c.l.b16 %v2065
      %v2130 = vunpack.c.l.b16 %v2066
      %v2131 = vunpack.c.l.b16 %v2067
      %v2132 = vunpack.c.l.b16 %v2068
      %v2133 = vunpack.c.l.b16 %v2069
      %v2134 = vunpack.c.l.b16 %v2070
      %v2135 = vunpack.c.l.b16 %v2071
      %v2136 = vunpack.c.l.b16 %v2072
      %v2137 = vunpack.c.l.b16 %v2073
      %v2138 = vunpack.c.l.b16 %v2074
      %v2139 = vunpack.c.l.b16 %v2075
      %v2140 = vunpack.c.l.b16 %v2076
      %v2141 = vunpack.c.l.b16 %v2077
      %v2142 = vunpack.c.l.b16 %v2078
      %v2143 = vunpack.c.l.b16 %v2079
      %v2144 = vpack.c.b16 %v2113, %v2112
      %v2145 = vpack.c.b16 %v2115, %v2114
      %v2146 = vpack.c.b16 %v2117, %v2116
      %v2147 = vpack.c.b16 %v2119, %v2118
      %v2148 = vpack.c.b16 %v2121, %v2120
      %v2149 = vpack.c.b16 %v2123, %v2122
      %v2150 = vpack.c.b16 %v2125, %v2124
      %v2151 = vpack.c.b16 %v2127, %v2126
      %v2152 = vpack.c.b16 %v2129, %v2128
      %v2153 = vpack.c.b16 %v2131, %v2130
      %v2154 = vpack.c.b16 %v2133, %v2132
      %v2155 = vpack.c.b16 %v2135, %v2134
      %v2156 = vpack.c.b16 %v2137, %v2136
      %v2157 = vpack.c.b16 %v2139, %v2138
      %v2158 = vpack.c.b16 %v2141, %v2140
      %v2159 = vpack.c.b16 %v2143, %v2142
      %2176 = vmatpush.bf16.msra.mxu0 %v2151
      %2177 = vmatpush.bf16.msra.mxu0 %v2150
      %2178 = vmatpush.bf16.msra.mxu0 %v2149
      %2179 = vmatpush.bf16.msra.mxu0 %v2148
      %2180 = vmatpush.bf16.msra.mxu0 %v2147
      %2181 = vmatpush.bf16.msra.mxu0 %v2146
      %2182 = vmatpush.bf16.msra.mxu0 %v2145
      %2183 = vmatpush.bf16.msra.mxu0 %v2144
      %2184 = vmatmul.bf16.gmra.mxu0 %v2043
      %v2185 = vpop.f32.mrf.mxu0
      %v2186 = vadd.f32 0.0, %v2185
      %v2187 = vpop.f32.mrf.mxu0
      %2188 = vdwg.mxu0
      %2189 = vmatpush.bf16.msra.mxu0 %v2159
      %2190 = vmatpush.bf16.msra.mxu0 %v2158
      %2191 = vmatpush.bf16.msra.mxu0 %v2157
      %2192 = vmatpush.bf16.msra.mxu0 %v2156
      %2193 = vmatpush.bf16.msra.mxu0 %v2155
      %2194 = vmatpush.bf16.msra.mxu0 %v2154
      %2195 = vmatpush.bf16.msra.mxu0 %v2153
      %2196 = vmatpush.bf16.msra.mxu0 %v2152
      %2197 = vmatmul.bf16.gmra.mxu0 %v2046
      %v2198 = vpop.f32.mrf.mxu0
      %v2199 = vadd.f32 %v2186, %v2198
      %v2200 = vpop.f32.mrf.mxu0
      %2201 = vdwg.mxu0
      %v2202 = vld [vmem:[%s10] sm:$0x1]
      %v2204 = vperm.slane %v2202, 0
      %v2206 = vadd.f32 %v2199, %v2204
      %vm2207 = vcmp.ge.f32.partialorder %v2206, 0.0
      %v2208 = vmul.f32 %v2206, 0.01
      %v2209 = vsel %vm2207, %v2206, %v2208
      %v2211 = vperm.slane %v2014, 0
      %v2213 = vmul.f32 %v2209, %v2211
      %v2215 = vperm.slane %v2015, 0
      %v2217 = vadd.f32 %v2213, %v2215
      %s2218 = scalar_lea.vmem [#allocation4], 11
      %v2219 = vld [vmem:[%s2218] ss:$4 sm:$0xf]
      %2221 = vrot.lane.b32.xlu0 %v2021, 64
      %v2222 = vpop.permute.xlu0 %2221
      %2225 = vrot.lane.b32.xlu0 %v2219, 64
      %v2226 = vpop.permute.xlu0 %2225
      %v2228 = vsel %vm898, %v2019, %v2222
      %v2229 = vsel %vm898, %v2023, %v2226
      %v2230 = vpack.c.bf16 %v2229, %v2228
      %v2232 = vunpack.c.l.b16 %v2230
      %v2233 = vunpack.c.h.b16 %v2230
      %v2234 = vpack.c.b16 %v2232, %v2232
      %v2235 = vpack.c.b16 %v2233, %v2233
      %v2237 = vsel %vm2040, %v2234, 0
      %v2240 = vsel %vm2040, %v2235, 0
      %2242 = vmatpush.bf16.msra.mxu0 %v2151
      %2243 = vmatpush.bf16.msra.mxu0 %v2150
      %2244 = vmatpush.bf16.msra.mxu0 %v2149
      %2245 = vmatpush.bf16.msra.mxu0 %v2148
      %2246 = vmatpush.bf16.msra.mxu0 %v2147
      %2247 = vmatpush.bf16.msra.mxu0 %v2146
      %2248 = vmatpush.bf16.msra.mxu0 %v2145
      %2249 = vmatpush.bf16.msra.mxu0 %v2144
      %2250 = vmatmul.bf16.gmra.mxu0 %v2237
      %v2251 = vpop.f32.mrf.mxu0
      %v2252 = vadd.f32 0.0, %v2251
      %v2253 = vpop.f32.mrf.mxu0
      %2254 = vdwg.mxu0
      %2255 = vmatpush.bf16.msra.mxu0 %v2159
      %2256 = vmatpush.bf16.msra.mxu0 %v2158
      %2257 = vmatpush.bf16.msra.mxu0 %v2157
      %2258 = vmatpush.bf16.msra.mxu0 %v2156
      %2259 = vmatpush.bf16.msra.mxu0 %v2155
      %2260 = vmatpush.bf16.msra.mxu0 %v2154
      %2261 = vmatpush.bf16.msra.mxu0 %v2153
      %2262 = vmatpush.bf16.msra.mxu0 %v2152
      %2263 = vmatmul.bf16.gmra.mxu0 %v2240
      %v2264 = vpop.f32.mrf.mxu0
      %v2265 = vadd.f32 %v2252, %v2264
      %v2266 = vpop.f32.mrf.mxu0
      %2267 = vdwg.mxu0
      %v2268 = vadd.f32 %v2265, %v2204
      %vm2269 = vcmp.ge.f32.partialorder %v2268, 0.0
      %v2270 = vmul.f32 %v2268, 0.01
      %v2271 = vsel %vm2269, %v2268, %v2270
      %v2272 = vmul.f32 %v2271, %v2211
      %v2273 = vadd.f32 %v2272, %v2215
      %v2274 = vmax.f32 %v2217, %v2273
      %s2275 = scalar_lea.vmem [#allocation4], 12
      %v2276 = vld [vmem:[%s2275] ss:$4 sm:$0xf]
      %2278 = vrot.lane.b32.xlu0 %v2276, 64
      %v2279 = vpop.permute.xlu0 %2278
      %v2281 = vsel %vm898, %v2219, %v2279
      %v2282 = vpack.c.bf16 %v2281, %v2033
      %v2284 = vunpack.c.l.b16 %v2282
      %v2285 = vunpack.c.h.b16 %v2282
      %v2286 = vpack.c.b16 %v2284, %v2284
      %v2287 = vpack.c.b16 %v2285, %v2285
      %v2289 = vsel %vm2040, %v2286, 0
      %v2292 = vsel %vm2040, %v2287, 0
      %2294 = vmatpush.bf16.msra.mxu0 %v2151
      %2295 = vmatpush.bf16.msra.mxu0 %v2150
      %2296 = vmatpush.bf16.msra.mxu0 %v2149
      %2297 = vmatpush.bf16.msra.mxu0 %v2148
      %2298 = vmatpush.bf16.msra.mxu0 %v2147
      %2299 = vmatpush.bf16.msra.mxu0 %v2146
      %2300 = vmatpush.bf16.msra.mxu0 %v2145
      %2301 = vmatpush.bf16.msra.mxu0 %v2144
      %2302 = vmatmul.bf16.gmra.mxu0 %v2289
      %v2303 = vpop.f32.mrf.mxu0
      %v2304 = vadd.f32 0.0, %v2303
      %v2305 = vpop.f32.mrf.mxu0
      %2306 = vdwg.mxu0
      %2307 = vmatpush.bf16.msra.mxu0 %v2159
      %2308 = vmatpush.bf16.msra.mxu0 %v2158
      %2309 = vmatpush.bf16.msra.mxu0 %v2157
      %2310 = vmatpush.bf16.msra.mxu0 %v2156
      %2311 = vmatpush.bf16.msra.mxu0 %v2155
      %2312 = vmatpush.bf16.msra.mxu0 %v2154
      %2313 = vmatpush.bf16.msra.mxu0 %v2153
      %2314 = vmatpush.bf16.msra.mxu0 %v2152
      %2315 = vmatmul.bf16.gmra.mxu0 %v2292
      %v2316 = vpop.f32.mrf.mxu0
      %v2317 = vadd.f32 %v2304, %v2316
      %v2318 = vpop.f32.mrf.mxu0
      %2319 = vdwg.mxu0
      %v2320 = vadd.f32 %v2317, %v2204
      %vm2321 = vcmp.ge.f32.partialorder %v2320, 0.0
      %v2322 = vmul.f32 %v2320, 0.01
      %v2323 = vsel %vm2321, %v2320, %v2322
      %v2324 = vmul.f32 %v2323, %v2211
      %v2325 = vadd.f32 %v2324, %v2215
      %v2326 = vmax.f32 %v2274, %v2325
      %s2327 = scalar_lea.vmem [#allocation4], 13
      %v2328 = vld [vmem:[%s2327] ss:$4 sm:$0xf]
      %2330 = vrot.lane.b32.xlu0 %v2328, 64
      %v2331 = vpop.permute.xlu0 %2330
      %v2333 = vsel %vm898, %v2276, %v2331
      %v2334 = vpack.c.bf16 %v2333, %v2229
      %v2336 = vunpack.c.l.b16 %v2334
      %v2337 = vunpack.c.h.b16 %v2334
      %v2338 = vpack.c.b16 %v2336, %v2336
      %v2339 = vpack.c.b16 %v2337, %v2337
      %v2341 = vsel %vm2040, %v2338, 0
      %v2344 = vsel %vm2040, %v2339, 0
      %2346 = vmatpush.bf16.msra.mxu0 %v2151
      %2347 = vmatpush.bf16.msra.mxu0 %v2150
      %2348 = vmatpush.bf16.msra.mxu0 %v2149
      %2349 = vmatpush.bf16.msra.mxu0 %v2148
      %2350 = vmatpush.bf16.msra.mxu0 %v2147
      %2351 = vmatpush.bf16.msra.mxu0 %v2146
      %2352 = vmatpush.bf16.msra.mxu0 %v2145
      %2353 = vmatpush.bf16.msra.mxu0 %v2144
      %2354 = vmatmul.bf16.gmra.mxu0 %v2341
      %v2355 = vpop.f32.mrf.mxu0
      %v2356 = vadd.f32 0.0, %v2355
      %v2357 = vpop.f32.mrf.mxu0
      %2358 = vdwg.mxu0
      %2359 = vmatpush.bf16.msra.mxu0 %v2159
      %2360 = vmatpush.bf16.msra.mxu0 %v2158
      %2361 = vmatpush.bf16.msra.mxu0 %v2157
      %2362 = vmatpush.bf16.msra.mxu0 %v2156
      %2363 = vmatpush.bf16.msra.mxu0 %v2155
      %2364 = vmatpush.bf16.msra.mxu0 %v2154
      %2365 = vmatpush.bf16.msra.mxu0 %v2153
      %2366 = vmatpush.bf16.msra.mxu0 %v2152
      %2367 = vmatmul.bf16.gmra.mxu0 %v2344
      %v2368 = vpop.f32.mrf.mxu0
      %v2369 = vadd.f32 %v2356, %v2368
      %v2370 = vpop.f32.mrf.mxu0
      %2371 = vdwg.mxu0
      %v2372 = vadd.f32 %v2369, %v2204
      %vm2373 = vcmp.ge.f32.partialorder %v2372, 0.0
      %v2374 = vmul.f32 %v2372, 0.01
      %v2375 = vsel %vm2373, %v2372, %v2374
      %v2376 = vmul.f32 %v2375, %v2211
      %v2377 = vadd.f32 %v2376, %v2215
      %v2378 = vmax.f32 %v2326, %v2377
      %vm2379 = vcmask 519168
      %2380 = vst.msk [vmem:[#allocation5] sm:$0xf] %vm2379, %v2378
      %v2381 = vld [vmem:[#allocation5] sm:$0xf]
      %v2382 = vpack.c.bf16 %v2381, %v2381
      %v2384 = vsel %vm2040, %v2382, 0
      %v2385 = vld [vmem:[%s13] sm:$0xf]
      %v2386 = vld [vmem:[%s13 + $0x4] sm:$0xf]
      %v2387 = vld [vmem:[%s13 + $0x8] sm:$0xf]
      %v2388 = vld [vmem:[%s13 + $0xc] sm:$0xf]
      %v2389 = vld [vmem:[%s13 + $0x10] sm:$0xf]
      %v2390 = vld [vmem:[%s13 + $0x14] sm:$0xf]
      %v2391 = vld [vmem:[%s13 + $0x18] sm:$0xf]
      %v2392 = vld [vmem:[%s13 + $0x1c] sm:$0xf]
      %v2401 = vunpack.c.l.b16 %v2385
      %v2402 = vunpack.c.l.b16 %v2386
      %v2403 = vunpack.c.l.b16 %v2387
      %v2404 = vunpack.c.l.b16 %v2388
      %v2405 = vunpack.c.l.b16 %v2389
      %v2406 = vunpack.c.l.b16 %v2390
      %v2407 = vunpack.c.l.b16 %v2391
      %v2408 = vunpack.c.l.b16 %v2392
      %v2409 = vpack.c.b16 %v2402, %v2401
      %v2410 = vpack.c.b16 %v2404, %v2403
      %v2411 = vpack.c.b16 %v2406, %v2405
      %v2412 = vpack.c.b16 %v2408, %v2407
      %v2417 = vsel %vm898, %v2384, 0
      %2419 = vmatpush.bf16.msra.mxu0 0
      %2420 = vmatpush.bf16.msra.mxu0 0
      %2421 = vmatpush.bf16.msra.mxu0 0
      %2422 = vmatpush.bf16.msra.mxu0 0
      %2423 = vmatpush.bf16.msra.mxu0 %v2412
      %2424 = vmatpush.bf16.msra.mxu0 %v2411
      %2425 = vmatpush.bf16.msra.mxu0 %v2410
      %2426 = vmatpush.bf16.msra.mxu0 %v2409
      %2427 = vmatmul.bf16.gmra.mxu0 %v2417
      %v2428 = vpop.f32.mrf.mxu0
      %v2429 = vadd.f32 0.0, %v2428
      %v2430 = vpop.f32.mrf.mxu0
      %2431 = vdwg.mxu0
      %v2432 = vld [vmem:[%s14] sm:$0x1]
      %v2434 = vperm.slane %v2432, 0
      %v2436 = vadd.f32 %v2429, %v2434
      %vm2437 = vcmp.ge.f32.partialorder %v2436, 0.0
      %v2438 = vmul.f32 %v2436, 0.01
      %v2439 = vsel %vm2437, %v2436, %v2438
      %2440 = vst [vmem:[#allocation6] sm:$0xf] %v2439
      %v2441 = vld [vmem:[%s17] sm:$0x1]
      %v2442 = vld [vmem:[%s18] sm:$0x1]
      %v2443 = vld [vmem:[#allocation6] ss:$4 sm:$0x1]
      %v2444 = vpack.c.bf16 %v2443, %v2443
      %vm2445 = vcmask 1040384
      %vm2446 = vsmask.f32 256
      %vm2447 = vmand %vm2445, %vm2446
      %v2448 = vsel %vm2447, %v2444, 0
      %v2449 = vld [vmem:[%s15] sm:$0xf]
      %v2450 = vld [vmem:[%s15 + $0x4] sm:$0xf]
      %v2451 = vld [vmem:[%s15 + $0x8] sm:$0xf]
      %v2452 = vld [vmem:[%s15 + $0xc] sm:$0xf]
      %v2453 = vld [vmem:[%s15 + $0x10] sm:$0xf]
      %v2454 = vld [vmem:[%s15 + $0x14] sm:$0xf]
      %v2455 = vld [vmem:[%s15 + $0x18] sm:$0xf]
      %v2456 = vld [vmem:[%s15 + $0x1c] sm:$0xf]
      %v2457 = vld [vmem:[%s15 + $0x20] sm:$0xf]
      %v2458 = vld [vmem:[%s15 + $0x24] sm:$0xf]
      %v2459 = vld [vmem:[%s15 + $0x28] sm:$0xf]
      %v2460 = vld [vmem:[%s15 + $0x2c] sm:$0xf]
      %v2461 = vld [vmem:[%s15 + $0x30] sm:$0xf]
      %v2462 = vld [vmem:[%s15 + $0x34] sm:$0xf]
      %v2463 = vld [vmem:[%s15 + $0x38] sm:$0xf]
      %v2464 = vld [vmem:[%s15 + $0x3c] sm:$0xf]
      %v2481 = vunpack.c.l.b16 %v2449
      %v2482 = vunpack.c.l.b16 %v2450
      %v2483 = vunpack.c.l.b16 %v2451
      %v2484 = vunpack.c.l.b16 %v2452
      %v2485 = vunpack.c.l.b16 %v2453
      %v2486 = vunpack.c.l.b16 %v2454
      %v2487 = vunpack.c.l.b16 %v2455
      %v2488 = vunpack.c.l.b16 %v2456
      %v2489 = vunpack.c.l.b16 %v2457
      %v2490 = vunpack.c.l.b16 %v2458
      %v2491 = vunpack.c.l.b16 %v2459
      %v2492 = vunpack.c.l.b16 %v2460
      %v2493 = vunpack.c.l.b16 %v2461
      %v2494 = vunpack.c.l.b16 %v2462
      %v2495 = vunpack.c.l.b16 %v2463
      %v2496 = vunpack.c.l.b16 %v2464
      %v2497 = vpack.c.b16 %v2482, %v2481
      %v2498 = vpack.c.b16 %v2484, %v2483
      %v2499 = vpack.c.b16 %v2486, %v2485
      %v2500 = vpack.c.b16 %v2488, %v2487
      %v2501 = vpack.c.b16 %v2490, %v2489
      %v2502 = vpack.c.b16 %v2492, %v2491
      %v2503 = vpack.c.b16 %v2494, %v2493
      %v2504 = vpack.c.b16 %v2496, %v2495
      %2513 = vmatpush.bf16.msra.mxu0 %v2504
      %2514 = vmatpush.bf16.msra.mxu0 %v2503
      %2515 = vmatpush.bf16.msra.mxu0 %v2502
      %2516 = vmatpush.bf16.msra.mxu0 %v2501
      %2517 = vmatpush.bf16.msra.mxu0 %v2500
      %2518 = vmatpush.bf16.msra.mxu0 %v2499
      %2519 = vmatpush.bf16.msra.mxu0 %v2498
      %2520 = vmatpush.bf16.msra.mxu0 %v2497
      %2521 = vmatmul.bf16.gmra.mxu0 %v2448
      %v2522 = vpop.f32.mrf.mxu0
      %v2523 = vadd.f32 0.0, %v2522
      %v2524 = vpop.f32.mrf.mxu0
      %2525 = vdwg.mxu0
      %v2526 = vld [vmem:[%s16] sm:$0x1]
      %v2527 = vadd.f32 %v2523, %v2526
      %vm2528 = vcmp.ge.f32.partialorder %v2527, 0.0
      %v2529 = vmul.f32 %v2527, 0.01
      %v2530 = vsel %vm2528, %v2527, %v2529
      %v2531 = vmul.f32 %v2530, %v2441
      %v2532 = vadd.f32 %v2531, %v2442
      %s2533 = scalar_lea.vmem [#allocation6], 1
      %v2534 = vld [vmem:[%s2533] ss:$4 sm:$0x1]
      %v2535 = vpack.c.bf16 %v2534, %v2534
      %v2536 = vsel %vm2447, %v2535, 0
      %2537 = vmatpush.bf16.msra.mxu0 %v2504
      %2538 = vmatpush.bf16.msra.mxu0 %v2503
      %2539 = vmatpush.bf16.msra.mxu0 %v2502
      %2540 = vmatpush.bf16.msra.mxu0 %v2501
      %2541 = vmatpush.bf16.msra.mxu0 %v2500
      %2542 = vmatpush.bf16.msra.mxu0 %v2499
      %2543 = vmatpush.bf16.msra.mxu0 %v2498
      %2544 = vmatpush.bf16.msra.mxu0 %v2497
      %2545 = vmatmul.bf16.gmra.mxu0 %v2536
      %v2546 = vpop.f32.mrf.mxu0
      %v2547 = vadd.f32 0.0, %v2546
      %v2548 = vpop.f32.mrf.mxu0
      %2549 = vdwg.mxu0
      %v2550 = vadd.f32 %v2547, %v2526
      %vm2551 = vcmp.ge.f32.partialorder %v2550, 0.0
      %v2552 = vmul.f32 %v2550, 0.01
      %v2553 = vsel %vm2551, %v2550, %v2552
      %v2554 = vmul.f32 %v2553, %v2441
      %v2555 = vadd.f32 %v2554, %v2442
      %v2556 = vmax.f32 %v2532, %v2555
      %s2557 = scalar_lea.vmem [#allocation6], 2
      %v2558 = vld [vmem:[%s2557] ss:$4 sm:$0x1]
      %v2559 = vpack.c.bf16 %v2558, %v2558
      %v2560 = vsel %vm2447, %v2559, 0
      %2561 = vmatpush.bf16.msra.mxu0 %v2504
      %2562 = vmatpush.bf16.msra.mxu0 %v2503
      %2563 = vmatpush.bf16.msra.mxu0 %v2502
      %2564 = vmatpush.bf16.msra.mxu0 %v2501
      %2565 = vmatpush.bf16.msra.mxu0 %v2500
      %2566 = vmatpush.bf16.msra.mxu0 %v2499
      %2567 = vmatpush.bf16.msra.mxu0 %v2498
      %2568 = vmatpush.bf16.msra.mxu0 %v2497
      %2569 = vmatmul.bf16.gmra.mxu0 %v2560
      %v2570 = vpop.f32.mrf.mxu0
      %v2571 = vadd.f32 0.0, %v2570
      %v2572 = vpop.f32.mrf.mxu0
      %2573 = vdwg.mxu0
      %v2574 = vadd.f32 %v2571, %v2526
      %vm2575 = vcmp.ge.f32.partialorder %v2574, 0.0
      %v2576 = vmul.f32 %v2574, 0.01
      %v2577 = vsel %vm2575, %v2574, %v2576
      %v2578 = vmul.f32 %v2577, %v2441
      %v2579 = vadd.f32 %v2578, %v2442
      %v2580 = vmax.f32 %v2556, %v2579
      %s2581 = scalar_lea.vmem [#allocation6], 3
      %v2582 = vld [vmem:[%s2581] ss:$4 sm:$0x1]
      %v2583 = vpack.c.bf16 %v2582, %v2582
      %v2584 = vsel %vm2447, %v2583, 0
      %2585 = vmatpush.bf16.msra.mxu0 %v2504
      %2586 = vmatpush.bf16.msra.mxu0 %v2503
      %2587 = vmatpush.bf16.msra.mxu0 %v2502
      %2588 = vmatpush.bf16.msra.mxu0 %v2501
      %2589 = vmatpush.bf16.msra.mxu0 %v2500
      %2590 = vmatpush.bf16.msra.mxu0 %v2499
      %2591 = vmatpush.bf16.msra.mxu0 %v2498
      %2592 = vmatpush.bf16.msra.mxu0 %v2497
      %2593 = vmatmul.bf16.gmra.mxu0 %v2584
      %v2594 = vpop.f32.mrf.mxu0
      %v2595 = vadd.f32 0.0, %v2594
      %v2596 = vpop.f32.mrf.mxu0
      %2597 = vdwg.mxu0
      %v2598 = vadd.f32 %v2595, %v2526
      %vm2599 = vcmp.ge.f32.partialorder %v2598, 0.0
      %v2600 = vmul.f32 %v2598, 0.01
      %v2601 = vsel %vm2599, %v2598, %v2600
      %v2602 = vmul.f32 %v2601, %v2441
      %v2603 = vadd.f32 %v2602, %v2442
      %v2604 = vmax.f32 %v2580, %v2603
      %v2605 = vpack.c.bf16 %v2604, %v2604
      %v2606 = vld [vmem:[%s598] sm:$0x1]
      %v2607 = vsel %vm2447, %v2605, %v2606
      %2608 = vst [vmem:[%s598] sm:$0x1] %v2607
      %p2609 = scmp.lt.s32.totalorder %s30, 1
      %s2610 = scalar_select %p2609, %s30, 1
      %s2611 = scalar_lea.vmem %s19, %s2610
      // Predicated region
      $region97: #{cnn_forward.2} parent=95 // pred_check
        %p2612 = pneg %p452
      $region98: #{cnn_forward.2} parent=95 // pred_check_branch
        %2614 = sbr.rel (%p2612) target = $region100
      $region99: #{cnn_forward.2} parent=95 // pred_region
        _
      $region100: #{cnn_forward.2} parent=95 // pred_fallthru
        _
    $region96: #{cnn_forward.2} parent=5 // pred_fallthru
      _
    %p2615 = scmp.le.s32.totalorder 2, %s25
    // Predicated region
    $region101: #{cnn_forward.2} parent=5 // pred_check
      %p2616 = pneg %p2615
    $region102: #{cnn_forward.2} parent=5 // pred_check_branch
      %2618 = sbr.rel (%p2616) target = $region104
    $region103: #{cnn_forward.2} parent=5 // pred_region
      %s2619 = ssub.s32 %s25, 2
      // Predicated region
      $region105: #{cnn_forward.2} parent=103 // pred_check
        %p2620 = pneg %p458
      $region106: #{cnn_forward.2} parent=103 // pred_check_branch
        %2622 = sbr.rel (%p2620) target = $region108
      $region107: #{cnn_forward.2} parent=103 // pred_region
        %p2623 = scmp.lt.s32.totalorder %s31, 1
        %s2624 = scalar_select %p2623, %s31, 1
        %s2625 = scalar_lea.vmem %s19, %s2624
      $region108: #{cnn_forward.2} parent=103 // pred_fallthru
        _
    $region104: #{cnn_forward.2} parent=5 // pred_fallthru
      _
  $region6: #{cnn_forward.2} parent=0 // loop_footer
    %s29 = sadd.s32 1, %s25
  $region7: #{cnn_forward.2} parent=0 // loop_footer_branch
    %24 = sbr.rel target = $region3
  $region8: #{cnn_forward.2} parent=0 // loop_exit
    _

</llo_original>
